<compile_context>
chip_gen: v7x
topology: tpu7x:2x2x1
jax: 0.10.0
libtpu: 0.0.40
codegen_flags: <defaults>
</compile_context>

<pallas_src>
import functools

import jax
import jax.numpy as jnp
from jax.experimental import pallas as pl
from jax.experimental.pallas import tpu as pltpu

N_TRACKS = 4
N_BARS = 2
N_STEPS_PER_BAR = 16
N_PITCHES = 84
_EPS = 1e-5


# ----------------------------------------------------------------------------
# Pallas kernels
# ----------------------------------------------------------------------------
def _fused_layer_kernel(k_taps, x_ref, w_ref, p_ref, o_ref):
    """y = relu(batchnorm(x @ w + bias)) with per-channel stats pooled over
    rows and the k_taps tap-blocks of the (tap-major) output columns.

    p_ref rows: 0 = bias, 1 = gamma, 2 = beta  (each already tiled k_taps x C).
    """
    y = jnp.dot(x_ref[...], w_ref[...], preferred_element_type=jnp.float32)
    y = y + p_ref[0:1, :]
    m_rows, n_cols = y.shape
    c = n_cols // k_taps
    cnt = float(m_rows * k_taps)

    # mean per channel, pooled over rows and taps
    col_sum = jnp.sum(y, axis=0, keepdims=True)                    # (1, N)
    s = col_sum[:, 0:c]
    for t in range(1, k_taps):
        s = s + col_sum[:, t * c:(t + 1) * c]
    mean_c = s / cnt                                               # (1, C)
    mean = mean_c if k_taps == 1 else jnp.concatenate([mean_c] * k_taps, axis=1)

    # biased variance (PyTorch training-mode normalization)
    d = y - mean
    col_sq = jnp.sum(d * d, axis=0, keepdims=True)                 # (1, N)
    v = col_sq[:, 0:c]
    for t in range(1, k_taps):
        v = v + col_sq[:, t * c:(t + 1) * c]
    inv_c = jax.lax.rsqrt(v / cnt + _EPS)                          # (1, C)
    inv = inv_c if k_taps == 1 else jnp.concatenate([inv_c] * k_taps, axis=1)

    o_ref[...] = jnp.maximum(d * inv * p_ref[1:2, :] + p_ref[2:3, :], 0.0)


def _matmul_bias_kernel(x_ref, w_ref, b_ref, o_ref):
    o_ref[...] = (
        jnp.dot(x_ref[...], w_ref[...], preferred_element_type=jnp.float32)
        + b_ref[...]
    )


# ----------------------------------------------------------------------------
# Wrappers: one pallas_call per layer, gridded over networks / (track, bar)
# ----------------------------------------------------------------------------
def fused_layer_nets(x, w, p, k_taps):
    """x: (G, M, K), w: (G, K, N), p: (G, 3, N) -> (G, M, N). grid=(G,)."""
    G, M, K = x.shape
    N = w.shape[2]
    kern = functools.partial(_fused_layer_kernel, k_taps)
    return pl.pallas_call(
        kern,
        out_shape=jax.ShapeDtypeStruct((G, M, N), jnp.float32),
        grid=(G,),
        in_specs=[
            pl.BlockSpec((None, M, K), lambda g: (g, 0, 0)),
            pl.BlockSpec((None, K, N), lambda g: (g, 0, 0)),
            pl.BlockSpec((None, 3, N), lambda g: (g, 0, 0)),
        ],
        out_specs=pl.BlockSpec((None, M, N), lambda g: (g, 0, 0)),
        compiler_params=pltpu.CompilerParams(dimension_semantics=("parallel",)),
    )(x, w, p)


def fused_layer_track_bar(x, w, p, k_taps):
    """x: (T, Bars, M, K), w: (T, K, N), p: (T, 3, N) -> (T, Bars, M, N)."""
    T, Bars, M, K = x.shape
    N = w.shape[2]
    kern = functools.partial(_fused_layer_kernel, k_taps)
    return pl.pallas_call(
        kern,
        out_shape=jax.ShapeDtypeStruct((T, Bars, M, N), jnp.float32),
        grid=(T, Bars),
        in_specs=[
            pl.BlockSpec((None, None, M, K), lambda t, r: (t, r, 0, 0)),
            pl.BlockSpec((None, K, N), lambda t, r: (t, 0, 0)),
            pl.BlockSpec((None, 3, N), lambda t, r: (t, 0, 0)),
        ],
        out_specs=pl.BlockSpec((None, None, M, N), lambda t, r: (t, r, 0, 0)),
        compiler_params=pltpu.CompilerParams(
            dimension_semantics=("parallel", "parallel")),
    )(x, w, p)


def matmul_bias_track_bar(x, w, bias):
    """x: (T, Bars, M, K), w: (T, K, N), bias: (T, 1, N) -> (T, Bars, M, N)."""
    T, Bars, M, K = x.shape
    N = w.shape[2]
    return pl.pallas_call(
        _matmul_bias_kernel,
        out_shape=jax.ShapeDtypeStruct((T, Bars, M, N), jnp.float32),
        grid=(T, Bars),
        in_specs=[
            pl.BlockSpec((None, None, M, K), lambda t, r: (t, r, 0, 0)),
            pl.BlockSpec((None, K, N), lambda t, r: (t, 0, 0)),
            pl.BlockSpec((None, 1, N), lambda t, r: (t, 0, 0)),
        ],
        out_specs=pl.BlockSpec((None, None, M, N), lambda t, r: (t, r, 0, 0)),
        compiler_params=pltpu.CompilerParams(
            dimension_semantics=("parallel", "parallel")),
    )(x, w, bias)


# ----------------------------------------------------------------------------
# Deterministic synthetic parameters (stacked per network / per track)
# ----------------------------------------------------------------------------
def _init(key, shape, scale=0.05):
    return scale * jax.random.normal(key, shape, dtype=jnp.float32)


def _pack_bn(bias, gamma, beta, k):
    """(G, C) x3 -> (G, 3, k*C) with each row tiled tap-major k times."""
    return jnp.stack([jnp.tile(bias, (1, k)),
                      jnp.tile(gamma, (1, k)),
                      jnp.tile(beta, (1, k))], axis=1)


def make_params(key, z, hid_channels, hid_features, out_channels):
    hid = hid_channels                 # TemporalNetwork hidden channels
    C0 = hid_channels // 2             # BarGenerator gets hid_channels // 2
    C1 = C0 // 2
    hf = hid_features
    assert hf == 2 * C0, "BarGenerator expects hid_features == 2 * (hid_channels // 2)"
    G = 1 + N_TRACKS                   # chords net + 4 melody nets
    T = N_TRACKS

    keys = iter(jax.random.split(key, 30))
    nxt = lambda: next(keys)

    temporal = dict(
        # ConvT(z->hid, k=(2,1)): columns (tap, channel)
        w1=_init(nxt(), (G, z, 2 * hid)),
        p1=_pack_bn(_init(nxt(), (G, hid)), 1.0 + _init(nxt(), (G, hid)),
                    _init(nxt(), (G, hid)), 2),
        # ConvT(hid->z, k=(1,1))
        w2=_init(nxt(), (G, hid, z)),
        p2=_pack_bn(_init(nxt(), (G, z)), 1.0 + _init(nxt(), (G, z)),
                    _init(nxt(), (G, z)), 1),
    )

    def conv_block(cin, cout, k):
        w = _init(nxt(), (T, cin, k * cout))
        p = _pack_bn(_init(nxt(), (T, cout)), 1.0 + _init(nxt(), (T, cout)),
                     _init(nxt(), (T, cout)), k)
        return w, p

    w0, p0 = conv_block(4 * z, hf, 1)        # Linear(4z -> hf) + BN1d
    w1, p1 = conv_block(C0, C0, 2)           # ConvT k=(2,1) s=(2,1)
    w2, p2 = conv_block(C0, C1, 2)
    w3, p3 = conv_block(C1, C1, 2)
    w4, p4 = conv_block(C1, C1, 7)           # ConvT k=(1,7) s=(1,7)

    # Final ConvT k=(1,12) s=(1,12): fold the 7 input w-positions into one
    # block-diagonal matmul so the kernel output is lane-dense (84*out wide).
    w5_raw = _init(nxt(), (T, C1, 12 * out_channels))
    b5_raw = _init(nxt(), (T, out_channels))
    eye7 = jnp.eye(7, dtype=jnp.float32)
    w5 = jnp.einsum("ij,tkl->tikjl", eye7, w5_raw).reshape(
        T, 7 * C1, 7 * 12 * out_channels)
    b5 = jnp.tile(b5_raw, (1, 7 * 12)).reshape(T, 1, 7 * 12 * out_channels)

    bargen = dict(w0=w0, p0=p0, w1=w1, p1=p1, w2=w2, p2=p2,
                  w3=w3, p3=p3, w4=w4, p4=p4, w5=w5, b5=b5)
    return dict(temporal=temporal, bargen=bargen)


# ----------------------------------------------------------------------------
# Forward pass (reshapes between layers are free row-major views; all compute
# runs inside the fused Pallas kernels)
# ----------------------------------------------------------------------------
def muse_generator_forward(params, chords, style, melody, groove):
    B, z = chords.shape
    tp, bp = params["temporal"], params["bargen"]
    hid = tp["w1"].shape[2] // 2
    C0 = bp["w1"].shape[1]
    C1 = bp["w3"].shape[1]
    out_ch = bp["b5"].shape[2] // (7 * 12)
    G = 1 + N_TRACKS
    T = N_TRACKS

    # ---- temporal stage: chords + 4 melody networks batched over grid=(5,).
    # PyTorch re-runs each melody TemporalNetwork once per bar (identical
    # result); we compute it once and slice per bar.
    x = jnp.concatenate([chords[None], jnp.transpose(melody, (1, 0, 2))], axis=0)
    h = fused_layer_nets(x, tp["w1"], tp["p1"], k_taps=2)      # (5, B, 2*hid)
    h = h.reshape(G, B * N_BARS, hid)                          # rows = (b, bar)
    h = fused_layer_nets(h, tp["w2"], tp["p2"], k_taps=1)      # (5, B*2, z)
    h = h.reshape(G, B, N_BARS, z)
    chord_out = h[0]                                           # (B, 2, z)
    melody_out = h[1:]                                         # (T, B, 2, z)

    # ---- assemble zc = cat([chord, style, melody, groove]) for every
    # (track, bar): shape (T, Bars, B, 4z)
    c = jnp.broadcast_to(jnp.transpose(chord_out, (1, 0, 2))[None],
                         (T, N_BARS, B, z))
    s = jnp.broadcast_to(style[None, None], (T, N_BARS, B, z))
    m = jnp.transpose(melody_out, (0, 2, 1, 3))
    g = jnp.broadcast_to(jnp.transpose(groove, (1, 0, 2))[:, None],
                         (T, N_BARS, B, z))
    zc = jnp.concatenate([c, s, m, g], axis=-1)                # (T, 2, B, 4z)

    # ---- bar generators: every layer is one pallas_call over grid=(T, Bars)
    h = fused_layer_track_bar(zc, bp["w0"], bp["p0"], k_taps=1)   # (T,2,B,hf)
    h = h.reshape(T, N_BARS, B * 2, C0)                           # Reshape([C0,2,1])
    h = fused_layer_track_bar(h, bp["w1"], bp["p1"], k_taps=2)    # (T,2,2B,2C0)
    h = h.reshape(T, N_BARS, B * 4, C0)
    h = fused_layer_track_bar(h, bp["w2"], bp["p2"], k_taps=2)    # (T,2,4B,2C1)
    h = h.reshape(T, N_BARS, B * 8, C1)
    h = fused_layer_track_bar(h, bp["w3"], bp["p3"], k_taps=2)    # (T,2,8B,2C1)
    h = h.reshape(T, N_BARS, B * N_STEPS_PER_BAR, C1)
    h = fused_layer_track_bar(h, bp["w4"], bp["p4"], k_taps=7)    # (T,2,16B,7C1)
    h = matmul_bias_track_bar(h, bp["w5"], bp["b5"])              # (T,2,16B,84*out)

    # ---- assemble final output: (B, T*out_ch, n_bars, 16, 84)
    h = h.reshape(T, N_BARS, B, N_STEPS_PER_BAR, N_PITCHES, out_ch)
    h = jnp.transpose(h, (2, 0, 5, 1, 3, 4))
    return h.reshape(B, T * out_ch, N_BARS, N_STEPS_PER_BAR, N_PITCHES)


# ----------------------------------------------------------------------------
if __name__ == "__main__":
    # Small, structure-consistent config (defaults are 1024/1024; scaled down).
    B, Z = 2, 32
    HID_CHANNELS, HID_FEATURES, OUT_CHANNELS = 128, 128, 1

    key = jax.random.PRNGKey(0)
    k_p, k_c, k_s, k_m, k_g = jax.random.split(key, 5)
    params = make_params(k_p, Z, HID_CHANNELS, HID_FEATURES, OUT_CHANNELS)

    chords = jax.random.normal(k_c, (B, Z), dtype=jnp.float32)
    style = jax.random.normal(k_s, (B, Z), dtype=jnp.float32)
    melody = jax.random.normal(k_m, (B, N_TRACKS, Z), dtype=jnp.float32)
    groove = jax.random.normal(k_g, (B, N_TRACKS, Z), dtype=jnp.float32)

    fwd = jax.jit(muse_generator_forward)
    out = jax.block_until_ready(fwd(params, chords, style, melody, groove))

    assert out.shape == (B, N_TRACKS * OUT_CHANNELS, N_BARS,
                         N_STEPS_PER_BAR, N_PITCHES), out.shape
    assert out.dtype == jnp.float32
    assert bool(jnp.all(jnp.isfinite(out)))
    print("KERNEL_OK")
</pallas_src>

<mosaic_0001>
module attributes {stable_mosaic.version = 11 : i64} {
  func.func @_fused_layer_kernel(%arg0: i32, %arg1: memref<1x2x32xf32, #tpu.memory_space<vmem>>, %arg2: memref<1x32x256xf32, #tpu.memory_space<vmem>>, %arg3: memref<1x3x256xf32, #tpu.memory_space<vmem>>, %arg4: memref<1x2x256xf32, #tpu.memory_space<vmem>>) attributes {dimension_semantics = [#tpu.dimension_semantics<parallel>], iteration_bounds = array<i64: 5>, scalar_prefetch = 0 : i64, scratch_operands = 0 : i64, tpu.core_type = #tpu.core_type<tc>, window_params = [{transform_indices = @transform_0, window_bounds = array<i64: 1, 2, 32>}, {transform_indices = @transform_1, window_bounds = array<i64: 1, 32, 256>}, {transform_indices = @transform_2, window_bounds = array<i64: 1, 3, 256>}, {transform_indices = @transform_3, window_bounds = array<i64: 1, 2, 256>}]} {
    %c0 = arith.constant 0 : index
    %c0_0 = arith.constant 0 : index
    %c0_1 = arith.constant 0 : index
    %0 = vector.load %arg1[%c0, %c0_0, %c0_1] : memref<1x2x32xf32, #tpu.memory_space<vmem>>, vector<1x2x32xf32>
    %1 = vector.shape_cast %0 : vector<1x2x32xf32> to vector<2x32xf32>
    %c0_2 = arith.constant 0 : index
    %c0_3 = arith.constant 0 : index
    %c0_4 = arith.constant 0 : index
    %2 = vector.load %arg2[%c0_2, %c0_3, %c0_4] : memref<1x32x256xf32, #tpu.memory_space<vmem>>, vector<1x32x256xf32>
    %3 = vector.shape_cast %2 : vector<1x32x256xf32> to vector<32x256xf32>
    %cst = arith.constant dense<0.000000e+00> : vector<2x256xf32>
    %4 = tpu.matmul %1, %3, %cst {dimension_numbers = #tpu.dot_dimension_numbers<[1], [0], [0], [1], [0, 0, 1, 1], [], []>} : vector<2x32xf32>, vector<32x256xf32>, vector<2x256xf32> -> vector<2x256xf32>
    %c0_5 = arith.constant 0 : index
    %c0_6 = arith.constant 0 : index
    %c0_7 = arith.constant 0 : index
    %5 = vector.load %arg3[%c0_5, %c0_6, %c0_7] : memref<1x3x256xf32, #tpu.memory_space<vmem>>, vector<1x1x256xf32>
    %6 = vector.shape_cast %5 : vector<1x1x256xf32> to vector<1x256xf32>
    %7 = vector.broadcast %6 : vector<1x256xf32> to vector<2x256xf32>
    %8 = arith.addf %4, %7 : vector<2x256xf32>
    %cst_8 = arith.constant dense<0.000000e+00> : vector<256xf32>
    %9 = vector.multi_reduction <add>, %8, %cst_8 [0] : vector<2x256xf32> to vector<256xf32>
    %10 = vector.shape_cast %9 : vector<256xf32> to vector<1x256xf32>
    %11 = vector.extract_strided_slice %10 {offsets = [0, 0], sizes = [1, 128], strides = [1, 1]} : vector<1x256xf32> to vector<1x128xf32>
    %12 = vector.extract_strided_slice %10 {offsets = [0, 128], sizes = [1, 128], strides = [1, 1]} : vector<1x256xf32> to vector<1x128xf32>
    %13 = arith.addf %11, %12 : vector<1x128xf32>
    %cst_9 = arith.constant 4.000000e+00 : f32
    %14 = vector.broadcast %cst_9 : f32 to vector<1x128xf32>
    %15 = arith.divf %13, %14 : vector<1x128xf32>
    %16 = tpu.concatenate %15, %15 in 1 : vector<1x128xf32>, vector<1x128xf32> -> vector<1x256xf32>
    %17 = vector.broadcast %16 : vector<1x256xf32> to vector<2x256xf32>
    %18 = arith.subf %8, %17 : vector<2x256xf32>
    %19 = arith.mulf %18, %18 : vector<2x256xf32>
    %cst_10 = arith.constant dense<0.000000e+00> : vector<256xf32>
    %20 = vector.multi_reduction <add>, %19, %cst_10 [0] : vector<2x256xf32> to vector<256xf32>
    %21 = vector.shape_cast %20 : vector<256xf32> to vector<1x256xf32>
    %22 = vector.extract_strided_slice %21 {offsets = [0, 0], sizes = [1, 128], strides = [1, 1]} : vector<1x256xf32> to vector<1x128xf32>
    %23 = vector.extract_strided_slice %21 {offsets = [0, 128], sizes = [1, 128], strides = [1, 1]} : vector<1x256xf32> to vector<1x128xf32>
    %24 = arith.addf %22, %23 : vector<1x128xf32>
    %cst_11 = arith.constant 4.000000e+00 : f32
    %25 = vector.broadcast %cst_11 : f32 to vector<1x128xf32>
    %26 = arith.divf %24, %25 : vector<1x128xf32>
    %cst_12 = arith.constant 9.99999974E-6 : f32
    %27 = vector.broadcast %cst_12 : f32 to vector<1x128xf32>
    %28 = arith.addf %26, %27 : vector<1x128xf32>
    %29 = math.rsqrt %28 : vector<1x128xf32>
    %30 = tpu.concatenate %29, %29 in 1 : vector<1x128xf32>, vector<1x128xf32> -> vector<1x256xf32>
    %31 = vector.broadcast %30 : vector<1x256xf32> to vector<2x256xf32>
    %32 = arith.mulf %18, %31 : vector<2x256xf32>
    %c0_13 = arith.constant 0 : index
    %c1 = arith.constant 1 : index
    %c0_14 = arith.constant 0 : index
    %33 = vector.load %arg3[%c0_13, %c1, %c0_14] : memref<1x3x256xf32, #tpu.memory_space<vmem>>, vector<1x1x256xf32>
    %34 = vector.shape_cast %33 : vector<1x1x256xf32> to vector<1x256xf32>
    %35 = vector.broadcast %34 : vector<1x256xf32> to vector<2x256xf32>
    %36 = arith.mulf %32, %35 : vector<2x256xf32>
    %c0_15 = arith.constant 0 : index
    %c2 = arith.constant 2 : index
    %c0_16 = arith.constant 0 : index
    %37 = vector.load %arg3[%c0_15, %c2, %c0_16] : memref<1x3x256xf32, #tpu.memory_space<vmem>>, vector<1x1x256xf32>
    %38 = vector.shape_cast %37 : vector<1x1x256xf32> to vector<1x256xf32>
    %39 = vector.broadcast %38 : vector<1x256xf32> to vector<2x256xf32>
    %40 = arith.addf %36, %39 : vector<2x256xf32>
    %cst_17 = arith.constant 0.000000e+00 : f32
    %41 = vector.broadcast %cst_17 : f32 to vector<2x256xf32>
    %42 = arith.maximumf %40, %41 : vector<2x256xf32>
    %c0_18 = arith.constant 0 : index
    %c0_19 = arith.constant 0 : index
    %c0_20 = arith.constant 0 : index
    %43 = vector.load %arg4[%c0_18, %c0_19, %c0_20] : memref<1x2x256xf32, #tpu.memory_space<vmem>>, vector<1x2x256xf32>
    %44 = vector.shape_cast %43 : vector<1x2x256xf32> to vector<2x256xf32>
    %45 = vector.shape_cast %42 : vector<2x256xf32> to vector<1x2x256xf32>
    tpu.vector_store %arg4[%c0_18, %c0_19, %c0_20], %45 {strides = array<i32>} : memref<1x2x256xf32, #tpu.memory_space<vmem>>, vector<1x2x256xf32>,
    return
  }
  func.func @transform_0(%arg0: i32) -> (i32, i32, i32) {
    %c0_i32 = arith.constant 0 : i32
    %c0_i32_0 = arith.constant 0 : i32
    %c0_i32_1 = arith.constant 0 : i32
    return %arg0, %c0_i32, %c0_i32_0 : i32, i32, i32
  }
  func.func @transform_1(%arg0: i32) -> (i32, i32, i32) {
    %c0_i32 = arith.constant 0 : i32
    %c0_i32_0 = arith.constant 0 : i32
    %c0_i32_1 = arith.constant 0 : i32
    return %arg0, %c0_i32, %c0_i32_0 : i32, i32, i32
  }
  func.func @transform_2(%arg0: i32) -> (i32, i32, i32) {
    %c0_i32 = arith.constant 0 : i32
    %c0_i32_0 = arith.constant 0 : i32
    %c0_i32_1 = arith.constant 0 : i32
    return %arg0, %c0_i32, %c0_i32_0 : i32, i32, i32
  }
  func.func @transform_3(%arg0: i32) -> (i32, i32, i32) {
    %c0_i32 = arith.constant 0 : i32
    %c0_i32_0 = arith.constant 0 : i32
    %c0_i32_1 = arith.constant 0 : i32
    return %arg0, %c0_i32, %c0_i32_0 : i32, i32, i32
  }
}

module attributes {stable_mosaic.version = 11 : i64} {
  func.func @_fused_layer_kernel(%arg0: i32, %arg1: memref<1x4x128xf32, #tpu.memory_space<vmem>>, %arg2: memref<1x128x32xf32, #tpu.memory_space<vmem>>, %arg3: memref<1x3x32xf32, #tpu.memory_space<vmem>>, %arg4: memref<1x4x32xf32, #tpu.memory_space<vmem>>) attributes {dimension_semantics = [#tpu.dimension_semantics<parallel>], iteration_bounds = array<i64: 5>, scalar_prefetch = 0 : i64, scratch_operands = 0 : i64, tpu.core_type = #tpu.core_type<tc>, window_params = [{transform_indices = @transform_0, window_bounds = array<i64: 1, 4, 128>}, {transform_indices = @transform_1, window_bounds = array<i64: 1, 128, 32>}, {transform_indices = @transform_2, window_bounds = array<i64: 1, 3, 32>}, {transform_indices = @transform_3, window_bounds = array<i64: 1, 4, 32>}]} {
    %c0 = arith.constant 0 : index
    %c0_0 = arith.constant 0 : index
    %c0_1 = arith.constant 0 : index
    %0 = vector.load %arg1[%c0, %c0_0, %c0_1] : memref<1x4x128xf32, #tpu.memory_space<vmem>>, vector<1x4x128xf32>
    %1 = vector.shape_cast %0 : vector<1x4x128xf32> to vector<4x128xf32>
    %c0_2 = arith.constant 0 : index
    %c0_3 = arith.constant 0 : index
    %c0_4 = arith.constant 0 : index
    %2 = vector.load %arg2[%c0_2, %c0_3, %c0_4] : memref<1x128x32xf32, #tpu.memory_space<vmem>>, vector<1x128x32xf32>
    %3 = vector.shape_cast %2 : vector<1x128x32xf32> to vector<128x32xf32>
    %cst = arith.constant dense<0.000000e+00> : vector<4x32xf32>
    %4 = tpu.matmul %1, %3, %cst {dimension_numbers = #tpu.dot_dimension_numbers<[1], [0], [0], [1], [0, 0, 1, 1], [], []>} : vector<4x128xf32>, vector<128x32xf32>, vector<4x32xf32> -> vector<4x32xf32>
    %c0_5 = arith.constant 0 : index
    %c0_6 = arith.constant 0 : index
    %c0_7 = arith.constant 0 : index
    %5 = vector.load %arg3[%c0_5, %c0_6, %c0_7] : memref<1x3x32xf32, #tpu.memory_space<vmem>>, vector<1x1x32xf32>
    %6 = vector.shape_cast %5 : vector<1x1x32xf32> to vector<1x32xf32>
    %7 = vector.broadcast %6 : vector<1x32xf32> to vector<4x32xf32>
    %8 = arith.addf %4, %7 : vector<4x32xf32>
    %cst_8 = arith.constant dense<0.000000e+00> : vector<32xf32>
    %9 = vector.multi_reduction <add>, %8, %cst_8 [0] : vector<4x32xf32> to vector<32xf32>
    %10 = vector.shape_cast %9 : vector<32xf32> to vector<1x32xf32>
    %cst_9 = arith.constant 4.000000e+00 : f32
    %11 = vector.broadcast %cst_9 : f32 to vector<1x32xf32>
    %12 = arith.divf %10, %11 : vector<1x32xf32>
    %13 = vector.broadcast %12 : vector<1x32xf32> to vector<4x32xf32>
    %14 = arith.subf %8, %13 : vector<4x32xf32>
    %15 = arith.mulf %14, %14 : vector<4x32xf32>
    %cst_10 = arith.constant dense<0.000000e+00> : vector<32xf32>
    %16 = vector.multi_reduction <add>, %15, %cst_10 [0] : vector<4x32xf32> to vector<32xf32>
    %17 = vector.shape_cast %16 : vector<32xf32> to vector<1x32xf32>
    %cst_11 = arith.constant 4.000000e+00 : f32
    %18 = vector.broadcast %cst_11 : f32 to vector<1x32xf32>
    %19 = arith.divf %17, %18 : vector<1x32xf32>
    %cst_12 = arith.constant 9.99999974E-6 : f32
    %20 = vector.broadcast %cst_12 : f32 to vector<1x32xf32>
    %21 = arith.addf %19, %20 : vector<1x32xf32>
    %22 = math.rsqrt %21 : vector<1x32xf32>
    %23 = vector.broadcast %22 : vector<1x32xf32> to vector<4x32xf32>
    %24 = arith.mulf %14, %23 : vector<4x32xf32>
    %c0_13 = arith.constant 0 : index
    %c1 = arith.constant 1 : index
    %c0_14 = arith.constant 0 : index
    %25 = vector.load %arg3[%c0_13, %c1, %c0_14] : memref<1x3x32xf32, #tpu.memory_space<vmem>>, vector<1x1x32xf32>
    %26 = vector.shape_cast %25 : vector<1x1x32xf32> to vector<1x32xf32>
    %27 = vector.broadcast %26 : vector<1x32xf32> to vector<4x32xf32>
    %28 = arith.mulf %24, %27 : vector<4x32xf32>
    %c0_15 = arith.constant 0 : index
    %c2 = arith.constant 2 : index
    %c0_16 = arith.constant 0 : index
    %29 = vector.load %arg3[%c0_15, %c2, %c0_16] : memref<1x3x32xf32, #tpu.memory_space<vmem>>, vector<1x1x32xf32>
    %30 = vector.shape_cast %29 : vector<1x1x32xf32> to vector<1x32xf32>
    %31 = vector.broadcast %30 : vector<1x32xf32> to vector<4x32xf32>
    %32 = arith.addf %28, %31 : vector<4x32xf32>
    %cst_17 = arith.constant 0.000000e+00 : f32
    %33 = vector.broadcast %cst_17 : f32 to vector<4x32xf32>
    %34 = arith.maximumf %32, %33 : vector<4x32xf32>
    %c0_18 = arith.constant 0 : index
    %c0_19 = arith.constant 0 : index
    %c0_20 = arith.constant 0 : index
    %35 = vector.load %arg4[%c0_18, %c0_19, %c0_20] : memref<1x4x32xf32, #tpu.memory_space<vmem>>, vector<1x4x32xf32>
    %36 = vector.shape_cast %35 : vector<1x4x32xf32> to vector<4x32xf32>
    %37 = vector.shape_cast %34 : vector<4x32xf32> to vector<1x4x32xf32>
    tpu.vector_store %arg4[%c0_18, %c0_19, %c0_20], %37 {strides = array<i32>} : memref<1x4x32xf32, #tpu.memory_space<vmem>>, vector<1x4x32xf32>,
    return
  }
  func.func @transform_0(%arg0: i32) -> (i32, i32, i32) {
    %c0_i32 = arith.constant 0 : i32
    %c0_i32_0 = arith.constant 0 : i32
    %c0_i32_1 = arith.constant 0 : i32
    return %arg0, %c0_i32, %c0_i32_0 : i32, i32, i32
  }
  func.func @transform_1(%arg0: i32) -> (i32, i32, i32) {
    %c0_i32 = arith.constant 0 : i32
    %c0_i32_0 = arith.constant 0 : i32
    %c0_i32_1 = arith.constant 0 : i32
    return %arg0, %c0_i32, %c0_i32_0 : i32, i32, i32
  }
  func.func @transform_2(%arg0: i32) -> (i32, i32, i32) {
    %c0_i32 = arith.constant 0 : i32
    %c0_i32_0 = arith.constant 0 : i32
    %c0_i32_1 = arith.constant 0 : i32
    return %arg0, %c0_i32, %c0_i32_0 : i32, i32, i32
  }
  func.func @transform_3(%arg0: i32) -> (i32, i32, i32) {
    %c0_i32 = arith.constant 0 : i32
    %c0_i32_0 = arith.constant 0 : i32
    %c0_i32_1 = arith.constant 0 : i32
    return %arg0, %c0_i32, %c0_i32_0 : i32, i32, i32
  }
}

module attributes {stable_mosaic.version = 11 : i64} {
  func.func @_fused_layer_kernel(%arg0: i32, %arg1: i32, %arg2: memref<1x1x2x128xf32, #tpu.memory_space<vmem>>, %arg3: memref<1x128x128xf32, #tpu.memory_space<vmem>>, %arg4: memref<1x3x128xf32, #tpu.memory_space<vmem>>, %arg5: memref<1x1x2x128xf32, #tpu.memory_space<vmem>>) attributes {dimension_semantics = [#tpu.dimension_semantics<parallel>, #tpu.dimension_semantics<parallel>], iteration_bounds = array<i64: 4, 2>, scalar_prefetch = 0 : i64, scratch_operands = 0 : i64, tpu.core_type = #tpu.core_type<tc>, window_params = [{transform_indices = @transform_0, window_bounds = array<i64: 1, 1, 2, 128>}, {transform_indices = @transform_1, window_bounds = array<i64: 1, 128, 128>}, {transform_indices = @transform_2, window_bounds = array<i64: 1, 3, 128>}, {transform_indices = @transform_3, window_bounds = array<i64: 1, 1, 2, 128>}]} {
    %c0 = arith.constant 0 : index
    %c0_0 = arith.constant 0 : index
    %c0_1 = arith.constant 0 : index
    %c0_2 = arith.constant 0 : index
    %0 = vector.load %arg2[%c0, %c0_0, %c0_1, %c0_2] : memref<1x1x2x128xf32, #tpu.memory_space<vmem>>, vector<1x1x2x128xf32>
    %1 = vector.shape_cast %0 : vector<1x1x2x128xf32> to vector<2x128xf32>
    %c0_3 = arith.constant 0 : index
    %c0_4 = arith.constant 0 : index
    %c0_5 = arith.constant 0 : index
    %2 = vector.load %arg3[%c0_3, %c0_4, %c0_5] : memref<1x128x128xf32, #tpu.memory_space<vmem>>, vector<1x128x128xf32>
    %3 = vector.shape_cast %2 : vector<1x128x128xf32> to vector<128x128xf32>
    %cst = arith.constant dense<0.000000e+00> : vector<2x128xf32>
    %4 = tpu.matmul %1, %3, %cst {dimension_numbers = #tpu.dot_dimension_numbers<[1], [0], [0], [1], [0, 0, 1, 1], [], []>} : vector<2x128xf32>, vector<128x128xf32>, vector<2x128xf32> -> vector<2x128xf32>
    %c0_6 = arith.constant 0 : index
    %c0_7 = arith.constant 0 : index
    %c0_8 = arith.constant 0 : index
    %5 = vector.load %arg4[%c0_6, %c0_7, %c0_8] : memref<1x3x128xf32, #tpu.memory_space<vmem>>, vector<1x1x128xf32>
    %6 = vector.shape_cast %5 : vector<1x1x128xf32> to vector<1x128xf32>
    %7 = vector.broadcast %6 : vector<1x128xf32> to vector<2x128xf32>
    %8 = arith.addf %4, %7 : vector<2x128xf32>
    %cst_9 = arith.constant dense<0.000000e+00> : vector<128xf32>
    %9 = vector.multi_reduction <add>, %8, %cst_9 [0] : vector<2x128xf32> to vector<128xf32>
    %10 = vector.shape_cast %9 : vector<128xf32> to vector<1x128xf32>
    %cst_10 = arith.constant 2.000000e+00 : f32
    %11 = vector.broadcast %cst_10 : f32 to vector<1x128xf32>
    %12 = arith.divf %10, %11 : vector<1x128xf32>
    %13 = vector.broadcast %12 : vector<1x128xf32> to vector<2x128xf32>
    %14 = arith.subf %8, %13 : vector<2x128xf32>
    %15 = arith.mulf %14, %14 : vector<2x128xf32>
    %cst_11 = arith.constant dense<0.000000e+00> : vector<128xf32>
    %16 = vector.multi_reduction <add>, %15, %cst_11 [0] : vector<2x128xf32> to vector<128xf32>
    %17 = vector.shape_cast %16 : vector<128xf32> to vector<1x128xf32>
    %cst_12 = arith.constant 2.000000e+00 : f32
    %18 = vector.broadcast %cst_12 : f32 to vector<1x128xf32>
    %19 = arith.divf %17, %18 : vector<1x128xf32>
    %cst_13 = arith.constant 9.99999974E-6 : f32
    %20 = vector.broadcast %cst_13 : f32 to vector<1x128xf32>
    %21 = arith.addf %19, %20 : vector<1x128xf32>
    %22 = math.rsqrt %21 : vector<1x128xf32>
    %23 = vector.broadcast %22 : vector<1x128xf32> to vector<2x128xf32>
    %24 = arith.mulf %14, %23 : vector<2x128xf32>
    %c0_14 = arith.constant 0 : index
    %c1 = arith.constant 1 : index
    %c0_15 = arith.constant 0 : index
    %25 = vector.load %arg4[%c0_14, %c1, %c0_15] : memref<1x3x128xf32, #tpu.memory_space<vmem>>, vector<1x1x128xf32>
    %26 = vector.shape_cast %25 : vector<1x1x128xf32> to vector<1x128xf32>
    %27 = vector.broadcast %26 : vector<1x128xf32> to vector<2x128xf32>
    %28 = arith.mulf %24, %27 : vector<2x128xf32>
    %c0_16 = arith.constant 0 : index
    %c2 = arith.constant 2 : index
    %c0_17 = arith.constant 0 : index
    %29 = vector.load %arg4[%c0_16, %c2, %c0_17] : memref<1x3x128xf32, #tpu.memory_space<vmem>>, vector<1x1x128xf32>
    %30 = vector.shape_cast %29 : vector<1x1x128xf32> to vector<1x128xf32>
    %31 = vector.broadcast %30 : vector<1x128xf32> to vector<2x128xf32>
    %32 = arith.addf %28, %31 : vector<2x128xf32>
    %cst_18 = arith.constant 0.000000e+00 : f32
    %33 = vector.broadcast %cst_18 : f32 to vector<2x128xf32>
    %34 = arith.maximumf %32, %33 : vector<2x128xf32>
    %c0_19 = arith.constant 0 : index
    %c0_20 = arith.constant 0 : index
    %c0_21 = arith.constant 0 : index
    %c0_22 = arith.constant 0 : index
    %35 = vector.load %arg5[%c0_19, %c0_20, %c0_21, %c0_22] : memref<1x1x2x128xf32, #tpu.memory_space<vmem>>, vector<1x1x2x128xf32>
    %36 = vector.shape_cast %35 : vector<1x1x2x128xf32> to vector<2x128xf32>
    %37 = vector.shape_cast %34 : vector<2x128xf32> to vector<1x1x2x128xf32>
    tpu.vector_store %arg5[%c0_19, %c0_20, %c0_21, %c0_22], %37 {strides = array<i32>} : memref<1x1x2x128xf32, #tpu.memory_space<vmem>>, vector<1x1x2x128xf32>,
    return
  }
  func.func @transform_0(%arg0: i32, %arg1: i32) -> (i32, i32, i32, i32) {
    %c0_i32 = arith.constant 0 : i32
    %c0_i32_0 = arith.constant 0 : i32
    %c0_i32_1 = arith.constant 0 : i32
    return %arg0, %arg1, %c0_i32, %c0_i32_0 : i32, i32, i32, i32
  }
  func.func @transform_1(%arg0: i32, %arg1: i32) -> (i32, i32, i32) {
    %c0_i32 = arith.constant 0 : i32
    %c0_i32_0 = arith.constant 0 : i32
    %c0_i32_1 = arith.constant 0 : i32
    return %arg0, %c0_i32, %c0_i32_0 : i32, i32, i32
  }
  func.func @transform_2(%arg0: i32, %arg1: i32) -> (i32, i32, i32) {
    %c0_i32 = arith.constant 0 : i32
    %c0_i32_0 = arith.constant 0 : i32
    %c0_i32_1 = arith.constant 0 : i32
    return %arg0, %c0_i32, %c0_i32_0 : i32, i32, i32
  }
  func.func @transform_3(%arg0: i32, %arg1: i32) -> (i32, i32, i32, i32) {
    %c0_i32 = arith.constant 0 : i32
    %c0_i32_0 = arith.constant 0 : i32
    %c0_i32_1 = arith.constant 0 : i32
    return %arg0, %arg1, %c0_i32, %c0_i32_0 : i32, i32, i32, i32
  }
}

module attributes {stable_mosaic.version = 11 : i64} {
  func.func @_fused_layer_kernel(%arg0: i32, %arg1: i32, %arg2: memref<1x1x4x64xf32, #tpu.memory_space<vmem>>, %arg3: memref<1x64x128xf32, #tpu.memory_space<vmem>>, %arg4: memref<1x3x128xf32, #tpu.memory_space<vmem>>, %arg5: memref<1x1x4x128xf32, #tpu.memory_space<vmem>>) attributes {dimension_semantics = [#tpu.dimension_semantics<parallel>, #tpu.dimension_semantics<parallel>], iteration_bounds = array<i64: 4, 2>, scalar_prefetch = 0 : i64, scratch_operands = 0 : i64, tpu.core_type = #tpu.core_type<tc>, window_params = [{transform_indices = @transform_0, window_bounds = array<i64: 1, 1, 4, 64>}, {transform_indices = @transform_1, window_bounds = array<i64: 1, 64, 128>}, {transform_indices = @transform_2, window_bounds = array<i64: 1, 3, 128>}, {transform_indices = @transform_3, window_bounds = array<i64: 1, 1, 4, 128>}]} {
    %c0 = arith.constant 0 : index
    %c0_0 = arith.constant 0 : index
    %c0_1 = arith.constant 0 : index
    %c0_2 = arith.constant 0 : index
    %0 = vector.load %arg2[%c0, %c0_0, %c0_1, %c0_2] : memref<1x1x4x64xf32, #tpu.memory_space<vmem>>, vector<1x1x4x64xf32>
    %1 = vector.shape_cast %0 : vector<1x1x4x64xf32> to vector<4x64xf32>
    %c0_3 = arith.constant 0 : index
    %c0_4 = arith.constant 0 : index
    %c0_5 = arith.constant 0 : index
    %2 = vector.load %arg3[%c0_3, %c0_4, %c0_5] : memref<1x64x128xf32, #tpu.memory_space<vmem>>, vector<1x64x128xf32>
    %3 = vector.shape_cast %2 : vector<1x64x128xf32> to vector<64x128xf32>
    %cst = arith.constant dense<0.000000e+00> : vector<4x128xf32>
    %4 = tpu.matmul %1, %3, %cst {dimension_numbers = #tpu.dot_dimension_numbers<[1], [0], [0], [1], [0, 0, 1, 1], [], []>} : vector<4x64xf32>, vector<64x128xf32>, vector<4x128xf32> -> vector<4x128xf32>
    %c0_6 = arith.constant 0 : index
    %c0_7 = arith.constant 0 : index
    %c0_8 = arith.constant 0 : index
    %5 = vector.load %arg4[%c0_6, %c0_7, %c0_8] : memref<1x3x128xf32, #tpu.memory_space<vmem>>, vector<1x1x128xf32>
    %6 = vector.shape_cast %5 : vector<1x1x128xf32> to vector<1x128xf32>
    %7 = vector.broadcast %6 : vector<1x128xf32> to vector<4x128xf32>
    %8 = arith.addf %4, %7 : vector<4x128xf32>
    %cst_9 = arith.constant dense<0.000000e+00> : vector<128xf32>
    %9 = vector.multi_reduction <add>, %8, %cst_9 [0] : vector<4x128xf32> to vector<128xf32>
    %10 = vector.shape_cast %9 : vector<128xf32> to vector<1x128xf32>
    %11 = vector.extract_strided_slice %10 {offsets = [0, 0], sizes = [1, 64], strides = [1, 1]} : vector<1x128xf32> to vector<1x64xf32>
    %12 = vector.extract_strided_slice %10 {offsets = [0, 64], sizes = [1, 64], strides = [1, 1]} : vector<1x128xf32> to vector<1x64xf32>
    %13 = arith.addf %11, %12 : vector<1x64xf32>
    %cst_10 = arith.constant 8.000000e+00 : f32
    %14 = vector.broadcast %cst_10 : f32 to vector<1x64xf32>
    %15 = arith.divf %13, %14 : vector<1x64xf32>
    %16 = tpu.concatenate %15, %15 in 1 : vector<1x64xf32>, vector<1x64xf32> -> vector<1x128xf32>
    %17 = vector.broadcast %16 : vector<1x128xf32> to vector<4x128xf32>
    %18 = arith.subf %8, %17 : vector<4x128xf32>
    %19 = arith.mulf %18, %18 : vector<4x128xf32>
    %cst_11 = arith.constant dense<0.000000e+00> : vector<128xf32>
    %20 = vector.multi_reduction <add>, %19, %cst_11 [0] : vector<4x128xf32> to vector<128xf32>
    %21 = vector.shape_cast %20 : vector<128xf32> to vector<1x128xf32>
    %22 = vector.extract_strided_slice %21 {offsets = [0, 0], sizes = [1, 64], strides = [1, 1]} : vector<1x128xf32> to vector<1x64xf32>
    %23 = vector.extract_strided_slice %21 {offsets = [0, 64], sizes = [1, 64], strides = [1, 1]} : vector<1x128xf32> to vector<1x64xf32>
    %24 = arith.addf %22, %23 : vector<1x64xf32>
    %cst_12 = arith.constant 8.000000e+00 : f32
    %25 = vector.broadcast %cst_12 : f32 to vector<1x64xf32>
    %26 = arith.divf %24, %25 : vector<1x64xf32>
    %cst_13 = arith.constant 9.99999974E-6 : f32
    %27 = vector.broadcast %cst_13 : f32 to vector<1x64xf32>
    %28 = arith.addf %26, %27 : vector<1x64xf32>
    %29 = math.rsqrt %28 : vector<1x64xf32>
    %30 = tpu.concatenate %29, %29 in 1 : vector<1x64xf32>, vector<1x64xf32> -> vector<1x128xf32>
    %31 = vector.broadcast %30 : vector<1x128xf32> to vector<4x128xf32>
    %32 = arith.mulf %18, %31 : vector<4x128xf32>
    %c0_14 = arith.constant 0 : index
    %c1 = arith.constant 1 : index
    %c0_15 = arith.constant 0 : index
    %33 = vector.load %arg4[%c0_14, %c1, %c0_15] : memref<1x3x128xf32, #tpu.memory_space<vmem>>, vector<1x1x128xf32>
    %34 = vector.shape_cast %33 : vector<1x1x128xf32> to vector<1x128xf32>
    %35 = vector.broadcast %34 : vector<1x128xf32> to vector<4x128xf32>
    %36 = arith.mulf %32, %35 : vector<4x128xf32>
    %c0_16 = arith.constant 0 : index
    %c2 = arith.constant 2 : index
    %c0_17 = arith.constant 0 : index
    %37 = vector.load %arg4[%c0_16, %c2, %c0_17] : memref<1x3x128xf32, #tpu.memory_space<vmem>>, vector<1x1x128xf32>
    %38 = vector.shape_cast %37 : vector<1x1x128xf32> to vector<1x128xf32>
    %39 = vector.broadcast %38 : vector<1x128xf32> to vector<4x128xf32>
    %40 = arith.addf %36, %39 : vector<4x128xf32>
    %cst_18 = arith.constant 0.000000e+00 : f32
    %41 = vector.broadcast %cst_18 : f32 to vector<4x128xf32>
    %42 = arith.maximumf %40, %41 : vector<4x128xf32>
    %c0_19 = arith.constant 0 : index
    %c0_20 = arith.constant 0 : index
    %c0_21 = arith.constant 0 : index
    %c0_22 = arith.constant 0 : index
    %43 = vector.load %arg5[%c0_19, %c0_20, %c0_21, %c0_22] : memref<1x1x4x128xf32, #tpu.memory_space<vmem>>, vector<1x1x4x128xf32>
    %44 = vector.shape_cast %43 : vector<1x1x4x128xf32> to vector<4x128xf32>
    %45 = vector.shape_cast %42 : vector<4x128xf32> to vector<1x1x4x128xf32>
    tpu.vector_store %arg5[%c0_19, %c0_20, %c0_21, %c0_22], %45 {strides = array<i32>} : memref<1x1x4x128xf32, #tpu.memory_space<vmem>>, vector<1x1x4x128xf32>,
    return
  }
  func.func @transform_0(%arg0: i32, %arg1: i32) -> (i32, i32, i32, i32) {
    %c0_i32 = arith.constant 0 : i32
    %c0_i32_0 = arith.constant 0 : i32
    %c0_i32_1 = arith.constant 0 : i32
    return %arg0, %arg1, %c0_i32, %c0_i32_0 : i32, i32, i32, i32
  }
  func.func @transform_1(%arg0: i32, %arg1: i32) -> (i32, i32, i32) {
    %c0_i32 = arith.constant 0 : i32
    %c0_i32_0 = arith.constant 0 : i32
    %c0_i32_1 = arith.constant 0 : i32
    return %arg0, %c0_i32, %c0_i32_0 : i32, i32, i32
  }
  func.func @transform_2(%arg0: i32, %arg1: i32) -> (i32, i32, i32) {
    %c0_i32 = arith.constant 0 : i32
    %c0_i32_0 = arith.constant 0 : i32
    %c0_i32_1 = arith.constant 0 : i32
    return %arg0, %c0_i32, %c0_i32_0 : i32, i32, i32
  }
  func.func @transform_3(%arg0: i32, %arg1: i32) -> (i32, i32, i32, i32) {
    %c0_i32 = arith.constant 0 : i32
    %c0_i32_0 = arith.constant 0 : i32
    %c0_i32_1 = arith.constant 0 : i32
    return %arg0, %arg1, %c0_i32, %c0_i32_0 : i32, i32, i32, i32
  }
}

module attributes {stable_mosaic.version = 11 : i64} {
  func.func @_fused_layer_kernel(%arg0: i32, %arg1: i32, %arg2: memref<1x1x8x64xf32, #tpu.memory_space<vmem>>, %arg3: memref<1x64x64xf32, #tpu.memory_space<vmem>>, %arg4: memref<1x3x64xf32, #tpu.memory_space<vmem>>, %arg5: memref<1x1x8x64xf32, #tpu.memory_space<vmem>>) attributes {dimension_semantics = [#tpu.dimension_semantics<parallel>, #tpu.dimension_semantics<parallel>], iteration_bounds = array<i64: 4, 2>, scalar_prefetch = 0 : i64, scratch_operands = 0 : i64, tpu.core_type = #tpu.core_type<tc>, window_params = [{transform_indices = @transform_0, window_bounds = array<i64: 1, 1, 8, 64>}, {transform_indices = @transform_1, window_bounds = array<i64: 1, 64, 64>}, {transform_indices = @transform_2, window_bounds = array<i64: 1, 3, 64>}, {transform_indices = @transform_3, window_bounds = array<i64: 1, 1, 8, 64>}]} {
    %c0 = arith.constant 0 : index
    %c0_0 = arith.constant 0 : index
    %c0_1 = arith.constant 0 : index
    %c0_2 = arith.constant 0 : index
    %0 = vector.load %arg2[%c0, %c0_0, %c0_1, %c0_2] : memref<1x1x8x64xf32, #tpu.memory_space<vmem>>, vector<1x1x8x64xf32>
    %1 = vector.shape_cast %0 : vector<1x1x8x64xf32> to vector<8x64xf32>
    %c0_3 = arith.constant 0 : index
    %c0_4 = arith.constant 0 : index
    %c0_5 = arith.constant 0 : index
    %2 = vector.load %arg3[%c0_3, %c0_4, %c0_5] : memref<1x64x64xf32, #tpu.memory_space<vmem>>, vector<1x64x64xf32>
    %3 = vector.shape_cast %2 : vector<1x64x64xf32> to vector<64x64xf32>
    %cst = arith.constant dense<0.000000e+00> : vector<8x64xf32>
    %4 = tpu.matmul %1, %3, %cst {dimension_numbers = #tpu.dot_dimension_numbers<[1], [0], [0], [1], [0, 0, 1, 1], [], []>} : vector<8x64xf32>, vector<64x64xf32>, vector<8x64xf32> -> vector<8x64xf32>
    %c0_6 = arith.constant 0 : index
    %c0_7 = arith.constant 0 : index
    %c0_8 = arith.constant 0 : index
    %5 = vector.load %arg4[%c0_6, %c0_7, %c0_8] : memref<1x3x64xf32, #tpu.memory_space<vmem>>, vector<1x1x64xf32>
    %6 = vector.shape_cast %5 : vector<1x1x64xf32> to vector<1x64xf32>
    %7 = vector.broadcast %6 : vector<1x64xf32> to vector<8x64xf32>
    %8 = arith.addf %4, %7 : vector<8x64xf32>
    %cst_9 = arith.constant dense<0.000000e+00> : vector<64xf32>
    %9 = vector.multi_reduction <add>, %8, %cst_9 [0] : vector<8x64xf32> to vector<64xf32>
    %10 = vector.shape_cast %9 : vector<64xf32> to vector<1x64xf32>
    %11 = vector.extract_strided_slice %10 {offsets = [0, 0], sizes = [1, 32], strides = [1, 1]} : vector<1x64xf32> to vector<1x32xf32>
    %12 = vector.extract_strided_slice %10 {offsets = [0, 32], sizes = [1, 32], strides = [1, 1]} : vector<1x64xf32> to vector<1x32xf32>
    %13 = arith.addf %11, %12 : vector<1x32xf32>
    %cst_10 = arith.constant 1.600000e+01 : f32
    %14 = vector.broadcast %cst_10 : f32 to vector<1x32xf32>
    %15 = arith.divf %13, %14 : vector<1x32xf32>
    %16 = tpu.concatenate %15, %15 in 1 : vector<1x32xf32>, vector<1x32xf32> -> vector<1x64xf32>
    %17 = vector.broadcast %16 : vector<1x64xf32> to vector<8x64xf32>
    %18 = arith.subf %8, %17 : vector<8x64xf32>
    %19 = arith.mulf %18, %18 : vector<8x64xf32>
    %cst_11 = arith.constant dense<0.000000e+00> : vector<64xf32>
    %20 = vector.multi_reduction <add>, %19, %cst_11 [0] : vector<8x64xf32> to vector<64xf32>
    %21 = vector.shape_cast %20 : vector<64xf32> to vector<1x64xf32>
    %22 = vector.extract_strided_slice %21 {offsets = [0, 0], sizes = [1, 32], strides = [1, 1]} : vector<1x64xf32> to vector<1x32xf32>
    %23 = vector.extract_strided_slice %21 {offsets = [0, 32], sizes = [1, 32], strides = [1, 1]} : vector<1x64xf32> to vector<1x32xf32>
    %24 = arith.addf %22, %23 : vector<1x32xf32>
    %cst_12 = arith.constant 1.600000e+01 : f32
    %25 = vector.broadcast %cst_12 : f32 to vector<1x32xf32>
    %26 = arith.divf %24, %25 : vector<1x32xf32>
    %cst_13 = arith.constant 9.99999974E-6 : f32
    %27 = vector.broadcast %cst_13 : f32 to vector<1x32xf32>
    %28 = arith.addf %26, %27 : vector<1x32xf32>
    %29 = math.rsqrt %28 : vector<1x32xf32>
    %30 = tpu.concatenate %29, %29 in 1 : vector<1x32xf32>, vector<1x32xf32> -> vector<1x64xf32>
    %31 = vector.broadcast %30 : vector<1x64xf32> to vector<8x64xf32>
    %32 = arith.mulf %18, %31 : vector<8x64xf32>
    %c0_14 = arith.constant 0 : index
    %c1 = arith.constant 1 : index
    %c0_15 = arith.constant 0 : index
    %33 = vector.load %arg4[%c0_14, %c1, %c0_15] : memref<1x3x64xf32, #tpu.memory_space<vmem>>, vector<1x1x64xf32>
    %34 = vector.shape_cast %33 : vector<1x1x64xf32> to vector<1x64xf32>
    %35 = vector.broadcast %34 : vector<1x64xf32> to vector<8x64xf32>
    %36 = arith.mulf %32, %35 : vector<8x64xf32>
    %c0_16 = arith.constant 0 : index
    %c2 = arith.constant 2 : index
    %c0_17 = arith.constant 0 : index
    %37 = vector.load %arg4[%c0_16, %c2, %c0_17] : memref<1x3x64xf32, #tpu.memory_space<vmem>>, vector<1x1x64xf32>
    %38 = vector.shape_cast %37 : vector<1x1x64xf32> to vector<1x64xf32>
    %39 = vector.broadcast %38 : vector<1x64xf32> to vector<8x64xf32>
    %40 = arith.addf %36, %39 : vector<8x64xf32>
    %cst_18 = arith.constant 0.000000e+00 : f32
    %41 = vector.broadcast %cst_18 : f32 to vector<8x64xf32>
    %42 = arith.maximumf %40, %41 : vector<8x64xf32>
    %c0_19 = arith.constant 0 : index
    %c0_20 = arith.constant 0 : index
    %c0_21 = arith.constant 0 : index
    %c0_22 = arith.constant 0 : index
    %43 = vector.load %arg5[%c0_19, %c0_20, %c0_21, %c0_22] : memref<1x1x8x64xf32, #tpu.memory_space<vmem>>, vector<1x1x8x64xf32>
    %44 = vector.shape_cast %43 : vector<1x1x8x64xf32> to vector<8x64xf32>
    %45 = vector.shape_cast %42 : vector<8x64xf32> to vector<1x1x8x64xf32>
    tpu.vector_store %arg5[%c0_19, %c0_20, %c0_21, %c0_22], %45 {strides = array<i32>} : memref<1x1x8x64xf32, #tpu.memory_space<vmem>>, vector<1x1x8x64xf32>,
    return
  }
  func.func @transform_0(%arg0: i32, %arg1: i32) -> (i32, i32, i32, i32) {
    %c0_i32 = arith.constant 0 : i32
    %c0_i32_0 = arith.constant 0 : i32
    %c0_i32_1 = arith.constant 0 : i32
    return %arg0, %arg1, %c0_i32, %c0_i32_0 : i32, i32, i32, i32
  }
  func.func @transform_1(%arg0: i32, %arg1: i32) -> (i32, i32, i32) {
    %c0_i32 = arith.constant 0 : i32
    %c0_i32_0 = arith.constant 0 : i32
    %c0_i32_1 = arith.constant 0 : i32
    return %arg0, %c0_i32, %c0_i32_0 : i32, i32, i32
  }
  func.func @transform_2(%arg0: i32, %arg1: i32) -> (i32, i32, i32) {
    %c0_i32 = arith.constant 0 : i32
    %c0_i32_0 = arith.constant 0 : i32
    %c0_i32_1 = arith.constant 0 : i32
    return %arg0, %c0_i32, %c0_i32_0 : i32, i32, i32
  }
  func.func @transform_3(%arg0: i32, %arg1: i32) -> (i32, i32, i32, i32) {
    %c0_i32 = arith.constant 0 : i32
    %c0_i32_0 = arith.constant 0 : i32
    %c0_i32_1 = arith.constant 0 : i32
    return %arg0, %arg1, %c0_i32, %c0_i32_0 : i32, i32, i32, i32
  }
}

module attributes {stable_mosaic.version = 11 : i64} {
  func.func @_fused_layer_kernel(%arg0: i32, %arg1: i32, %arg2: memref<1x1x16x32xf32, #tpu.memory_space<vmem>>, %arg3: memref<1x32x64xf32, #tpu.memory_space<vmem>>, %arg4: memref<1x3x64xf32, #tpu.memory_space<vmem>>, %arg5: memref<1x1x16x64xf32, #tpu.memory_space<vmem>>) attributes {dimension_semantics = [#tpu.dimension_semantics<parallel>, #tpu.dimension_semantics<parallel>], iteration_bounds = array<i64: 4, 2>, scalar_prefetch = 0 : i64, scratch_operands = 0 : i64, tpu.core_type = #tpu.core_type<tc>, window_params = [{transform_indices = @transform_0, window_bounds = array<i64: 1, 1, 16, 32>}, {transform_indices = @transform_1, window_bounds = array<i64: 1, 32, 64>}, {transform_indices = @transform_2, window_bounds = array<i64: 1, 3, 64>}, {transform_indices = @transform_3, window_bounds = array<i64: 1, 1, 16, 64>}]} {
    %c0 = arith.constant 0 : index
    %c0_0 = arith.constant 0 : index
    %c0_1 = arith.constant 0 : index
    %c0_2 = arith.constant 0 : index
    %0 = vector.load %arg2[%c0, %c0_0, %c0_1, %c0_2] : memref<1x1x16x32xf32, #tpu.memory_space<vmem>>, vector<1x1x16x32xf32>
    %1 = vector.shape_cast %0 : vector<1x1x16x32xf32> to vector<16x32xf32>
    %c0_3 = arith.constant 0 : index
    %c0_4 = arith.constant 0 : index
    %c0_5 = arith.constant 0 : index
    %2 = vector.load %arg3[%c0_3, %c0_4, %c0_5] : memref<1x32x64xf32, #tpu.memory_space<vmem>>, vector<1x32x64xf32>
    %3 = vector.shape_cast %2 : vector<1x32x64xf32> to vector<32x64xf32>
    %cst = arith.constant dense<0.000000e+00> : vector<16x64xf32>
    %4 = tpu.matmul %1, %3, %cst {dimension_numbers = #tpu.dot_dimension_numbers<[1], [0], [0], [1], [0, 0, 1, 1], [], []>} : vector<16x32xf32>, vector<32x64xf32>, vector<16x64xf32> -> vector<16x64xf32>
    %c0_6 = arith.constant 0 : index
    %c0_7 = arith.constant 0 : index
    %c0_8 = arith.constant 0 : index
    %5 = vector.load %arg4[%c0_6, %c0_7, %c0_8] : memref<1x3x64xf32, #tpu.memory_space<vmem>>, vector<1x1x64xf32>
    %6 = vector.shape_cast %5 : vector<1x1x64xf32> to vector<1x64xf32>
    %7 = vector.broadcast %6 : vector<1x64xf32> to vector<16x64xf32>
    %8 = arith.addf %4, %7 : vector<16x64xf32>
    %cst_9 = arith.constant dense<0.000000e+00> : vector<64xf32>
    %9 = vector.multi_reduction <add>, %8, %cst_9 [0] : vector<16x64xf32> to vector<64xf32>
    %10 = vector.shape_cast %9 : vector<64xf32> to vector<1x64xf32>
    %11 = vector.extract_strided_slice %10 {offsets = [0, 0], sizes = [1, 32], strides = [1, 1]} : vector<1x64xf32> to vector<1x32xf32>
    %12 = vector.extract_strided_slice %10 {offsets = [0, 32], sizes = [1, 32], strides = [1, 1]} : vector<1x64xf32> to vector<1x32xf32>
    %13 = arith.addf %11, %12 : vector<1x32xf32>
    %cst_10 = arith.constant 3.200000e+01 : f32
    %14 = vector.broadcast %cst_10 : f32 to vector<1x32xf32>
    %15 = arith.divf %13, %14 : vector<1x32xf32>
    %16 = tpu.concatenate %15, %15 in 1 : vector<1x32xf32>, vector<1x32xf32> -> vector<1x64xf32>
    %17 = vector.broadcast %16 : vector<1x64xf32> to vector<16x64xf32>
    %18 = arith.subf %8, %17 : vector<16x64xf32>
    %19 = arith.mulf %18, %18 : vector<16x64xf32>
    %cst_11 = arith.constant dense<0.000000e+00> : vector<64xf32>
    %20 = vector.multi_reduction <add>, %19, %cst_11 [0] : vector<16x64xf32> to vector<64xf32>
    %21 = vector.shape_cast %20 : vector<64xf32> to vector<1x64xf32>
    %22 = vector.extract_strided_slice %21 {offsets = [0, 0], sizes = [1, 32], strides = [1, 1]} : vector<1x64xf32> to vector<1x32xf32>
    %23 = vector.extract_strided_slice %21 {offsets = [0, 32], sizes = [1, 32], strides = [1, 1]} : vector<1x64xf32> to vector<1x32xf32>
    %24 = arith.addf %22, %23 : vector<1x32xf32>
    %cst_12 = arith.constant 3.200000e+01 : f32
    %25 = vector.broadcast %cst_12 : f32 to vector<1x32xf32>
    %26 = arith.divf %24, %25 : vector<1x32xf32>
    %cst_13 = arith.constant 9.99999974E-6 : f32
    %27 = vector.broadcast %cst_13 : f32 to vector<1x32xf32>
    %28 = arith.addf %26, %27 : vector<1x32xf32>
    %29 = math.rsqrt %28 : vector<1x32xf32>
    %30 = tpu.concatenate %29, %29 in 1 : vector<1x32xf32>, vector<1x32xf32> -> vector<1x64xf32>
    %31 = vector.broadcast %30 : vector<1x64xf32> to vector<16x64xf32>
    %32 = arith.mulf %18, %31 : vector<16x64xf32>
    %c0_14 = arith.constant 0 : index
    %c1 = arith.constant 1 : index
    %c0_15 = arith.constant 0 : index
    %33 = vector.load %arg4[%c0_14, %c1, %c0_15] : memref<1x3x64xf32, #tpu.memory_space<vmem>>, vector<1x1x64xf32>
    %34 = vector.shape_cast %33 : vector<1x1x64xf32> to vector<1x64xf32>
    %35 = vector.broadcast %34 : vector<1x64xf32> to vector<16x64xf32>
    %36 = arith.mulf %32, %35 : vector<16x64xf32>
    %c0_16 = arith.constant 0 : index
    %c2 = arith.constant 2 : index
    %c0_17 = arith.constant 0 : index
    %37 = vector.load %arg4[%c0_16, %c2, %c0_17] : memref<1x3x64xf32, #tpu.memory_space<vmem>>, vector<1x1x64xf32>
    %38 = vector.shape_cast %37 : vector<1x1x64xf32> to vector<1x64xf32>
    %39 = vector.broadcast %38 : vector<1x64xf32> to vector<16x64xf32>
    %40 = arith.addf %36, %39 : vector<16x64xf32>
    %cst_18 = arith.constant 0.000000e+00 : f32
    %41 = vector.broadcast %cst_18 : f32 to vector<16x64xf32>
    %42 = arith.maximumf %40, %41 : vector<16x64xf32>
    %c0_19 = arith.constant 0 : index
    %c0_20 = arith.constant 0 : index
    %c0_21 = arith.constant 0 : index
    %c0_22 = arith.constant 0 : index
    %43 = vector.load %arg5[%c0_19, %c0_20, %c0_21, %c0_22] : memref<1x1x16x64xf32, #tpu.memory_space<vmem>>, vector<1x1x16x64xf32>
    %44 = vector.shape_cast %43 : vector<1x1x16x64xf32> to vector<16x64xf32>
    %45 = vector.shape_cast %42 : vector<16x64xf32> to vector<1x1x16x64xf32>
    tpu.vector_store %arg5[%c0_19, %c0_20, %c0_21, %c0_22], %45 {strides = array<i32>} : memref<1x1x16x64xf32, #tpu.memory_space<vmem>>, vector<1x1x16x64xf32>,
    return
  }
  func.func @transform_0(%arg0: i32, %arg1: i32) -> (i32, i32, i32, i32) {
    %c0_i32 = arith.constant 0 : i32
    %c0_i32_0 = arith.constant 0 : i32
    %c0_i32_1 = arith.constant 0 : i32
    return %arg0, %arg1, %c0_i32, %c0_i32_0 : i32, i32, i32, i32
  }
  func.func @transform_1(%arg0: i32, %arg1: i32) -> (i32, i32, i32) {
    %c0_i32 = arith.constant 0 : i32
    %c0_i32_0 = arith.constant 0 : i32
    %c0_i32_1 = arith.constant 0 : i32
    return %arg0, %c0_i32, %c0_i32_0 : i32, i32, i32
  }
  func.func @transform_2(%arg0: i32, %arg1: i32) -> (i32, i32, i32) {
    %c0_i32 = arith.constant 0 : i32
    %c0_i32_0 = arith.constant 0 : i32
    %c0_i32_1 = arith.constant 0 : i32
    return %arg0, %c0_i32, %c0_i32_0 : i32, i32, i32
  }
  func.func @transform_3(%arg0: i32, %arg1: i32) -> (i32, i32, i32, i32) {
    %c0_i32 = arith.constant 0 : i32
    %c0_i32_0 = arith.constant 0 : i32
    %c0_i32_1 = arith.constant 0 : i32
    return %arg0, %arg1, %c0_i32, %c0_i32_0 : i32, i32, i32, i32
  }
}

module attributes {stable_mosaic.version = 11 : i64} {
  func.func @_fused_layer_kernel(%arg0: i32, %arg1: i32, %arg2: memref<1x1x32x32xf32, #tpu.memory_space<vmem>>, %arg3: memref<1x32x224xf32, #tpu.memory_space<vmem>>, %arg4: memref<1x3x224xf32, #tpu.memory_space<vmem>>, %arg5: memref<1x1x32x224xf32, #tpu.memory_space<vmem>>) attributes {dimension_semantics = [#tpu.dimension_semantics<parallel>, #tpu.dimension_semantics<parallel>], iteration_bounds = array<i64: 4, 2>, scalar_prefetch = 0 : i64, scratch_operands = 0 : i64, tpu.core_type = #tpu.core_type<tc>, window_params = [{transform_indices = @transform_0, window_bounds = array<i64: 1, 1, 32, 32>}, {transform_indices = @transform_1, window_bounds = array<i64: 1, 32, 224>}, {transform_indices = @transform_2, window_bounds = array<i64: 1, 3, 224>}, {transform_indices = @transform_3, window_bounds = array<i64: 1, 1, 32, 224>}]} {
    %c0 = arith.constant 0 : index
    %c0_0 = arith.constant 0 : index
    %c0_1 = arith.constant 0 : index
    %c0_2 = arith.constant 0 : index
    %0 = vector.load %arg2[%c0, %c0_0, %c0_1, %c0_2] : memref<1x1x32x32xf32, #tpu.memory_space<vmem>>, vector<1x1x32x32xf32>
    %1 = vector.shape_cast %0 : vector<1x1x32x32xf32> to vector<32x32xf32>
    %c0_3 = arith.constant 0 : index
    %c0_4 = arith.constant 0 : index
    %c0_5 = arith.constant 0 : index
    %2 = vector.load %arg3[%c0_3, %c0_4, %c0_5] : memref<1x32x224xf32, #tpu.memory_space<vmem>>, vector<1x32x224xf32>
    %3 = vector.shape_cast %2 : vector<1x32x224xf32> to vector<32x224xf32>
    %cst = arith.constant dense<0.000000e+00> : vector<32x224xf32>
    %4 = tpu.matmul %1, %3, %cst {dimension_numbers = #tpu.dot_dimension_numbers<[1], [0], [0], [1], [0, 0, 1, 1], [], []>} : vector<32x32xf32>, vector<32x224xf32>, vector<32x224xf32> -> vector<32x224xf32>
    %c0_6 = arith.constant 0 : index
    %c0_7 = arith.constant 0 : index
    %c0_8 = arith.constant 0 : index
    %5 = vector.load %arg4[%c0_6, %c0_7, %c0_8] : memref<1x3x224xf32, #tpu.memory_space<vmem>>, vector<1x1x224xf32>
    %6 = vector.shape_cast %5 : vector<1x1x224xf32> to vector<1x224xf32>
    %7 = vector.broadcast %6 : vector<1x224xf32> to vector<32x224xf32>
    %8 = arith.addf %4, %7 : vector<32x224xf32>
    %cst_9 = arith.constant dense<0.000000e+00> : vector<224xf32>
    %9 = vector.multi_reduction <add>, %8, %cst_9 [0] : vector<32x224xf32> to vector<224xf32>
    %10 = vector.shape_cast %9 : vector<224xf32> to vector<1x224xf32>
    %11 = vector.extract_strided_slice %10 {offsets = [0, 0], sizes = [1, 32], strides = [1, 1]} : vector<1x224xf32> to vector<1x32xf32>
    %12 = vector.extract_strided_slice %10 {offsets = [0, 32], sizes = [1, 32], strides = [1, 1]} : vector<1x224xf32> to vector<1x32xf32>
    %13 = arith.addf %11, %12 : vector<1x32xf32>
    %14 = vector.extract_strided_slice %10 {offsets = [0, 64], sizes = [1, 32], strides = [1, 1]} : vector<1x224xf32> to vector<1x32xf32>
    %15 = arith.addf %13, %14 : vector<1x32xf32>
    %16 = vector.extract_strided_slice %10 {offsets = [0, 96], sizes = [1, 32], strides = [1, 1]} : vector<1x224xf32> to vector<1x32xf32>
    %17 = arith.addf %15, %16 : vector<1x32xf32>
    %18 = vector.extract_strided_slice %10 {offsets = [0, 128], sizes = [1, 32], strides = [1, 1]} : vector<1x224xf32> to vector<1x32xf32>
    %19 = arith.addf %17, %18 : vector<1x32xf32>
    %20 = vector.extract_strided_slice %10 {offsets = [0, 160], sizes = [1, 32], strides = [1, 1]} : vector<1x224xf32> to vector<1x32xf32>
    %21 = arith.addf %19, %20 : vector<1x32xf32>
    %22 = vector.extract_strided_slice %10 {offsets = [0, 192], sizes = [1, 32], strides = [1, 1]} : vector<1x224xf32> to vector<1x32xf32>
    %23 = arith.addf %21, %22 : vector<1x32xf32>
    %cst_10 = arith.constant 2.240000e+02 : f32
    %24 = vector.broadcast %cst_10 : f32 to vector<1x32xf32>
    %25 = arith.divf %23, %24 : vector<1x32xf32>
    %26 = tpu.concatenate %25, %25, %25, %25, %25, %25, %25 in 1 : vector<1x32xf32>, vector<1x32xf32>, vector<1x32xf32>, vector<1x32xf32>, vector<1x32xf32>, vector<1x32xf32>, vector<1x32xf32> -> vector<1x224xf32>
    %27 = vector.broadcast %26 : vector<1x224xf32> to vector<32x224xf32>
    %28 = arith.subf %8, %27 : vector<32x224xf32>
    %29 = arith.mulf %28, %28 : vector<32x224xf32>
    %cst_11 = arith.constant dense<0.000000e+00> : vector<224xf32>
    %30 = vector.multi_reduction <add>, %29, %cst_11 [0] : vector<32x224xf32> to vector<224xf32>
    %31 = vector.shape_cast %30 : vector<224xf32> to vector<1x224xf32>
    %32 = vector.extract_strided_slice %31 {offsets = [0, 0], sizes = [1, 32], strides = [1, 1]} : vector<1x224xf32> to vector<1x32xf32>
    %33 = vector.extract_strided_slice %31 {offsets = [0, 32], sizes = [1, 32], strides = [1, 1]} : vector<1x224xf32> to vector<1x32xf32>
    %34 = arith.addf %32, %33 : vector<1x32xf32>
    %35 = vector.extract_strided_slice %31 {offsets = [0, 64], sizes = [1, 32], strides = [1, 1]} : vector<1x224xf32> to vector<1x32xf32>
    %36 = arith.addf %34, %35 : vector<1x32xf32>
    %37 = vector.extract_strided_slice %31 {offsets = [0, 96], sizes = [1, 32], strides = [1, 1]} : vector<1x224xf32> to vector<1x32xf32>
    %38 = arith.addf %36, %37 : vector<1x32xf32>
    %39 = vector.extract_strided_slice %31 {offsets = [0, 128], sizes = [1, 32], strides = [1, 1]} : vector<1x224xf32> to vector<1x32xf32>
    %40 = arith.addf %38, %39 : vector<1x32xf32>
    %41 = vector.extract_strided_slice %31 {offsets = [0, 160], sizes = [1, 32], strides = [1, 1]} : vector<1x224xf32> to vector<1x32xf32>
    %42 = arith.addf %40, %41 : vector<1x32xf32>
    %43 = vector.extract_strided_slice %31 {offsets = [0, 192], sizes = [1, 32], strides = [1, 1]} : vector<1x224xf32> to vector<1x32xf32>
    %44 = arith.addf %42, %43 : vector<1x32xf32>
    %cst_12 = arith.constant 2.240000e+02 : f32
    %45 = vector.broadcast %cst_12 : f32 to vector<1x32xf32>
    %46 = arith.divf %44, %45 : vector<1x32xf32>
    %cst_13 = arith.constant 9.99999974E-6 : f32
    %47 = vector.broadcast %cst_13 : f32 to vector<1x32xf32>
    %48 = arith.addf %46, %47 : vector<1x32xf32>
    %49 = math.rsqrt %48 : vector<1x32xf32>
    %50 = tpu.concatenate %49, %49, %49, %49, %49, %49, %49 in 1 : vector<1x32xf32>, vector<1x32xf32>, vector<1x32xf32>, vector<1x32xf32>, vector<1x32xf32>, vector<1x32xf32>, vector<1x32xf32> -> vector<1x224xf32>
    %51 = vector.broadcast %50 : vector<1x224xf32> to vector<32x224xf32>
    %52 = arith.mulf %28, %51 : vector<32x224xf32>
    %c0_14 = arith.constant 0 : index
    %c1 = arith.constant 1 : index
    %c0_15 = arith.constant 0 : index
    %53 = vector.load %arg4[%c0_14, %c1, %c0_15] : memref<1x3x224xf32, #tpu.memory_space<vmem>>, vector<1x1x224xf32>
    %54 = vector.shape_cast %53 : vector<1x1x224xf32> to vector<1x224xf32>
    %55 = vector.broadcast %54 : vector<1x224xf32> to vector<32x224xf32>
    %56 = arith.mulf %52, %55 : vector<32x224xf32>
    %c0_16 = arith.constant 0 : index
    %c2 = arith.constant 2 : index
    %c0_17 = arith.constant 0 : index
    %57 = vector.load %arg4[%c0_16, %c2, %c0_17] : memref<1x3x224xf32, #tpu.memory_space<vmem>>, vector<1x1x224xf32>
    %58 = vector.shape_cast %57 : vector<1x1x224xf32> to vector<1x224xf32>
    %59 = vector.broadcast %58 : vector<1x224xf32> to vector<32x224xf32>
    %60 = arith.addf %56, %59 : vector<32x224xf32>
    %cst_18 = arith.constant 0.000000e+00 : f32
    %61 = vector.broadcast %cst_18 : f32 to vector<32x224xf32>
    %62 = arith.maximumf %60, %61 : vector<32x224xf32>
    %c0_19 = arith.constant 0 : index
    %c0_20 = arith.constant 0 : index
    %c0_21 = arith.constant 0 : index
    %c0_22 = arith.constant 0 : index
    %63 = vector.load %arg5[%c0_19, %c0_20, %c0_21, %c0_22] : memref<1x1x32x224xf32, #tpu.memory_space<vmem>>, vector<1x1x32x224xf32>
    %64 = vector.shape_cast %63 : vector<1x1x32x224xf32> to vector<32x224xf32>
    %65 = vector.shape_cast %62 : vector<32x224xf32> to vector<1x1x32x224xf32>
    tpu.vector_store %arg5[%c0_19, %c0_20, %c0_21, %c0_22], %65 {strides = array<i32>} : memref<1x1x32x224xf32, #tpu.memory_space<vmem>>, vector<1x1x32x224xf32>,
    return
  }
  func.func @transform_0(%arg0: i32, %arg1: i32) -> (i32, i32, i32, i32) {
    %c0_i32 = arith.constant 0 : i32
    %c0_i32_0 = arith.constant 0 : i32
    %c0_i32_1 = arith.constant 0 : i32
    return %arg0, %arg1, %c0_i32, %c0_i32_0 : i32, i32, i32, i32
  }
  func.func @transform_1(%arg0: i32, %arg1: i32) -> (i32, i32, i32) {
    %c0_i32 = arith.constant 0 : i32
    %c0_i32_0 = arith.constant 0 : i32
    %c0_i32_1 = arith.constant 0 : i32
    return %arg0, %c0_i32, %c0_i32_0 : i32, i32, i32
  }
  func.func @transform_2(%arg0: i32, %arg1: i32) -> (i32, i32, i32) {
    %c0_i32 = arith.constant 0 : i32
    %c0_i32_0 = arith.constant 0 : i32
    %c0_i32_1 = arith.constant 0 : i32
    return %arg0, %c0_i32, %c0_i32_0 : i32, i32, i32
  }
  func.func @transform_3(%arg0: i32, %arg1: i32) -> (i32, i32, i32, i32) {
    %c0_i32 = arith.constant 0 : i32
    %c0_i32_0 = arith.constant 0 : i32
    %c0_i32_1 = arith.constant 0 : i32
    return %arg0, %arg1, %c0_i32, %c0_i32_0 : i32, i32, i32, i32
  }
}

module attributes {stable_mosaic.version = 11 : i64} {
  func.func @_matmul_bias_kernel(%arg0: i32, %arg1: i32, %arg2: memref<1x1x32x224xf32, #tpu.memory_space<vmem>>, %arg3: memref<1x224x84xf32, #tpu.memory_space<vmem>>, %arg4: memref<1x1x84xf32, #tpu.memory_space<vmem>>, %arg5: memref<1x1x32x84xf32, #tpu.memory_space<vmem>>) attributes {dimension_semantics = [#tpu.dimension_semantics<parallel>, #tpu.dimension_semantics<parallel>], iteration_bounds = array<i64: 4, 2>, scalar_prefetch = 0 : i64, scratch_operands = 0 : i64, tpu.core_type = #tpu.core_type<tc>, window_params = [{transform_indices = @transform_0, window_bounds = array<i64: 1, 1, 32, 224>}, {transform_indices = @transform_1, window_bounds = array<i64: 1, 224, 84>}, {transform_indices = @transform_2, window_bounds = array<i64: 1, 1, 84>}, {transform_indices = @transform_3, window_bounds = array<i64: 1, 1, 32, 84>}]} {
    %c0 = arith.constant 0 : index
    %c0_0 = arith.constant 0 : index
    %c0_1 = arith.constant 0 : index
    %c0_2 = arith.constant 0 : index
    %0 = vector.load %arg2[%c0, %c0_0, %c0_1, %c0_2] : memref<1x1x32x224xf32, #tpu.memory_space<vmem>>, vector<1x1x32x224xf32>
    %1 = vector.shape_cast %0 : vector<1x1x32x224xf32> to vector<32x224xf32>
    %c0_3 = arith.constant 0 : index
    %c0_4 = arith.constant 0 : index
    %c0_5 = arith.constant 0 : index
    %2 = vector.load %arg3[%c0_3, %c0_4, %c0_5] : memref<1x224x84xf32, #tpu.memory_space<vmem>>, vector<1x224x84xf32>
    %3 = vector.shape_cast %2 : vector<1x224x84xf32> to vector<224x84xf32>
    %cst = arith.constant dense<0.000000e+00> : vector<32x84xf32>
    %4 = tpu.matmul %1, %3, %cst {dimension_numbers = #tpu.dot_dimension_numbers<[1], [0], [0], [1], [0, 0, 1, 1], [], []>} : vector<32x224xf32>, vector<224x84xf32>, vector<32x84xf32> -> vector<32x84xf32>
    %c0_6 = arith.constant 0 : index
    %c0_7 = arith.constant 0 : index
    %c0_8 = arith.constant 0 : index
    %5 = vector.load %arg4[%c0_6, %c0_7, %c0_8] : memref<1x1x84xf32, #tpu.memory_space<vmem>>, vector<1x1x84xf32>
    %6 = vector.shape_cast %5 : vector<1x1x84xf32> to vector<1x84xf32>
    %7 = vector.broadcast %6 : vector<1x84xf32> to vector<32x84xf32>
    %8 = arith.addf %4, %7 : vector<32x84xf32>
    %c0_9 = arith.constant 0 : index
    %c0_10 = arith.constant 0 : index
    %c0_11 = arith.constant 0 : index
    %c0_12 = arith.constant 0 : index
    %9 = vector.load %arg5[%c0_9, %c0_10, %c0_11, %c0_12] : memref<1x1x32x84xf32, #tpu.memory_space<vmem>>, vector<1x1x32x84xf32>
    %10 = vector.shape_cast %9 : vector<1x1x32x84xf32> to vector<32x84xf32>
    %11 = vector.shape_cast %8 : vector<32x84xf32> to vector<1x1x32x84xf32>
    tpu.vector_store %arg5[%c0_9, %c0_10, %c0_11, %c0_12], %11 {strides = array<i32>} : memref<1x1x32x84xf32, #tpu.memory_space<vmem>>, vector<1x1x32x84xf32>,
    return
  }
  func.func @transform_0(%arg0: i32, %arg1: i32) -> (i32, i32, i32, i32) {
    %c0_i32 = arith.constant 0 : i32
    %c0_i32_0 = arith.constant 0 : i32
    %c0_i32_1 = arith.constant 0 : i32
    return %arg0, %arg1, %c0_i32, %c0_i32_0 : i32, i32, i32, i32
  }
  func.func @transform_1(%arg0: i32, %arg1: i32) -> (i32, i32, i32) {
    %c0_i32 = arith.constant 0 : i32
    %c0_i32_0 = arith.constant 0 : i32
    %c0_i32_1 = arith.constant 0 : i32
    return %arg0, %c0_i32, %c0_i32_0 : i32, i32, i32
  }
  func.func @transform_2(%arg0: i32, %arg1: i32) -> (i32, i32, i32) {
    %c0_i32 = arith.constant 0 : i32
    %c0_i32_0 = arith.constant 0 : i32
    %c0_i32_1 = arith.constant 0 : i32
    return %arg0, %c0_i32, %c0_i32_0 : i32, i32, i32
  }
  func.func @transform_3(%arg0: i32, %arg1: i32) -> (i32, i32, i32, i32) {
    %c0_i32 = arith.constant 0 : i32
    %c0_i32_0 = arith.constant 0 : i32
    %c0_i32_1 = arith.constant 0 : i32
    return %arg0, %arg1, %c0_i32, %c0_i32_0 : i32, i32, i32, i32
  }
}

</mosaic_0001>

<llo_original>
// kernel: muse_generator_forward.9
$region0: #{muse_generator_forward.9}
  #allocation0 [shape = 'u32[]', space=smem, size = 0x4, offset = 0x4, fixed_abs, tag = 'smem constant byte address 0x4 - core index']
  #allocation1 [shape = 'u32[144,128]{1,0:T(1,128)}', space=vmem, size = 0x12000, scoped, tag = 'internal scratch']
  %s0 = inlined_call_operand.vmem [shape: f32[5,4,128], index: 0, kind: input, shape index: {}]
  %s1 = inlined_call_operand.vmem [shape: f32[5,128,32], index: 1, kind: input, shape index: {}]
  %s2 = inlined_call_operand.vmem [shape: f32[5,3,32], index: 2, kind: input, shape index: {}]
  %s3 = inlined_call_operand.vmem [shape: f32[5,4,32], index: 3, kind: output, shape index: {}]
  %s4 = sld [smem:[#allocation0]]
  $region45: #{muse_generator_forward.9} parent=0
    _
  %s6 = ssub.s32 1, %s4
  %s7 = scalar_select 0, %s6, %s4
  loop: start=0, step=1, limit=7
  $region2: #{muse_generator_forward.9} parent=0 // loop_pre_header
    _
  $region3: #{muse_generator_forward.9} parent=0 // loop_header
    %s9 = sphi 0, %s13
    %p10 = scmp.ge.s32.totalorder %s9, 7
    %s19 = sphi 0, %s21
    %s22 = sphi 0, %s19
    %s23 = sphi 0, %s22
    %s39 = sphi 0, %s23
    %s45 = sphi 0, %s47
    %s48 = sphi 0, %s45
    %s49 = sphi 0, %s48
    %s65 = sphi 0, %s49
    %s71 = sphi 0, %s73
    %s74 = sphi 0, %s71
    %s75 = sphi 0, %s74
    %s91 = sphi 0, %s75
    %s97 = sphi 0, %s99
    %s100 = sphi 0, %s97
    %s101 = sphi 0, %s100
    %s117 = sphi 0, %s101
  $region4: #{muse_generator_forward.9} parent=0 // loop_header_branch
    %12 = sbr.rel (%p10) target = $region8
  $region5: #{muse_generator_forward.9} parent=0 // loop_body
    %s14 = ssub.s32 %s9, 1
    %s15 = ssub.s32 %s9, 2
    %s16 = sadd.s32 %s9, 1
    %s17 = ssub.s32 %s9, %s16
    %p18 = scmp.eq.s32.totalorder %s17, 0
    %s20 = sadd.s32 %s19, 1
    %s21 = scalar_select %p18, %s19, %s20
    %p24 = pneg %p18
    %p25 = scmp.eq.s32.totalorder %s9, 4
    %p26 = por %p24, %p25
    %p27 = scmp.ne.s32.totalorder %s19, %s22
    %p28 = scmp.eq.s32.totalorder %s9, 0
    %p29 = por %p27, %p28
    %p30 = scmp.ne.s32.totalorder %s19, %s22
    %p31 = scmp.eq.s32.totalorder %s14, 4
    %p32 = por %p30, %p31
    %p33 = scmp.ne.s32.totalorder %s22, %s23
    %p34 = scmp.eq.s32.totalorder %s14, 0
    %p35 = por %p33, %p34
    %p36 = scmp.ne.s32.totalorder %s22, %s23
    %p37 = scmp.eq.s32.totalorder %s15, 4
    %p38 = por %p36, %p37
    %p40 = scmp.ne.s32.totalorder %s23, %s39
    %p41 = scmp.eq.s32.totalorder %s15, 0
    %p42 = por %p40, %p41
    %s43 = ssub.s32 %s9, %s16
    %p44 = scmp.eq.s32.totalorder %s43, 0
    %s46 = sadd.s32 %s45, 1
    %s47 = scalar_select %p44, %s45, %s46
    %p50 = pneg %p44
    %p51 = scmp.eq.s32.totalorder %s9, 4
    %p52 = por %p50, %p51
    %p53 = scmp.ne.s32.totalorder %s45, %s48
    %p54 = scmp.eq.s32.totalorder %s9, 0
    %p55 = por %p53, %p54
    %p56 = scmp.ne.s32.totalorder %s45, %s48
    %p57 = scmp.eq.s32.totalorder %s14, 4
    %p58 = por %p56, %p57
    %p59 = scmp.ne.s32.totalorder %s48, %s49
    %p60 = scmp.eq.s32.totalorder %s14, 0
    %p61 = por %p59, %p60
    %p62 = scmp.ne.s32.totalorder %s48, %s49
    %p63 = scmp.eq.s32.totalorder %s15, 4
    %p64 = por %p62, %p63
    %p66 = scmp.ne.s32.totalorder %s49, %s65
    %p67 = scmp.eq.s32.totalorder %s15, 0
    %p68 = por %p66, %p67
    %s69 = ssub.s32 %s9, %s16
    %p70 = scmp.eq.s32.totalorder %s69, 0
    %s72 = sadd.s32 %s71, 1
    %s73 = scalar_select %p70, %s71, %s72
    %p76 = pneg %p70
    %p77 = scmp.eq.s32.totalorder %s9, 4
    %p78 = por %p76, %p77
    %p79 = scmp.ne.s32.totalorder %s71, %s74
    %p80 = scmp.eq.s32.totalorder %s9, 0
    %p81 = por %p79, %p80
    %p82 = scmp.ne.s32.totalorder %s71, %s74
    %p83 = scmp.eq.s32.totalorder %s14, 4
    %p84 = por %p82, %p83
    %p85 = scmp.ne.s32.totalorder %s74, %s75
    %p86 = scmp.eq.s32.totalorder %s14, 0
    %p87 = por %p85, %p86
    %p88 = scmp.ne.s32.totalorder %s74, %s75
    %p89 = scmp.eq.s32.totalorder %s15, 4
    %p90 = por %p88, %p89
    %p92 = scmp.ne.s32.totalorder %s75, %s91
    %p93 = scmp.eq.s32.totalorder %s15, 0
    %p94 = por %p92, %p93
    %s95 = ssub.s32 %s9, %s16
    %p96 = scmp.eq.s32.totalorder %s95, 0
    %s98 = sadd.s32 %s97, 1
    %s99 = scalar_select %p96, %s97, %s98
    %p102 = pneg %p96
    %p103 = scmp.eq.s32.totalorder %s9, 4
    %p104 = por %p102, %p103
    %p105 = scmp.ne.s32.totalorder %s97, %s100
    %p106 = scmp.eq.s32.totalorder %s9, 0
    %p107 = por %p105, %p106
    %p108 = scmp.ne.s32.totalorder %s97, %s100
    %p109 = scmp.eq.s32.totalorder %s14, 4
    %p110 = por %p108, %p109
    %p111 = scmp.ne.s32.totalorder %s100, %s101
    %p112 = scmp.eq.s32.totalorder %s14, 0
    %p113 = por %p111, %p112
    %p114 = scmp.ne.s32.totalorder %s100, %s101
    %p115 = scmp.eq.s32.totalorder %s15, 4
    %p116 = por %p114, %p115
    %p118 = scmp.ne.s32.totalorder %s101, %s117
    %p119 = scmp.eq.s32.totalorder %s15, 0
    %p120 = por %p118, %p119
    %p121 = scmp.le.s32.totalorder 1, %s9
    %p122 = scmp.lt.s32.totalorder %s9, 6
    %p123 = pnand %p121, %p122
    %p124 = pneg %p123
    // Predicated region
    $region9: #{muse_generator_forward.9} parent=5 // pred_check
      _
    $region10: #{muse_generator_forward.9} parent=5 // pred_check_branch
      %126 = sbr.rel (%p123) target = $region12
    $region11: #{muse_generator_forward.9} parent=5 // pred_region
      %s127 = ssub.s32 %s9, 1
    $region12: #{muse_generator_forward.9} parent=5 // pred_fallthru
      _
    %p128 = scmp.lt.s32.totalorder %s9, 5
    // Predicated region
    $region13: #{muse_generator_forward.9} parent=5 // pred_check
      %p129 = pneg %p128
    $region14: #{muse_generator_forward.9} parent=5 // pred_check_branch
      %131 = sbr.rel (%p129) target = $region16
    $region15: #{muse_generator_forward.9} parent=5 // pred_region
      // Predicated region
      $region17: #{muse_generator_forward.9} parent=15 // pred_check
        %p132 = pneg %p29
      $region18: #{muse_generator_forward.9} parent=15 // pred_check_branch
        %134 = sbr.rel (%p132) target = $region20
      $region19: #{muse_generator_forward.9} parent=15 // pred_region
        %p135 = scmp.lt.s32.totalorder %s9, 4
        %s136 = scalar_select %p135, %s9, 4
        %s137 = smul.addr %s136, 4
        %s138 = scalar_lea.vmem %s0, %s137
      $region20: #{muse_generator_forward.9} parent=15 // pred_fallthru
        _
      // Predicated region
      $region21: #{muse_generator_forward.9} parent=15 // pred_check
        %p139 = pneg %p55
      $region22: #{muse_generator_forward.9} parent=15 // pred_check_branch
        %141 = sbr.rel (%p139) target = $region24
      $region23: #{muse_generator_forward.9} parent=15 // pred_region
        %p142 = scmp.lt.s32.totalorder %s9, 4
        %s143 = scalar_select %p142, %s9, 4
        %s144 = smul.addr %s143, 16
        %s145 = smul.addr %s144, 8
        %s146 = scalar_lea.vmem %s1, %s145
      $region24: #{muse_generator_forward.9} parent=15 // pred_fallthru
        _
      // Predicated region
      $region25: #{muse_generator_forward.9} parent=15 // pred_check
        %p147 = pneg %p81
      $region26: #{muse_generator_forward.9} parent=15 // pred_check_branch
        %149 = sbr.rel (%p147) target = $region28
      $region27: #{muse_generator_forward.9} parent=15 // pred_region
        %p150 = scmp.lt.s32.totalorder %s9, 4
        %s151 = scalar_select %p150, %s9, 4
        %s152 = smul.addr %s151, 4
        %s153 = scalar_lea.vmem %s2, %s152
      $region28: #{muse_generator_forward.9} parent=15 // pred_fallthru
        _
    $region16: #{muse_generator_forward.9} parent=5 // pred_fallthru
      _
    %p154 = scmp.le.s32.totalorder 1, %s9
    %p155 = scmp.lt.s32.totalorder %s9, 6
    %p156 = pnand %p154, %p155
    %p157 = pneg %p156
    // Predicated region
    $region29: #{muse_generator_forward.9} parent=5 // pred_check
      _
    $region30: #{muse_generator_forward.9} parent=5 // pred_check_branch
      %159 = sbr.rel (%p156) target = $region32
    $region31: #{muse_generator_forward.9} parent=5 // pred_region
      %s160 = ssub.s32 %s9, 1
      %p161 = scmp.lt.s32.totalorder %s14, 4
      %s162 = scalar_select %p161, %s14, 4
      %s163 = smul.addr %s162, 4
      %s164 = scalar_lea.vmem %s0, %s163
      %p165 = pneg %p35
      %p166 = pneg %p32
      %p167 = scmp.lt.s32.totalorder %s14, 4
      %s168 = scalar_select %p167, %s14, 4
      %s169 = smul.addr %s168, 16
      %s170 = smul.addr %s169, 8
      %s171 = scalar_lea.vmem %s1, %s170
      %p172 = pneg %p61
      %p173 = pneg %p58
      %p174 = scmp.lt.s32.totalorder %s14, 4
      %s175 = scalar_select %p174, %s14, 4
      %s176 = smul.addr %s175, 4
      %s177 = scalar_lea.vmem %s2, %s176
      %p178 = pneg %p87
      %p179 = pneg %p84
      %p180 = pneg %p113
      %p181 = pneg %p110
      %p182 = scmp.lt.s32.totalorder %s14, 4
      %s183 = scalar_select %p182, %s14, 4
      %s184 = smul.addr %s183, 4
      %s185 = scalar_lea.vmem %s3, %s184
      %p186 = scmp.lt.s32.totalorder %s14, 4
      %s187 = scalar_select %p186, %s14, 4
      %s188 = smul.addr %s187, 4
      %s189 = scalar_lea.vmem %s0, %s188
      %p190 = scmp.lt.s32.totalorder %s14, 4
      %s191 = scalar_select %p190, %s14, 4
      %s192 = smul.addr %s191, 16
      %s193 = smul.addr %s192, 8
      %s194 = scalar_lea.vmem %s1, %s193
      %p195 = scmp.lt.s32.totalorder %s14, 4
      %s196 = scalar_select %p195, %s14, 4
      %s197 = smul.addr %s196, 4
      %s198 = scalar_lea.vmem %s2, %s197
      %p199 = scmp.lt.s32.totalorder %s14, 4
      %s200 = scalar_select %p199, %s14, 4
      %s201 = smul.addr %s200, 4
      %s202 = scalar_lea.vmem %s3, %s201
      %v203 = vld [vmem:[%s189] sm:$0xf]
      %v204 = vld [vmem:[%s194] sm:$0xff]
      %v205 = vld [vmem:[%s194 + $0x8] sm:$0xff]
      %v206 = vld [vmem:[%s194 + $0x10] sm:$0xff]
      %v207 = vld [vmem:[%s194 + $0x18] sm:$0xff]
      %v208 = vld [vmem:[%s194 + $0x20] sm:$0xff]
      %v209 = vld [vmem:[%s194 + $0x28] sm:$0xff]
      %v210 = vld [vmem:[%s194 + $0x30] sm:$0xff]
      %v211 = vld [vmem:[%s194 + $0x38] sm:$0xff]
      %v212 = vld [vmem:[%s194 + $0x40] sm:$0xff]
      %v213 = vld [vmem:[%s194 + $0x48] sm:$0xff]
      %v214 = vld [vmem:[%s194 + $0x50] sm:$0xff]
      %v215 = vld [vmem:[%s194 + $0x58] sm:$0xff]
      %v216 = vld [vmem:[%s194 + $0x60] sm:$0xff]
      %v217 = vld [vmem:[%s194 + $0x68] sm:$0xff]
      %v218 = vld [vmem:[%s194 + $0x70] sm:$0xff]
      %v219 = vld [vmem:[%s194 + $0x78] sm:$0xff]
      %v220 = vld [vmem:[%s198] sm:$0x1]
      %v221 = vlaneseq
      %v222 = vshrl.u32 %v221, 7
      %v223 = vsub.s32 0, %v222
      %v224 = vrot.slane %v220, %v223
      %225 = vmatprep.subr.mxu0 0.0
      %226 = vmatpush1.msra.mxu0 %v204
      %227 = vmatprep.subr.mxu0 0.0
      %228 = vmatpush1.msra.mxu0 %v205
      %229 = vmatprep.subr.mxu0 0.0
      %230 = vmatpush1.msra.mxu0 %v206
      %231 = vmatprep.subr.mxu0 0.0
      %232 = vmatpush1.msra.mxu0 %v207
      %233 = vmatprep.subr.mxu0 0.0
      %234 = vmatpush1.msra.mxu0 %v208
      %235 = vmatprep.subr.mxu0 0.0
      %236 = vmatpush1.msra.mxu0 %v209
      %237 = vmatprep.subr.mxu0 0.0
      %238 = vmatpush1.msra.mxu0 %v210
      %239 = vmatprep.subr.mxu0 0.0
      %240 = vmatpush1.msra.mxu0 %v211
      %241 = vmatprep.subr.mxu0 0.0
      %242 = vmatpush1.msra.mxu0 %v212
      %243 = vmatprep.subr.mxu0 0.0
      %244 = vmatpush1.msra.mxu0 %v213
      %245 = vmatprep.subr.mxu0 0.0
      %246 = vmatpush1.msra.mxu0 %v214
      %247 = vmatprep.subr.mxu0 0.0
      %248 = vmatpush1.msra.mxu0 %v215
      %249 = vmatprep.subr.mxu0 0.0
      %250 = vmatpush1.msra.mxu0 %v216
      %251 = vmatprep.subr.mxu0 0.0
      %252 = vmatpush1.msra.mxu0 %v217
      %253 = vmatprep.subr.mxu0 0.0
      %254 = vmatpush1.msra.mxu0 %v218
      %255 = vmatprep.subr.mxu0 0.0
      %256 = vmatpush1.msra.mxu0 %v219
      %257 = vmatprep.subr.mxu0 0.0
      %258 = vmatpush1.msra.mxu0 0.0
      %259 = vmatprep.subr.mxu0 0.0
      %260 = vmatpush1.msra.mxu0 0.0
      %261 = vmatprep.subr.mxu0 0.0
      %262 = vmatpush1.msra.mxu0 0.0
      %263 = vmatprep.subr.mxu0 0.0
      %264 = vmatpush1.msra.mxu0 0.0
      %265 = vmatprep.subr.mxu0 0.0
      %266 = vmatpush1.msra.mxu0 0.0
      %267 = vmatprep.subr.mxu0 0.0
      %268 = vmatpush1.msra.mxu0 0.0
      %269 = vmatprep.subr.mxu0 0.0
      %270 = vmatpush1.msra.mxu0 0.0
      %271 = vmatprep.subr.mxu0 0.0
      %272 = vmatpush1.msra.mxu0 0.0
      %273 = vmatprep.subr.mxu0 0.0
      %274 = vmatpush1.msra.mxu0 0.0
      %275 = vmatprep.subr.mxu0 0.0
      %276 = vmatpush1.msra.mxu0 0.0
      %277 = vmatprep.subr.mxu0 0.0
      %278 = vmatpush1.msra.mxu0 0.0
      %279 = vmatprep.subr.mxu0 0.0
      %280 = vmatpush1.msra.mxu0 0.0
      %281 = vmatprep.subr.mxu0 0.0
      %282 = vmatpush1.msra.mxu0 0.0
      %283 = vmatprep.subr.mxu0 0.0
      %284 = vmatpush1.msra.mxu0 0.0
      %285 = vmatprep.subr.mxu0 0.0
      %286 = vmatpush1.msra.mxu0 0.0
      %287 = vmatprep.subr.mxu0 0.0
      %288 = vmatpush1.msra.mxu0 0.0
      %289 = vmatprep.mubr.f32.mxu0 0.0
      %290 = vmatmul.mubr.f32.gmra.mrb[0].mxu0 %v203
      %v291 = vpop.f32.mrb[0].mxu0
      %v292 = vadd.f32 %v224, %v291
      %v293 = vpop.f32.mrb[0].mxu0
      %294 = vdwg.mxu0
      %vm295 = vcmask 257024
      %v296 = vsel %vm295, %v292, 0.0
      %v297 = vrot.slane %v296, 4
      %v298 = vadd.f32 %v296, %v297
      %v299 = vrot.slane %v298, 2
      %v300 = vadd.f32 %v298, %v299
      %v301 = vrot.slane %v300, 1
      %v302 = vadd.f32 %v300, %v301
      %v303 = vrcp.pop 4.0
      %v304 = vmul.f32 %v302, %v303
      %v305 = vsub.f32 %v292, %v304
      %v306 = vmul.f32 %v305, %v305
      %v307 = vsel %vm295, %v306, 0.0
      %v308 = vrot.slane %v307, 4
      %v309 = vadd.f32 %v307, %v308
      %v310 = vrot.slane %v309, 2
      %v311 = vadd.f32 %v309, %v310
      %v312 = vrot.slane %v311, 1
      %v313 = vadd.f32 %v311, %v312
      %v314 = vmul.f32 %v313, %v303
      %v315 = vadd.f32 %v314, 1e-05
      %v316 = vrsqrt.pop %v315
      %v317 = vmul.f32 %v305, %v316
      %v318 = vld [vmem:[%s198 + $0x1] sm:$0x1]
      %v319 = vlaneseq
      %v320 = vshrl.u32 %v319, 7
      %v321 = vsub.s32 0, %v320
      %v322 = vrot.slane %v318, %v321
      %v323 = vmul.f32 %v317, %v322
      %v324 = vld [vmem:[%s198 + $0x2] sm:$0x1]
      %v325 = vlaneseq
      %v326 = vshrl.u32 %v325, 7
      %v327 = vsub.s32 0, %v326
      %v328 = vrot.slane %v324, %v327
      %v329 = vadd.f32 %v323, %v328
      %v330 = vmax.f32 %v329, 0.0
      %331 = vst.msk [vmem:[%s202] sm:$0xf] %vm295, %v330
      %p332 = scmp.lt.s32.totalorder %s14, 4
      %s333 = scalar_select %p332, %s14, 4
      %s334 = smul.addr %s333, 4
      %s335 = scalar_lea.vmem %s3, %s334
      // Predicated region
      $region33: #{muse_generator_forward.9} parent=31 // pred_check
        %p336 = pneg %p110
      $region34: #{muse_generator_forward.9} parent=31 // pred_check_branch
        %338 = sbr.rel (%p336) target = $region36
      $region35: #{muse_generator_forward.9} parent=31 // pred_region
        _
      $region36: #{muse_generator_forward.9} parent=31 // pred_fallthru
        _
    $region32: #{muse_generator_forward.9} parent=5 // pred_fallthru
      _
    %p339 = scmp.le.s32.totalorder 2, %s9
    // Predicated region
    $region37: #{muse_generator_forward.9} parent=5 // pred_check
      %p340 = pneg %p339
    $region38: #{muse_generator_forward.9} parent=5 // pred_check_branch
      %342 = sbr.rel (%p340) target = $region40
    $region39: #{muse_generator_forward.9} parent=5 // pred_region
      %s343 = ssub.s32 %s9, 2
      // Predicated region
      $region41: #{muse_generator_forward.9} parent=39 // pred_check
        %p344 = pneg %p116
      $region42: #{muse_generator_forward.9} parent=39 // pred_check_branch
        %346 = sbr.rel (%p344) target = $region44
      $region43: #{muse_generator_forward.9} parent=39 // pred_region
        %p347 = scmp.lt.s32.totalorder %s15, 4
        %s348 = scalar_select %p347, %s15, 4
        %s349 = smul.addr %s348, 4
        %s350 = scalar_lea.vmem %s3, %s349
      $region44: #{muse_generator_forward.9} parent=39 // pred_fallthru
        _
    $region40: #{muse_generator_forward.9} parent=5 // pred_fallthru
      _
  $region6: #{muse_generator_forward.9} parent=0 // loop_footer
    %s13 = sadd.s32 1, %s9
  $region7: #{muse_generator_forward.9} parent=0 // loop_footer_branch
    %8 = sbr.rel target = $region3
  $region8: #{muse_generator_forward.9} parent=0 // loop_exit
    _

// kernel: muse_generator_forward.8
$region0: #{muse_generator_forward.8}
  #allocation0 [shape = 'u32[]', space=smem, size = 0x4, offset = 0x4, fixed_abs, tag = 'smem constant byte address 0x4 - core index']
  #allocation1 [shape = 'u32[144,128]{1,0:T(1,128)}', space=vmem, size = 0x12000, scoped, tag = 'internal scratch']
  %s0 = inlined_call_operand.vmem [shape: f32[5,2,32], index: 0, kind: input, shape index: {}]
  %s1 = inlined_call_operand.hbm [shape: f32[5,32,256], index: 1, kind: input, shape index: {}]
  %s2 = inlined_call_operand.vmem [shape: f32[5,3,256], index: 2, kind: input, shape index: {}]
  %s3 = inlined_call_operand.vmem [shape: f32[5,2,256], index: 3, kind: output, shape index: {}]
  %s4 = sld [smem:[#allocation0]]
  $region49: #{muse_generator_forward.8} parent=0
    _
  %s6 = ssub.s32 1, %s4
  %s7 = scalar_select 0, %s6, %s4
  $region1: #{muse_generator_forward.8} parent=0
    #allocation2 [shape = 'u8[65536]{0}', space=vmem, size = 0x10000, scoped, tag = 'input window, operand 1']
    #allocation3 [shape = 's32[2]{0}', space=sflag, size = 0x8, scoped, tag = 'scoped memory for muse_generator_forward.8']
    %8 = vsyncpa [#allocation3], 0
    %s9 = scalar_lea.sflag [#allocation3], 1
    %10 = vsyncpa %s9, 0
    loop: start=0, step=1, limit=7
    $region2: #{muse_generator_forward.8} parent=1 // loop_pre_header
      _
    $region3: #{muse_generator_forward.8} parent=1 // loop_header
      %s12 = sphi 0, %s16
      %p13 = scmp.ge.s32.totalorder %s12, 7
      %s22 = sphi 0, %s24
      %s25 = sphi 0, %s22
      %s26 = sphi 0, %s25
      %s42 = sphi 0, %s26
      %s48 = sphi 0, %s50
      %s51 = sphi 0, %s48
      %s52 = sphi 0, %s51
      %s68 = sphi 0, %s52
      %s74 = sphi 0, %s76
      %s77 = sphi 0, %s74
      %s78 = sphi 0, %s77
      %s94 = sphi 0, %s78
      %s100 = sphi 0, %s102
      %s103 = sphi 0, %s100
      %s104 = sphi 0, %s103
      %s120 = sphi 0, %s104
    $region4: #{muse_generator_forward.8} parent=1 // loop_header_branch
      %15 = sbr.rel (%p13) target = $region8
    $region5: #{muse_generator_forward.8} parent=1 // loop_body
      %s17 = ssub.s32 %s12, 1
      %s18 = ssub.s32 %s12, 2
      %s19 = sadd.s32 %s12, 1
      %s20 = ssub.s32 %s12, %s19
      %p21 = scmp.eq.s32.totalorder %s20, 0
      %s23 = sadd.s32 %s22, 1
      %s24 = scalar_select %p21, %s22, %s23
      %p27 = pneg %p21
      %p28 = scmp.eq.s32.totalorder %s12, 4
      %p29 = por %p27, %p28
      %p30 = scmp.ne.s32.totalorder %s22, %s25
      %p31 = scmp.eq.s32.totalorder %s12, 0
      %p32 = por %p30, %p31
      %p33 = scmp.ne.s32.totalorder %s22, %s25
      %p34 = scmp.eq.s32.totalorder %s17, 4
      %p35 = por %p33, %p34
      %p36 = scmp.ne.s32.totalorder %s25, %s26
      %p37 = scmp.eq.s32.totalorder %s17, 0
      %p38 = por %p36, %p37
      %p39 = scmp.ne.s32.totalorder %s25, %s26
      %p40 = scmp.eq.s32.totalorder %s18, 4
      %p41 = por %p39, %p40
      %p43 = scmp.ne.s32.totalorder %s26, %s42
      %p44 = scmp.eq.s32.totalorder %s18, 0
      %p45 = por %p43, %p44
      %s46 = ssub.s32 %s12, %s19
      %p47 = scmp.eq.s32.totalorder %s46, 0
      %s49 = sadd.s32 %s48, 1
      %s50 = scalar_select %p47, %s48, %s49
      %p53 = pneg %p47
      %p54 = scmp.eq.s32.totalorder %s12, 4
      %p55 = por %p53, %p54
      %p56 = scmp.ne.s32.totalorder %s48, %s51
      %p57 = scmp.eq.s32.totalorder %s12, 0
      %p58 = por %p56, %p57
      %p59 = scmp.ne.s32.totalorder %s48, %s51
      %p60 = scmp.eq.s32.totalorder %s17, 4
      %p61 = por %p59, %p60
      %p62 = scmp.ne.s32.totalorder %s51, %s52
      %p63 = scmp.eq.s32.totalorder %s17, 0
      %p64 = por %p62, %p63
      %p65 = scmp.ne.s32.totalorder %s51, %s52
      %p66 = scmp.eq.s32.totalorder %s18, 4
      %p67 = por %p65, %p66
      %p69 = scmp.ne.s32.totalorder %s52, %s68
      %p70 = scmp.eq.s32.totalorder %s18, 0
      %p71 = por %p69, %p70
      %s72 = ssub.s32 %s12, %s19
      %p73 = scmp.eq.s32.totalorder %s72, 0
      %s75 = sadd.s32 %s74, 1
      %s76 = scalar_select %p73, %s74, %s75
      %p79 = pneg %p73
      %p80 = scmp.eq.s32.totalorder %s12, 4
      %p81 = por %p79, %p80
      %p82 = scmp.ne.s32.totalorder %s74, %s77
      %p83 = scmp.eq.s32.totalorder %s12, 0
      %p84 = por %p82, %p83
      %p85 = scmp.ne.s32.totalorder %s74, %s77
      %p86 = scmp.eq.s32.totalorder %s17, 4
      %p87 = por %p85, %p86
      %p88 = scmp.ne.s32.totalorder %s77, %s78
      %p89 = scmp.eq.s32.totalorder %s17, 0
      %p90 = por %p88, %p89
      %p91 = scmp.ne.s32.totalorder %s77, %s78
      %p92 = scmp.eq.s32.totalorder %s18, 4
      %p93 = por %p91, %p92
      %p95 = scmp.ne.s32.totalorder %s78, %s94
      %p96 = scmp.eq.s32.totalorder %s18, 0
      %p97 = por %p95, %p96
      %s98 = ssub.s32 %s12, %s19
      %p99 = scmp.eq.s32.totalorder %s98, 0
      %s101 = sadd.s32 %s100, 1
      %s102 = scalar_select %p99, %s100, %s101
      %p105 = pneg %p99
      %p106 = scmp.eq.s32.totalorder %s12, 4
      %p107 = por %p105, %p106
      %p108 = scmp.ne.s32.totalorder %s100, %s103
      %p109 = scmp.eq.s32.totalorder %s12, 0
      %p110 = por %p108, %p109
      %p111 = scmp.ne.s32.totalorder %s100, %s103
      %p112 = scmp.eq.s32.totalorder %s17, 4
      %p113 = por %p111, %p112
      %p114 = scmp.ne.s32.totalorder %s103, %s104
      %p115 = scmp.eq.s32.totalorder %s17, 0
      %p116 = por %p114, %p115
      %p117 = scmp.ne.s32.totalorder %s103, %s104
      %p118 = scmp.eq.s32.totalorder %s18, 4
      %p119 = por %p117, %p118
      %p121 = scmp.ne.s32.totalorder %s104, %s120
      %p122 = scmp.eq.s32.totalorder %s18, 0
      %p123 = por %p121, %p122
      %p124 = scmp.le.s32.totalorder 1, %s12
      %p125 = scmp.lt.s32.totalorder %s12, 6
      %p126 = pnand %p124, %p125
      %p127 = pneg %p126
      // Predicated region
      $region9: #{muse_generator_forward.8} parent=5 // pred_check
        _
      $region10: #{muse_generator_forward.8} parent=5 // pred_check_branch
        %129 = sbr.rel (%p126) target = $region12
      $region11: #{muse_generator_forward.8} parent=5 // pred_region
        %s130 = ssub.s32 %s12, 1
      $region12: #{muse_generator_forward.8} parent=5 // pred_fallthru
        _
      %p131 = scmp.lt.s32.totalorder %s12, 5
      // Predicated region
      $region13: #{muse_generator_forward.8} parent=5 // pred_check
        %p132 = pneg %p131
      $region14: #{muse_generator_forward.8} parent=5 // pred_check_branch
        %134 = sbr.rel (%p132) target = $region16
      $region15: #{muse_generator_forward.8} parent=5 // pred_region
        // Predicated region
        $region17: #{muse_generator_forward.8} parent=15 // pred_check
          %p135 = pneg %p32
        $region18: #{muse_generator_forward.8} parent=15 // pred_check_branch
          %137 = sbr.rel (%p135) target = $region20
        $region19: #{muse_generator_forward.8} parent=15 // pred_region
          %p138 = scmp.lt.s32.totalorder %s12, 4
          %s139 = scalar_select %p138, %s12, 4
          %s140 = smul.addr %s139, 2
          %s141 = scalar_lea.vmem %s0, %s140
        $region20: #{muse_generator_forward.8} parent=15 // pred_fallthru
          _
        // Predicated region
        $region21: #{muse_generator_forward.8} parent=15 // pred_check
          %p142 = pneg %p58
        $region22: #{muse_generator_forward.8} parent=15 // pred_check_branch
          %144 = sbr.rel (%p142) target = $region24
        $region23: #{muse_generator_forward.8} parent=15 // pred_region
          %s145 = sand.u32 %s48, 1
          %s146 = scalar_lea.sflag [#allocation3], %s145
          %s147 = sand.u32 %s48, 1
          %s148 = smul.addr %s147, 64
          %s149 = scalar_lea.vmem [#allocation2], %s148
          %s151 = ssub.s32 1024, 1024
          %152 = vsyncadd %s146, %s151
          %s153 = smul.addr %s12, 8
          %s154 = smul.addr %s153, 128
          %s155 = scalar_lea.hbm %s1, %s154
          %s156 = sshll.u32 %s149, 4
          %s157 = int_to_ptr.vmem [resolvable:$true] %s156
          %162 = dma.hbm_to_vmem [thread:$0]  %s155, 1024, %s157, %s146, 256, 256, 16
        $region24: #{muse_generator_forward.8} parent=15 // pred_fallthru
          _
        // Predicated region
        $region25: #{muse_generator_forward.8} parent=15 // pred_check
          %p163 = pneg %p84
        $region26: #{muse_generator_forward.8} parent=15 // pred_check_branch
          %165 = sbr.rel (%p163) target = $region28
        $region27: #{muse_generator_forward.8} parent=15 // pred_region
          %p166 = scmp.lt.s32.totalorder %s12, 4
          %s167 = scalar_select %p166, %s12, 4
          %s168 = smul.addr %s167, 2
          %s169 = smul.addr %s168, 4
          %s170 = scalar_lea.vmem %s2, %s169
        $region28: #{muse_generator_forward.8} parent=15 // pred_fallthru
          _
      $region16: #{muse_generator_forward.8} parent=5 // pred_fallthru
        _
      %p171 = scmp.le.s32.totalorder 1, %s12
      %p172 = scmp.lt.s32.totalorder %s12, 6
      %p173 = pnand %p171, %p172
      %p174 = pneg %p173
      // Predicated region
      $region29: #{muse_generator_forward.8} parent=5 // pred_check
        _
      $region30: #{muse_generator_forward.8} parent=5 // pred_check_branch
        %176 = sbr.rel (%p173) target = $region32
      $region31: #{muse_generator_forward.8} parent=5 // pred_region
        %s177 = ssub.s32 %s12, 1
        %s178 = sand.u32 %s51, 1
        %s179 = scalar_lea.sflag [#allocation3], %s178
        %s180 = sand.u32 %s51, 1
        %s181 = smul.addr %s180, 64
        %s182 = scalar_lea.vmem [#allocation2], %s181
        // Predicated region
        $region33: #{muse_generator_forward.8} parent=31 // pred_check
          %p183 = pneg %p64
        $region34: #{muse_generator_forward.8} parent=31 // pred_check_branch
          %185 = sbr.rel (%p183) target = $region36
        $region35: #{muse_generator_forward.8} parent=31 // pred_region
          %186 = dma.done %s179, 1024
        $region36: #{muse_generator_forward.8} parent=31 // pred_fallthru
          _
        %p187 = scmp.lt.s32.totalorder %s17, 4
        %s188 = scalar_select %p187, %s17, 4
        %s189 = smul.addr %s188, 2
        %s190 = scalar_lea.vmem %s0, %s189
        %p191 = pneg %p38
        %p192 = pneg %p35
        %s193 = sand.u32 %s51, 1
        %s194 = scalar_lea.sflag [#allocation3], %s193
        %s195 = sand.u32 %s51, 1
        %s196 = smul.addr %s195, 64
        %s197 = scalar_lea.vmem [#allocation2], %s196
        %p198 = pneg %p64
        %p199 = pneg %p61
        %p200 = scmp.lt.s32.totalorder %s17, 4
        %s201 = scalar_select %p200, %s17, 4
        %s202 = smul.addr %s201, 2
        %s203 = smul.addr %s202, 4
        %s204 = scalar_lea.vmem %s2, %s203
        %p205 = pneg %p90
        %p206 = pneg %p87
        %p207 = pneg %p116
        %p208 = pneg %p113
        %p209 = scmp.lt.s32.totalorder %s17, 4
        %s210 = scalar_select %p209, %s17, 4
        %s211 = smul.addr %s210, 2
        %s212 = smul.addr %s211, 2
        %s213 = scalar_lea.vmem %s3, %s212
        %p214 = scmp.lt.s32.totalorder %s17, 4
        %s215 = scalar_select %p214, %s17, 4
        %s216 = smul.addr %s215, 2
        %s217 = scalar_lea.vmem %s0, %s216
        %p218 = scmp.lt.s32.totalorder %s17, 4
        %s219 = scalar_select %p218, %s17, 4
        %s220 = smul.addr %s219, 2
        %s221 = smul.addr %s220, 4
        %s222 = scalar_lea.vmem %s2, %s221
        %p223 = scmp.lt.s32.totalorder %s17, 4
        %s224 = scalar_select %p223, %s17, 4
        %s225 = smul.addr %s224, 2
        %s226 = smul.addr %s225, 2
        %s227 = scalar_lea.vmem %s3, %s226
        %v228 = vld [vmem:[%s217] sm:$0x3]
        %v229 = vld [vmem:[%s182] sm:$0xff]
        %v230 = vld [vmem:[%s182 + $0x8] sm:$0xff]
        %v231 = vld [vmem:[%s182 + $0x10] sm:$0xff]
        %v232 = vld [vmem:[%s182 + $0x18] sm:$0xff]
        %v233 = vld [vmem:[%s182 + $0x20] sm:$0xff]
        %v234 = vld [vmem:[%s182 + $0x28] sm:$0xff]
        %v235 = vld [vmem:[%s182 + $0x30] sm:$0xff]
        %v236 = vld [vmem:[%s182 + $0x38] sm:$0xff]
        %v237 = vld [vmem:[%s222] ss:$4 sm:$0x3]
        %v239 = vlaneseq
        %v240 = vshrl.u32 %v239, 7
        %v241 = vsub.s32 0, %v240
        %v242 = vrot.slane %v237, %v241
        %v243 = vlaneseq
        %v244 = vshrl.u32 %v243, 7
        %v245 = vsub.s32 1, %v244
        %v246 = vrot.slane %v237, %v245
        %vm249 = vcmask 261120
        %v251 = vsel %vm249, %v228, 0
        %253 = vmatprep.subr.mxu0 %v230
        %254 = vmatpush1.msra.mxu0 %v229
        %255 = vmatprep.subr.mxu0 %v232
        %256 = vmatpush1.msra.mxu0 %v231
        %257 = vmatprep.subr.mxu0 %v234
        %258 = vmatpush1.msra.mxu0 %v233
        %259 = vmatprep.subr.mxu0 %v236
        %260 = vmatpush1.msra.mxu0 %v235
        %261 = vmatprep.subr.mxu0 0.0
        %262 = vmatpush1.msra.mxu0 0.0
        %263 = vmatprep.subr.mxu0 0.0
        %264 = vmatpush1.msra.mxu0 0.0
        %265 = vmatprep.subr.mxu0 0.0
        %266 = vmatpush1.msra.mxu0 0.0
        %267 = vmatprep.subr.mxu0 0.0
        %268 = vmatpush1.msra.mxu0 0.0
        %269 = vmatprep.subr.mxu0 0.0
        %270 = vmatpush1.msra.mxu0 0.0
        %271 = vmatprep.subr.mxu0 0.0
        %272 = vmatpush1.msra.mxu0 0.0
        %273 = vmatprep.subr.mxu0 0.0
        %274 = vmatpush1.msra.mxu0 0.0
        %275 = vmatprep.subr.mxu0 0.0
        %276 = vmatpush1.msra.mxu0 0.0
        %277 = vmatprep.subr.mxu0 0.0
        %278 = vmatpush1.msra.mxu0 0.0
        %279 = vmatprep.subr.mxu0 0.0
        %280 = vmatpush1.msra.mxu0 0.0
        %281 = vmatprep.subr.mxu0 0.0
        %282 = vmatpush1.msra.mxu0 0.0
        %283 = vmatprep.subr.mxu0 0.0
        %284 = vmatpush1.msra.mxu0 0.0
        %285 = vmatprep.subr.mxu0 0.0
        %286 = vmatpush1.msra.mxu0 0.0
        %287 = vmatprep.subr.mxu0 0.0
        %288 = vmatpush1.msra.mxu0 0.0
        %289 = vmatprep.subr.mxu0 0.0
        %290 = vmatpush1.msra.mxu0 0.0
        %291 = vmatprep.subr.mxu0 0.0
        %292 = vmatpush1.msra.mxu0 0.0
        %293 = vmatprep.subr.mxu0 0.0
        %294 = vmatpush1.msra.mxu0 0.0
        %295 = vmatprep.subr.mxu0 0.0
        %296 = vmatpush1.msra.mxu0 0.0
        %297 = vmatprep.subr.mxu0 0.0
        %298 = vmatpush1.msra.mxu0 0.0
        %299 = vmatprep.subr.mxu0 0.0
        %300 = vmatpush1.msra.mxu0 0.0
        %301 = vmatprep.subr.mxu0 0.0
        %302 = vmatpush1.msra.mxu0 0.0
        %303 = vmatprep.subr.mxu0 0.0
        %304 = vmatpush1.msra.mxu0 0.0
        %305 = vmatprep.subr.mxu0 0.0
        %306 = vmatpush1.msra.mxu0 0.0
        %307 = vmatprep.subr.mxu0 0.0
        %308 = vmatpush1.msra.mxu0 0.0
        %309 = vmatprep.subr.mxu0 0.0
        %310 = vmatpush1.msra.mxu0 0.0
        %311 = vmatprep.subr.mxu0 0.0
        %312 = vmatpush1.msra.mxu0 0.0
        %313 = vmatprep.subr.mxu0 0.0
        %314 = vmatpush1.msra.mxu0 0.0
        %315 = vmatprep.subr.mxu0 0.0
        %316 = vmatpush1.msra.mxu0 0.0
        %317 = vmatprep.mubr.f32.mxu0 0.0
        %318 = vmatmul.mubr.f32.gmra.mrb[0].mxu0 %v251
        %v319 = vpop.f32.mrb[0].mxu0
        %v320 = vadd.f32 %v242, %v319
        %v321 = vpop.f32.mrb[0].mxu0
        %v322 = vadd.f32 %v246, %v321
        %323 = vdwg.mxu0
        %vm324 = vcmask 1041408
        %v325 = vsel %vm324, %v320, 0.0
        %v326 = vrot.slane %v325, 4
        %v327 = vadd.f32 %v325, %v326
        %v328 = vrot.slane %v327, 2
        %v329 = vadd.f32 %v327, %v328
        %v330 = vrot.slane %v329, 1
        %v331 = vadd.f32 %v329, %v330
        %v332 = vsel %vm324, %v322, 0.0
        %v333 = vrot.slane %v332, 4
        %v334 = vadd.f32 %v332, %v333
        %v335 = vrot.slane %v334, 2
        %v336 = vadd.f32 %v334, %v335
        %v337 = vrot.slane %v336, 1
        %v338 = vadd.f32 %v336, %v337
        %v339 = vadd.f32 %v331, %v338
        %v340 = vrcp.pop 4.0
        %v341 = vmul.f32 %v339, %v340
        %v342 = vlaneseq
        %v343 = vshrl.u32 %v342, 7
        %v344 = vsub.s32 0, %v343
        %v345 = vrot.slane %v341, %v344
        %v346 = vsub.f32 %v320, %v345
        %v347 = vsub.f32 %v322, %v345
        %v348 = vmul.f32 %v346, %v346
        %v349 = vmul.f32 %v347, %v347
        %v350 = vsel %vm324, %v348, 0.0
        %v351 = vrot.slane %v350, 4
        %v352 = vadd.f32 %v350, %v351
        %v353 = vrot.slane %v352, 2
        %v354 = vadd.f32 %v352, %v353
        %v355 = vrot.slane %v354, 1
        %v356 = vadd.f32 %v354, %v355
        %v357 = vsel %vm324, %v349, 0.0
        %v358 = vrot.slane %v357, 4
        %v359 = vadd.f32 %v357, %v358
        %v360 = vrot.slane %v359, 2
        %v361 = vadd.f32 %v359, %v360
        %v362 = vrot.slane %v361, 1
        %v363 = vadd.f32 %v361, %v362
        %v364 = vadd.f32 %v356, %v363
        %v365 = vmul.f32 %v364, %v340
        %v366 = vadd.f32 %v365, 1e-05
        %v367 = vrsqrt.pop %v366
        %v368 = vlaneseq
        %v369 = vshrl.u32 %v368, 7
        %v370 = vsub.s32 0, %v369
        %v371 = vrot.slane %v367, %v370
        %v372 = vmul.f32 %v346, %v371
        %v373 = vmul.f32 %v347, %v371
        %s374 = scalar_lea.vmem %s222, 1
        %v375 = vld [vmem:[%s374] ss:$4 sm:$0x3]
        %v377 = vlaneseq
        %v378 = vshrl.u32 %v377, 7
        %v379 = vsub.s32 0, %v378
        %v380 = vrot.slane %v375, %v379
        %v381 = vlaneseq
        %v382 = vshrl.u32 %v381, 7
        %v383 = vsub.s32 1, %v382
        %v384 = vrot.slane %v375, %v383
        %v387 = vmul.f32 %v372, %v380
        %v388 = vmul.f32 %v373, %v384
        %s389 = scalar_lea.vmem %s222, 2
        %v390 = vld [vmem:[%s389] ss:$4 sm:$0x3]
        %v392 = vlaneseq
        %v393 = vshrl.u32 %v392, 7
        %v394 = vsub.s32 0, %v393
        %v395 = vrot.slane %v390, %v394
        %v396 = vlaneseq
        %v397 = vshrl.u32 %v396, 7
        %v398 = vsub.s32 1, %v397
        %v399 = vrot.slane %v390, %v398
        %v402 = vadd.f32 %v387, %v395
        %v403 = vadd.f32 %v388, %v399
        %v404 = vmax.f32 %v402, 0.0
        %v405 = vmax.f32 %v403, 0.0
        %v408 = vcombine.low %v404, %v405
        %v410 = vunpack.c.l.s4 1983009808
        %v411 = vunpack.c.0.s8 %v410
        %v412 = vlaneseq
        %v413 = vshrl.u32 %v412, 7
        %v414 = vsub.s32 %v411, %v413
        %v415 = vrot.slane %v408, %v414
        %417 = vst [vmem:[%s227] sm:$0xf] %v415
        %p418 = scmp.lt.s32.totalorder %s17, 4
        %s419 = scalar_select %p418, %s17, 4
        %s420 = smul.addr %s419, 2
        %s421 = smul.addr %s420, 2
        %s422 = scalar_lea.vmem %s3, %s421
        // Predicated region
        $region37: #{muse_generator_forward.8} parent=31 // pred_check
          %p423 = pneg %p113
        $region38: #{muse_generator_forward.8} parent=31 // pred_check_branch
          %425 = sbr.rel (%p423) target = $region40
        $region39: #{muse_generator_forward.8} parent=31 // pred_region
          _
        $region40: #{muse_generator_forward.8} parent=31 // pred_fallthru
          _
      $region32: #{muse_generator_forward.8} parent=5 // pred_fallthru
        _
      %p426 = scmp.le.s32.totalorder 2, %s12
      // Predicated region
      $region41: #{muse_generator_forward.8} parent=5 // pred_check
        %p427 = pneg %p426
      $region42: #{muse_generator_forward.8} parent=5 // pred_check_branch
        %429 = sbr.rel (%p427) target = $region44
      $region43: #{muse_generator_forward.8} parent=5 // pred_region
        %s430 = ssub.s32 %s12, 2
        // Predicated region
        $region45: #{muse_generator_forward.8} parent=43 // pred_check
          %p431 = pneg %p119
        $region46: #{muse_generator_forward.8} parent=43 // pred_check_branch
          %433 = sbr.rel (%p431) target = $region48
        $region47: #{muse_generator_forward.8} parent=43 // pred_region
          %p434 = scmp.lt.s32.totalorder %s18, 4
          %s435 = scalar_select %p434, %s18, 4
          %s436 = smul.addr %s435, 2
          %s437 = smul.addr %s436, 2
          %s438 = scalar_lea.vmem %s3, %s437
        $region48: #{muse_generator_forward.8} parent=43 // pred_fallthru
          _
      $region44: #{muse_generator_forward.8} parent=5 // pred_fallthru
        _
    $region6: #{muse_generator_forward.8} parent=1 // loop_footer
      %s16 = sadd.s32 1, %s12
    $region7: #{muse_generator_forward.8} parent=1 // loop_footer_branch
      %11 = sbr.rel target = $region3
    $region8: #{muse_generator_forward.8} parent=1 // loop_exit
      _
    %439 = vsyncpa [#allocation3], 1
    %s440 = scalar_lea.sflag [#allocation3], 1
    %441 = vsyncpa %s440, 1

// kernel: muse_generator_forward.10
$region0: #{muse_generator_forward.10}
  #allocation0 [shape = 'u32[]', space=smem, size = 0x4, offset = 0x4, fixed_abs, tag = 'smem constant byte address 0x4 - core index']
  #allocation1 [shape = 'u32[144,128]{1,0:T(1,128)}', space=vmem, size = 0x12000, scoped, tag = 'internal scratch']
  %s0 = inlined_call_operand.vmem [shape: f32[4,2,2,128], index: 0, kind: input, shape index: {}]
  %s1 = inlined_call_operand.vmem [shape: f32[4,128,128], index: 1, kind: input, shape index: {}]
  %s2 = inlined_call_operand.vmem [shape: f32[4,3,128], index: 2, kind: input, shape index: {}]
  %s3 = inlined_call_operand.vmem [shape: f32[4,2,2,128], index: 3, kind: output, shape index: {}]
  %s4 = sld [smem:[#allocation0]]
  $region45: #{muse_generator_forward.10} parent=0
    _
  %s6 = ssub.s32 1, %s4
  %s7 = scalar_select 0, %s6, %s4
  loop: start=0, step=1, limit=10
  $region2: #{muse_generator_forward.10} parent=0 // loop_pre_header
    _
  $region3: #{muse_generator_forward.10} parent=0 // loop_header
    %s9 = sphi 0, %s13
    %p10 = scmp.ge.s32.totalorder %s9, 10
    %s16 = sphi 0, %s28
    %s17 = sphi 0, %s24
    %s18 = sphi 0, %s16
    %s19 = sphi 0, %s17
    %s20 = sphi 0, %s18
    %s21 = sphi 0, %s19
    %s33 = sphi 0, %s35
    %s36 = sphi 0, %s33
    %s37 = sphi 0, %s36
    %s53 = sphi 0, %s37
    %s59 = sphi 0, %s61
    %s62 = sphi 0, %s59
    %s63 = sphi 0, %s62
    %s79 = sphi 0, %s63
    %s85 = sphi 0, %s87
    %s88 = sphi 0, %s85
    %s89 = sphi 0, %s88
    %s105 = sphi 0, %s89
    %s113 = sphi 0, %s115
    %s116 = sphi 0, %s113
    %s117 = sphi 0, %s116
    %s133 = sphi 0, %s117
  $region4: #{muse_generator_forward.10} parent=0 // loop_header_branch
    %12 = sbr.rel (%p10) target = $region8
  $region5: #{muse_generator_forward.10} parent=0 // loop_body
    %s14 = ssub.s32 %s9, 1
    %s15 = ssub.s32 %s9, 2
    %s22 = sadd.s32 1, %s17
    %p23 = scmp.ge.s32.totalorder %s22, 2
    %s24 = scalar_select %p23, 0, %s22
    %s25 = sadd.s32 1, %s16
    %s26 = scalar_select %p23, %s25, %s16
    %p27 = scmp.ge.s32.totalorder %s26, 4
    %s28 = scalar_select %p27, 0, %s26
    %s29 = ssub.s32 %s16, %s28
    %s30 = ssub.s32 %s17, %s24
    %s31 = sor.u32 %s29, %s30
    %p32 = scmp.eq.s32.totalorder %s31, 0
    %s34 = sadd.s32 %s33, 1
    %s35 = scalar_select %p32, %s33, %s34
    %p38 = pneg %p32
    %p39 = scmp.eq.s32.totalorder %s9, 7
    %p40 = por %p38, %p39
    %p41 = scmp.ne.s32.totalorder %s33, %s36
    %p42 = scmp.eq.s32.totalorder %s9, 0
    %p43 = por %p41, %p42
    %p44 = scmp.ne.s32.totalorder %s33, %s36
    %p45 = scmp.eq.s32.totalorder %s14, 7
    %p46 = por %p44, %p45
    %p47 = scmp.ne.s32.totalorder %s36, %s37
    %p48 = scmp.eq.s32.totalorder %s14, 0
    %p49 = por %p47, %p48
    %p50 = scmp.ne.s32.totalorder %s36, %s37
    %p51 = scmp.eq.s32.totalorder %s15, 7
    %p52 = por %p50, %p51
    %p54 = scmp.ne.s32.totalorder %s37, %s53
    %p55 = scmp.eq.s32.totalorder %s15, 0
    %p56 = por %p54, %p55
    %s57 = ssub.s32 %s16, %s28
    %p58 = scmp.eq.s32.totalorder %s57, 0
    %s60 = sadd.s32 %s59, 1
    %s61 = scalar_select %p58, %s59, %s60
    %p64 = pneg %p58
    %p65 = scmp.eq.s32.totalorder %s9, 7
    %p66 = por %p64, %p65
    %p67 = scmp.ne.s32.totalorder %s59, %s62
    %p68 = scmp.eq.s32.totalorder %s9, 0
    %p69 = por %p67, %p68
    %p70 = scmp.ne.s32.totalorder %s59, %s62
    %p71 = scmp.eq.s32.totalorder %s14, 7
    %p72 = por %p70, %p71
    %p73 = scmp.ne.s32.totalorder %s62, %s63
    %p74 = scmp.eq.s32.totalorder %s14, 0
    %p75 = por %p73, %p74
    %p76 = scmp.ne.s32.totalorder %s62, %s63
    %p77 = scmp.eq.s32.totalorder %s15, 7
    %p78 = por %p76, %p77
    %p80 = scmp.ne.s32.totalorder %s63, %s79
    %p81 = scmp.eq.s32.totalorder %s15, 0
    %p82 = por %p80, %p81
    %s83 = ssub.s32 %s16, %s28
    %p84 = scmp.eq.s32.totalorder %s83, 0
    %s86 = sadd.s32 %s85, 1
    %s87 = scalar_select %p84, %s85, %s86
    %p90 = pneg %p84
    %p91 = scmp.eq.s32.totalorder %s9, 7
    %p92 = por %p90, %p91
    %p93 = scmp.ne.s32.totalorder %s85, %s88
    %p94 = scmp.eq.s32.totalorder %s9, 0
    %p95 = por %p93, %p94
    %p96 = scmp.ne.s32.totalorder %s85, %s88
    %p97 = scmp.eq.s32.totalorder %s14, 7
    %p98 = por %p96, %p97
    %p99 = scmp.ne.s32.totalorder %s88, %s89
    %p100 = scmp.eq.s32.totalorder %s14, 0
    %p101 = por %p99, %p100
    %p102 = scmp.ne.s32.totalorder %s88, %s89
    %p103 = scmp.eq.s32.totalorder %s15, 7
    %p104 = por %p102, %p103
    %p106 = scmp.ne.s32.totalorder %s89, %s105
    %p107 = scmp.eq.s32.totalorder %s15, 0
    %p108 = por %p106, %p107
    %s109 = ssub.s32 %s16, %s28
    %s110 = ssub.s32 %s17, %s24
    %s111 = sor.u32 %s109, %s110
    %p112 = scmp.eq.s32.totalorder %s111, 0
    %s114 = sadd.s32 %s113, 1
    %s115 = scalar_select %p112, %s113, %s114
    %p118 = pneg %p112
    %p119 = scmp.eq.s32.totalorder %s9, 7
    %p120 = por %p118, %p119
    %p121 = scmp.ne.s32.totalorder %s113, %s116
    %p122 = scmp.eq.s32.totalorder %s9, 0
    %p123 = por %p121, %p122
    %p124 = scmp.ne.s32.totalorder %s113, %s116
    %p125 = scmp.eq.s32.totalorder %s14, 7
    %p126 = por %p124, %p125
    %p127 = scmp.ne.s32.totalorder %s116, %s117
    %p128 = scmp.eq.s32.totalorder %s14, 0
    %p129 = por %p127, %p128
    %p130 = scmp.ne.s32.totalorder %s116, %s117
    %p131 = scmp.eq.s32.totalorder %s15, 7
    %p132 = por %p130, %p131
    %p134 = scmp.ne.s32.totalorder %s117, %s133
    %p135 = scmp.eq.s32.totalorder %s15, 0
    %p136 = por %p134, %p135
    %p137 = scmp.le.s32.totalorder 1, %s9
    %p138 = scmp.lt.s32.totalorder %s9, 9
    %p139 = pnand %p137, %p138
    %p140 = pneg %p139
    // Predicated region
    $region9: #{muse_generator_forward.10} parent=5 // pred_check
      _
    $region10: #{muse_generator_forward.10} parent=5 // pred_check_branch
      %142 = sbr.rel (%p139) target = $region12
    $region11: #{muse_generator_forward.10} parent=5 // pred_region
      %s143 = ssub.s32 %s9, 1
    $region12: #{muse_generator_forward.10} parent=5 // pred_fallthru
      _
    %p144 = scmp.lt.s32.totalorder %s9, 8
    // Predicated region
    $region13: #{muse_generator_forward.10} parent=5 // pred_check
      %p145 = pneg %p144
    $region14: #{muse_generator_forward.10} parent=5 // pred_check_branch
      %147 = sbr.rel (%p145) target = $region16
    $region15: #{muse_generator_forward.10} parent=5 // pred_region
      // Predicated region
      $region17: #{muse_generator_forward.10} parent=15 // pred_check
        %p148 = pneg %p43
      $region18: #{muse_generator_forward.10} parent=15 // pred_check_branch
        %150 = sbr.rel (%p148) target = $region20
      $region19: #{muse_generator_forward.10} parent=15 // pred_region
        %p151 = scmp.lt.s32.totalorder %s16, 3
        %s152 = scalar_select %p151, %s16, 3
        %p153 = scmp.lt.s32.totalorder %s17, 1
        %s154 = scalar_select %p153, %s17, 1
        %s155 = smul.addr %s152, 2
        %s156 = sadd.s32 %s154, %s155
        %s157 = smul.addr %s156, 2
        %s158 = scalar_lea.vmem %s0, %s157
      $region20: #{muse_generator_forward.10} parent=15 // pred_fallthru
        _
      // Predicated region
      $region21: #{muse_generator_forward.10} parent=15 // pred_check
        %p159 = pneg %p69
      $region22: #{muse_generator_forward.10} parent=15 // pred_check_branch
        %161 = sbr.rel (%p159) target = $region24
      $region23: #{muse_generator_forward.10} parent=15 // pred_region
        %p162 = scmp.lt.s32.totalorder %s16, 3
        %s163 = scalar_select %p162, %s16, 3
        %s164 = smul.addr %s163, 16
        %s165 = smul.addr %s164, 8
        %s166 = scalar_lea.vmem %s1, %s165
      $region24: #{muse_generator_forward.10} parent=15 // pred_fallthru
        _
      // Predicated region
      $region25: #{muse_generator_forward.10} parent=15 // pred_check
        %p167 = pneg %p95
      $region26: #{muse_generator_forward.10} parent=15 // pred_check_branch
        %169 = sbr.rel (%p167) target = $region28
      $region27: #{muse_generator_forward.10} parent=15 // pred_region
        %p170 = scmp.lt.s32.totalorder %s16, 3
        %s171 = scalar_select %p170, %s16, 3
        %s172 = smul.addr %s171, 4
        %s173 = scalar_lea.vmem %s2, %s172
      $region28: #{muse_generator_forward.10} parent=15 // pred_fallthru
        _
    $region16: #{muse_generator_forward.10} parent=5 // pred_fallthru
      _
    %p174 = scmp.le.s32.totalorder 1, %s9
    %p175 = scmp.lt.s32.totalorder %s9, 9
    %p176 = pnand %p174, %p175
    %p177 = pneg %p176
    // Predicated region
    $region29: #{muse_generator_forward.10} parent=5 // pred_check
      _
    $region30: #{muse_generator_forward.10} parent=5 // pred_check_branch
      %179 = sbr.rel (%p176) target = $region32
    $region31: #{muse_generator_forward.10} parent=5 // pred_region
      %s180 = ssub.s32 %s9, 1
      %p181 = scmp.lt.s32.totalorder %s18, 3
      %s182 = scalar_select %p181, %s18, 3
      %p183 = scmp.lt.s32.totalorder %s19, 1
      %s184 = scalar_select %p183, %s19, 1
      %s185 = smul.addr %s182, 2
      %s186 = sadd.s32 %s184, %s185
      %s187 = smul.addr %s186, 2
      %s188 = scalar_lea.vmem %s0, %s187
      %p189 = pneg %p49
      %p190 = pneg %p46
      %p191 = scmp.lt.s32.totalorder %s18, 3
      %s192 = scalar_select %p191, %s18, 3
      %s193 = smul.addr %s192, 16
      %s194 = smul.addr %s193, 8
      %s195 = scalar_lea.vmem %s1, %s194
      %p196 = pneg %p75
      %p197 = pneg %p72
      %p198 = scmp.lt.s32.totalorder %s18, 3
      %s199 = scalar_select %p198, %s18, 3
      %s200 = smul.addr %s199, 4
      %s201 = scalar_lea.vmem %s2, %s200
      %p202 = pneg %p101
      %p203 = pneg %p98
      %p204 = pneg %p129
      %p205 = pneg %p126
      %p206 = scmp.lt.s32.totalorder %s18, 3
      %s207 = scalar_select %p206, %s18, 3
      %p208 = scmp.lt.s32.totalorder %s19, 1
      %s209 = scalar_select %p208, %s19, 1
      %s210 = smul.addr %s207, 2
      %s211 = sadd.s32 %s209, %s210
      %s212 = smul.addr %s211, 2
      %s213 = scalar_lea.vmem %s3, %s212
      %p214 = scmp.lt.s32.totalorder %s18, 3
      %s215 = scalar_select %p214, %s18, 3
      %p216 = scmp.lt.s32.totalorder %s19, 1
      %s217 = scalar_select %p216, %s19, 1
      %s218 = smul.addr %s215, 2
      %s219 = sadd.s32 %s217, %s218
      %s220 = smul.addr %s219, 2
      %s221 = scalar_lea.vmem %s0, %s220
      %p222 = scmp.lt.s32.totalorder %s18, 3
      %s223 = scalar_select %p222, %s18, 3
      %s224 = smul.addr %s223, 16
      %s225 = smul.addr %s224, 8
      %s226 = scalar_lea.vmem %s1, %s225
      %p227 = scmp.lt.s32.totalorder %s18, 3
      %s228 = scalar_select %p227, %s18, 3
      %s229 = smul.addr %s228, 4
      %s230 = scalar_lea.vmem %s2, %s229
      %p231 = scmp.lt.s32.totalorder %s18, 3
      %s232 = scalar_select %p231, %s18, 3
      %p233 = scmp.lt.s32.totalorder %s19, 1
      %s234 = scalar_select %p233, %s19, 1
      %s235 = smul.addr %s232, 2
      %s236 = sadd.s32 %s234, %s235
      %s237 = smul.addr %s236, 2
      %s238 = scalar_lea.vmem %s3, %s237
      %v239 = vld [vmem:[%s221] sm:$0x3]
      %v240 = vld [vmem:[%s226] sm:$0xff]
      %v241 = vld [vmem:[%s226 + $0x8] sm:$0xff]
      %v242 = vld [vmem:[%s226 + $0x10] sm:$0xff]
      %v243 = vld [vmem:[%s226 + $0x18] sm:$0xff]
      %v244 = vld [vmem:[%s226 + $0x20] sm:$0xff]
      %v245 = vld [vmem:[%s226 + $0x28] sm:$0xff]
      %v246 = vld [vmem:[%s226 + $0x30] sm:$0xff]
      %v247 = vld [vmem:[%s226 + $0x38] sm:$0xff]
      %v248 = vld [vmem:[%s226 + $0x40] sm:$0xff]
      %v249 = vld [vmem:[%s226 + $0x48] sm:$0xff]
      %v250 = vld [vmem:[%s226 + $0x50] sm:$0xff]
      %v251 = vld [vmem:[%s226 + $0x58] sm:$0xff]
      %v252 = vld [vmem:[%s226 + $0x60] sm:$0xff]
      %v253 = vld [vmem:[%s226 + $0x68] sm:$0xff]
      %v254 = vld [vmem:[%s226 + $0x70] sm:$0xff]
      %v255 = vld [vmem:[%s226 + $0x78] sm:$0xff]
      %v256 = vld [vmem:[%s230] sm:$0x1]
      %v257 = vlaneseq
      %v258 = vshrl.u32 %v257, 7
      %v259 = vsub.s32 0, %v258
      %v260 = vrot.slane %v256, %v259
      %261 = vmatprep.subr.mxu0 0.0
      %262 = vmatpush1.msra.mxu0 %v240
      %263 = vmatprep.subr.mxu0 0.0
      %264 = vmatpush1.msra.mxu0 %v241
      %265 = vmatprep.subr.mxu0 0.0
      %266 = vmatpush1.msra.mxu0 %v242
      %267 = vmatprep.subr.mxu0 0.0
      %268 = vmatpush1.msra.mxu0 %v243
      %269 = vmatprep.subr.mxu0 0.0
      %270 = vmatpush1.msra.mxu0 %v244
      %271 = vmatprep.subr.mxu0 0.0
      %272 = vmatpush1.msra.mxu0 %v245
      %273 = vmatprep.subr.mxu0 0.0
      %274 = vmatpush1.msra.mxu0 %v246
      %275 = vmatprep.subr.mxu0 0.0
      %276 = vmatpush1.msra.mxu0 %v247
      %277 = vmatprep.subr.mxu0 0.0
      %278 = vmatpush1.msra.mxu0 %v248
      %279 = vmatprep.subr.mxu0 0.0
      %280 = vmatpush1.msra.mxu0 %v249
      %281 = vmatprep.subr.mxu0 0.0
      %282 = vmatpush1.msra.mxu0 %v250
      %283 = vmatprep.subr.mxu0 0.0
      %284 = vmatpush1.msra.mxu0 %v251
      %285 = vmatprep.subr.mxu0 0.0
      %286 = vmatpush1.msra.mxu0 %v252
      %287 = vmatprep.subr.mxu0 0.0
      %288 = vmatpush1.msra.mxu0 %v253
      %289 = vmatprep.subr.mxu0 0.0
      %290 = vmatpush1.msra.mxu0 %v254
      %291 = vmatprep.subr.mxu0 0.0
      %292 = vmatpush1.msra.mxu0 %v255
      %293 = vmatprep.subr.mxu0 0.0
      %294 = vmatpush1.msra.mxu0 0.0
      %295 = vmatprep.subr.mxu0 0.0
      %296 = vmatpush1.msra.mxu0 0.0
      %297 = vmatprep.subr.mxu0 0.0
      %298 = vmatpush1.msra.mxu0 0.0
      %299 = vmatprep.subr.mxu0 0.0
      %300 = vmatpush1.msra.mxu0 0.0
      %301 = vmatprep.subr.mxu0 0.0
      %302 = vmatpush1.msra.mxu0 0.0
      %303 = vmatprep.subr.mxu0 0.0
      %304 = vmatpush1.msra.mxu0 0.0
      %305 = vmatprep.subr.mxu0 0.0
      %306 = vmatpush1.msra.mxu0 0.0
      %307 = vmatprep.subr.mxu0 0.0
      %308 = vmatpush1.msra.mxu0 0.0
      %309 = vmatprep.subr.mxu0 0.0
      %310 = vmatpush1.msra.mxu0 0.0
      %311 = vmatprep.subr.mxu0 0.0
      %312 = vmatpush1.msra.mxu0 0.0
      %313 = vmatprep.subr.mxu0 0.0
      %314 = vmatpush1.msra.mxu0 0.0
      %315 = vmatprep.subr.mxu0 0.0
      %316 = vmatpush1.msra.mxu0 0.0
      %317 = vmatprep.subr.mxu0 0.0
      %318 = vmatpush1.msra.mxu0 0.0
      %319 = vmatprep.subr.mxu0 0.0
      %320 = vmatpush1.msra.mxu0 0.0
      %321 = vmatprep.subr.mxu0 0.0
      %322 = vmatpush1.msra.mxu0 0.0
      %323 = vmatprep.subr.mxu0 0.0
      %324 = vmatpush1.msra.mxu0 0.0
      %325 = vmatprep.mubr.f32.mxu0 0.0
      %326 = vmatmul.mubr.f32.gmra.mrb[0].mxu0 %v239
      %v327 = vpop.f32.mrb[0].mxu0
      %v328 = vadd.f32 %v260, %v327
      %v329 = vpop.f32.mrb[0].mxu0
      %330 = vdwg.mxu0
      %vm331 = vcmask 1041408
      %v332 = vsel %vm331, %v328, 0.0
      %v333 = vrot.slane %v332, 4
      %v334 = vadd.f32 %v332, %v333
      %v335 = vrot.slane %v334, 2
      %v336 = vadd.f32 %v334, %v335
      %v337 = vrot.slane %v336, 1
      %v338 = vadd.f32 %v336, %v337
      %v339 = vrcp.pop 2.0
      %v340 = vmul.f32 %v338, %v339
      %v341 = vsub.f32 %v328, %v340
      %v342 = vmul.f32 %v341, %v341
      %v343 = vsel %vm331, %v342, 0.0
      %v344 = vrot.slane %v343, 4
      %v345 = vadd.f32 %v343, %v344
      %v346 = vrot.slane %v345, 2
      %v347 = vadd.f32 %v345, %v346
      %v348 = vrot.slane %v347, 1
      %v349 = vadd.f32 %v347, %v348
      %v350 = vmul.f32 %v349, %v339
      %v351 = vadd.f32 %v350, 1e-05
      %v352 = vrsqrt.pop %v351
      %v353 = vmul.f32 %v341, %v352
      %v354 = vld [vmem:[%s230 + $0x1] sm:$0x1]
      %v355 = vlaneseq
      %v356 = vshrl.u32 %v355, 7
      %v357 = vsub.s32 0, %v356
      %v358 = vrot.slane %v354, %v357
      %v359 = vmul.f32 %v353, %v358
      %v360 = vld [vmem:[%s230 + $0x2] sm:$0x1]
      %v361 = vlaneseq
      %v362 = vshrl.u32 %v361, 7
      %v363 = vsub.s32 0, %v362
      %v364 = vrot.slane %v360, %v363
      %v365 = vadd.f32 %v359, %v364
      %v366 = vmax.f32 %v365, 0.0
      %367 = vst [vmem:[%s238] sm:$0x3] %v366
      %p368 = scmp.lt.s32.totalorder %s18, 3
      %s369 = scalar_select %p368, %s18, 3
      %p370 = scmp.lt.s32.totalorder %s19, 1
      %s371 = scalar_select %p370, %s19, 1
      %s372 = smul.addr %s369, 2
      %s373 = sadd.s32 %s371, %s372
      %s374 = smul.addr %s373, 2
      %s375 = scalar_lea.vmem %s3, %s374
      // Predicated region
      $region33: #{muse_generator_forward.10} parent=31 // pred_check
        %p376 = pneg %p126
      $region34: #{muse_generator_forward.10} parent=31 // pred_check_branch
        %378 = sbr.rel (%p376) target = $region36
      $region35: #{muse_generator_forward.10} parent=31 // pred_region
        _
      $region36: #{muse_generator_forward.10} parent=31 // pred_fallthru
        _
    $region32: #{muse_generator_forward.10} parent=5 // pred_fallthru
      _
    %p379 = scmp.le.s32.totalorder 2, %s9
    // Predicated region
    $region37: #{muse_generator_forward.10} parent=5 // pred_check
      %p380 = pneg %p379
    $region38: #{muse_generator_forward.10} parent=5 // pred_check_branch
      %382 = sbr.rel (%p380) target = $region40
    $region39: #{muse_generator_forward.10} parent=5 // pred_region
      %s383 = ssub.s32 %s9, 2
      // Predicated region
      $region41: #{muse_generator_forward.10} parent=39 // pred_check
        %p384 = pneg %p132
      $region42: #{muse_generator_forward.10} parent=39 // pred_check_branch
        %386 = sbr.rel (%p384) target = $region44
      $region43: #{muse_generator_forward.10} parent=39 // pred_region
        %p387 = scmp.lt.s32.totalorder %s20, 3
        %s388 = scalar_select %p387, %s20, 3
        %p389 = scmp.lt.s32.totalorder %s21, 1
        %s390 = scalar_select %p389, %s21, 1
        %s391 = smul.addr %s388, 2
        %s392 = sadd.s32 %s390, %s391
        %s393 = smul.addr %s392, 2
        %s394 = scalar_lea.vmem %s3, %s393
      $region44: #{muse_generator_forward.10} parent=39 // pred_fallthru
        _
    $region40: #{muse_generator_forward.10} parent=5 // pred_fallthru
      _
  $region6: #{muse_generator_forward.10} parent=0 // loop_footer
    %s13 = sadd.s32 1, %s9
  $region7: #{muse_generator_forward.10} parent=0 // loop_footer_branch
    %8 = sbr.rel target = $region3
  $region8: #{muse_generator_forward.10} parent=0 // loop_exit
    _

// kernel: muse_generator_forward.11
$region0: #{muse_generator_forward.11}
  #allocation0 [shape = 'u32[]', space=smem, size = 0x4, offset = 0x4, fixed_abs, tag = 'smem constant byte address 0x4 - core index']
  #allocation1 [shape = 'u32[144,128]{1,0:T(1,128)}', space=vmem, size = 0x12000, scoped, tag = 'internal scratch']
  %s0 = inlined_call_operand.vmem [shape: f32[4,2,4,64], index: 0, kind: input, shape index: {}]
  %s1 = inlined_call_operand.vmem [shape: f32[4,64,128], index: 1, kind: input, shape index: {}]
  %s2 = inlined_call_operand.vmem [shape: f32[4,3,128], index: 2, kind: input, shape index: {}]
  %s3 = inlined_call_operand.vmem [shape: f32[4,2,4,128], index: 3, kind: output, shape index: {}]
  %s4 = sld [smem:[#allocation0]]
  $region45: #{muse_generator_forward.11} parent=0
    _
  %s6 = ssub.s32 1, %s4
  %s7 = scalar_select 0, %s6, %s4
  loop: start=0, step=1, limit=10
  $region2: #{muse_generator_forward.11} parent=0 // loop_pre_header
    _
  $region3: #{muse_generator_forward.11} parent=0 // loop_header
    %s9 = sphi 0, %s13
    %p10 = scmp.ge.s32.totalorder %s9, 10
    %s16 = sphi 0, %s28
    %s17 = sphi 0, %s24
    %s18 = sphi 0, %s16
    %s19 = sphi 0, %s17
    %s20 = sphi 0, %s18
    %s21 = sphi 0, %s19
    %s33 = sphi 0, %s35
    %s36 = sphi 0, %s33
    %s37 = sphi 0, %s36
    %s53 = sphi 0, %s37
    %s59 = sphi 0, %s61
    %s62 = sphi 0, %s59
    %s63 = sphi 0, %s62
    %s79 = sphi 0, %s63
    %s85 = sphi 0, %s87
    %s88 = sphi 0, %s85
    %s89 = sphi 0, %s88
    %s105 = sphi 0, %s89
    %s113 = sphi 0, %s115
    %s116 = sphi 0, %s113
    %s117 = sphi 0, %s116
    %s133 = sphi 0, %s117
  $region4: #{muse_generator_forward.11} parent=0 // loop_header_branch
    %12 = sbr.rel (%p10) target = $region8
  $region5: #{muse_generator_forward.11} parent=0 // loop_body
    %s14 = ssub.s32 %s9, 1
    %s15 = ssub.s32 %s9, 2
    %s22 = sadd.s32 1, %s17
    %p23 = scmp.ge.s32.totalorder %s22, 2
    %s24 = scalar_select %p23, 0, %s22
    %s25 = sadd.s32 1, %s16
    %s26 = scalar_select %p23, %s25, %s16
    %p27 = scmp.ge.s32.totalorder %s26, 4
    %s28 = scalar_select %p27, 0, %s26
    %s29 = ssub.s32 %s16, %s28
    %s30 = ssub.s32 %s17, %s24
    %s31 = sor.u32 %s29, %s30
    %p32 = scmp.eq.s32.totalorder %s31, 0
    %s34 = sadd.s32 %s33, 1
    %s35 = scalar_select %p32, %s33, %s34
    %p38 = pneg %p32
    %p39 = scmp.eq.s32.totalorder %s9, 7
    %p40 = por %p38, %p39
    %p41 = scmp.ne.s32.totalorder %s33, %s36
    %p42 = scmp.eq.s32.totalorder %s9, 0
    %p43 = por %p41, %p42
    %p44 = scmp.ne.s32.totalorder %s33, %s36
    %p45 = scmp.eq.s32.totalorder %s14, 7
    %p46 = por %p44, %p45
    %p47 = scmp.ne.s32.totalorder %s36, %s37
    %p48 = scmp.eq.s32.totalorder %s14, 0
    %p49 = por %p47, %p48
    %p50 = scmp.ne.s32.totalorder %s36, %s37
    %p51 = scmp.eq.s32.totalorder %s15, 7
    %p52 = por %p50, %p51
    %p54 = scmp.ne.s32.totalorder %s37, %s53
    %p55 = scmp.eq.s32.totalorder %s15, 0
    %p56 = por %p54, %p55
    %s57 = ssub.s32 %s16, %s28
    %p58 = scmp.eq.s32.totalorder %s57, 0
    %s60 = sadd.s32 %s59, 1
    %s61 = scalar_select %p58, %s59, %s60
    %p64 = pneg %p58
    %p65 = scmp.eq.s32.totalorder %s9, 7
    %p66 = por %p64, %p65
    %p67 = scmp.ne.s32.totalorder %s59, %s62
    %p68 = scmp.eq.s32.totalorder %s9, 0
    %p69 = por %p67, %p68
    %p70 = scmp.ne.s32.totalorder %s59, %s62
    %p71 = scmp.eq.s32.totalorder %s14, 7
    %p72 = por %p70, %p71
    %p73 = scmp.ne.s32.totalorder %s62, %s63
    %p74 = scmp.eq.s32.totalorder %s14, 0
    %p75 = por %p73, %p74
    %p76 = scmp.ne.s32.totalorder %s62, %s63
    %p77 = scmp.eq.s32.totalorder %s15, 7
    %p78 = por %p76, %p77
    %p80 = scmp.ne.s32.totalorder %s63, %s79
    %p81 = scmp.eq.s32.totalorder %s15, 0
    %p82 = por %p80, %p81
    %s83 = ssub.s32 %s16, %s28
    %p84 = scmp.eq.s32.totalorder %s83, 0
    %s86 = sadd.s32 %s85, 1
    %s87 = scalar_select %p84, %s85, %s86
    %p90 = pneg %p84
    %p91 = scmp.eq.s32.totalorder %s9, 7
    %p92 = por %p90, %p91
    %p93 = scmp.ne.s32.totalorder %s85, %s88
    %p94 = scmp.eq.s32.totalorder %s9, 0
    %p95 = por %p93, %p94
    %p96 = scmp.ne.s32.totalorder %s85, %s88
    %p97 = scmp.eq.s32.totalorder %s14, 7
    %p98 = por %p96, %p97
    %p99 = scmp.ne.s32.totalorder %s88, %s89
    %p100 = scmp.eq.s32.totalorder %s14, 0
    %p101 = por %p99, %p100
    %p102 = scmp.ne.s32.totalorder %s88, %s89
    %p103 = scmp.eq.s32.totalorder %s15, 7
    %p104 = por %p102, %p103
    %p106 = scmp.ne.s32.totalorder %s89, %s105
    %p107 = scmp.eq.s32.totalorder %s15, 0
    %p108 = por %p106, %p107
    %s109 = ssub.s32 %s16, %s28
    %s110 = ssub.s32 %s17, %s24
    %s111 = sor.u32 %s109, %s110
    %p112 = scmp.eq.s32.totalorder %s111, 0
    %s114 = sadd.s32 %s113, 1
    %s115 = scalar_select %p112, %s113, %s114
    %p118 = pneg %p112
    %p119 = scmp.eq.s32.totalorder %s9, 7
    %p120 = por %p118, %p119
    %p121 = scmp.ne.s32.totalorder %s113, %s116
    %p122 = scmp.eq.s32.totalorder %s9, 0
    %p123 = por %p121, %p122
    %p124 = scmp.ne.s32.totalorder %s113, %s116
    %p125 = scmp.eq.s32.totalorder %s14, 7
    %p126 = por %p124, %p125
    %p127 = scmp.ne.s32.totalorder %s116, %s117
    %p128 = scmp.eq.s32.totalorder %s14, 0
    %p129 = por %p127, %p128
    %p130 = scmp.ne.s32.totalorder %s116, %s117
    %p131 = scmp.eq.s32.totalorder %s15, 7
    %p132 = por %p130, %p131
    %p134 = scmp.ne.s32.totalorder %s117, %s133
    %p135 = scmp.eq.s32.totalorder %s15, 0
    %p136 = por %p134, %p135
    %p137 = scmp.le.s32.totalorder 1, %s9
    %p138 = scmp.lt.s32.totalorder %s9, 9
    %p139 = pnand %p137, %p138
    %p140 = pneg %p139
    // Predicated region
    $region9: #{muse_generator_forward.11} parent=5 // pred_check
      _
    $region10: #{muse_generator_forward.11} parent=5 // pred_check_branch
      %142 = sbr.rel (%p139) target = $region12
    $region11: #{muse_generator_forward.11} parent=5 // pred_region
      %s143 = ssub.s32 %s9, 1
    $region12: #{muse_generator_forward.11} parent=5 // pred_fallthru
      _
    %p144 = scmp.lt.s32.totalorder %s9, 8
    // Predicated region
    $region13: #{muse_generator_forward.11} parent=5 // pred_check
      %p145 = pneg %p144
    $region14: #{muse_generator_forward.11} parent=5 // pred_check_branch
      %147 = sbr.rel (%p145) target = $region16
    $region15: #{muse_generator_forward.11} parent=5 // pred_region
      // Predicated region
      $region17: #{muse_generator_forward.11} parent=15 // pred_check
        %p148 = pneg %p43
      $region18: #{muse_generator_forward.11} parent=15 // pred_check_branch
        %150 = sbr.rel (%p148) target = $region20
      $region19: #{muse_generator_forward.11} parent=15 // pred_region
        %p151 = scmp.lt.s32.totalorder %s16, 3
        %s152 = scalar_select %p151, %s16, 3
        %p153 = scmp.lt.s32.totalorder %s17, 1
        %s154 = scalar_select %p153, %s17, 1
        %s155 = smul.addr %s152, 2
        %s156 = sadd.s32 %s154, %s155
        %s157 = smul.addr %s156, 4
        %s158 = scalar_lea.vmem %s0, %s157
      $region20: #{muse_generator_forward.11} parent=15 // pred_fallthru
        _
      // Predicated region
      $region21: #{muse_generator_forward.11} parent=15 // pred_check
        %p159 = pneg %p69
      $region22: #{muse_generator_forward.11} parent=15 // pred_check_branch
        %161 = sbr.rel (%p159) target = $region24
      $region23: #{muse_generator_forward.11} parent=15 // pred_region
        %p162 = scmp.lt.s32.totalorder %s16, 3
        %s163 = scalar_select %p162, %s16, 3
        %s164 = smul.addr %s163, 8
        %s165 = smul.addr %s164, 8
        %s166 = scalar_lea.vmem %s1, %s165
      $region24: #{muse_generator_forward.11} parent=15 // pred_fallthru
        _
      // Predicated region
      $region25: #{muse_generator_forward.11} parent=15 // pred_check
        %p167 = pneg %p95
      $region26: #{muse_generator_forward.11} parent=15 // pred_check_branch
        %169 = sbr.rel (%p167) target = $region28
      $region27: #{muse_generator_forward.11} parent=15 // pred_region
        %p170 = scmp.lt.s32.totalorder %s16, 3
        %s171 = scalar_select %p170, %s16, 3
        %s172 = smul.addr %s171, 4
        %s173 = scalar_lea.vmem %s2, %s172
      $region28: #{muse_generator_forward.11} parent=15 // pred_fallthru
        _
    $region16: #{muse_generator_forward.11} parent=5 // pred_fallthru
      _
    %p174 = scmp.le.s32.totalorder 1, %s9
    %p175 = scmp.lt.s32.totalorder %s9, 9
    %p176 = pnand %p174, %p175
    %p177 = pneg %p176
    // Predicated region
    $region29: #{muse_generator_forward.11} parent=5 // pred_check
      _
    $region30: #{muse_generator_forward.11} parent=5 // pred_check_branch
      %179 = sbr.rel (%p176) target = $region32
    $region31: #{muse_generator_forward.11} parent=5 // pred_region
      %s180 = ssub.s32 %s9, 1
      %p181 = scmp.lt.s32.totalorder %s18, 3
      %s182 = scalar_select %p181, %s18, 3
      %p183 = scmp.lt.s32.totalorder %s19, 1
      %s184 = scalar_select %p183, %s19, 1
      %s185 = smul.addr %s182, 2
      %s186 = sadd.s32 %s184, %s185
      %s187 = smul.addr %s186, 4
      %s188 = scalar_lea.vmem %s0, %s187
      %p189 = pneg %p49
      %p190 = pneg %p46
      %p191 = scmp.lt.s32.totalorder %s18, 3
      %s192 = scalar_select %p191, %s18, 3
      %s193 = smul.addr %s192, 8
      %s194 = smul.addr %s193, 8
      %s195 = scalar_lea.vmem %s1, %s194
      %p196 = pneg %p75
      %p197 = pneg %p72
      %p198 = scmp.lt.s32.totalorder %s18, 3
      %s199 = scalar_select %p198, %s18, 3
      %s200 = smul.addr %s199, 4
      %s201 = scalar_lea.vmem %s2, %s200
      %p202 = pneg %p101
      %p203 = pneg %p98
      %p204 = pneg %p129
      %p205 = pneg %p126
      %p206 = scmp.lt.s32.totalorder %s18, 3
      %s207 = scalar_select %p206, %s18, 3
      %p208 = scmp.lt.s32.totalorder %s19, 1
      %s209 = scalar_select %p208, %s19, 1
      %s210 = smul.addr %s207, 2
      %s211 = sadd.s32 %s209, %s210
      %s212 = smul.addr %s211, 4
      %s213 = scalar_lea.vmem %s3, %s212
      %p214 = scmp.lt.s32.totalorder %s18, 3
      %s215 = scalar_select %p214, %s18, 3
      %p216 = scmp.lt.s32.totalorder %s19, 1
      %s217 = scalar_select %p216, %s19, 1
      %s218 = smul.addr %s215, 2
      %s219 = sadd.s32 %s217, %s218
      %s220 = smul.addr %s219, 4
      %s221 = scalar_lea.vmem %s0, %s220
      %p222 = scmp.lt.s32.totalorder %s18, 3
      %s223 = scalar_select %p222, %s18, 3
      %s224 = smul.addr %s223, 8
      %s225 = smul.addr %s224, 8
      %s226 = scalar_lea.vmem %s1, %s225
      %p227 = scmp.lt.s32.totalorder %s18, 3
      %s228 = scalar_select %p227, %s18, 3
      %s229 = smul.addr %s228, 4
      %s230 = scalar_lea.vmem %s2, %s229
      %p231 = scmp.lt.s32.totalorder %s18, 3
      %s232 = scalar_select %p231, %s18, 3
      %p233 = scmp.lt.s32.totalorder %s19, 1
      %s234 = scalar_select %p233, %s19, 1
      %s235 = smul.addr %s232, 2
      %s236 = sadd.s32 %s234, %s235
      %s237 = smul.addr %s236, 4
      %s238 = scalar_lea.vmem %s3, %s237
      %v239 = vld [vmem:[%s221] sm:$0xf]
      %v240 = vld [vmem:[%s226] sm:$0xff]
      %v241 = vld [vmem:[%s226 + $0x8] sm:$0xff]
      %v242 = vld [vmem:[%s226 + $0x10] sm:$0xff]
      %v243 = vld [vmem:[%s226 + $0x18] sm:$0xff]
      %v244 = vld [vmem:[%s226 + $0x20] sm:$0xff]
      %v245 = vld [vmem:[%s226 + $0x28] sm:$0xff]
      %v246 = vld [vmem:[%s226 + $0x30] sm:$0xff]
      %v247 = vld [vmem:[%s226 + $0x38] sm:$0xff]
      %v248 = vld [vmem:[%s230] sm:$0x1]
      %v249 = vlaneseq
      %v250 = vshrl.u32 %v249, 7
      %v251 = vsub.s32 0, %v250
      %v252 = vrot.slane %v248, %v251
      %vm253 = vcmask 523264
      %v255 = vsel %vm253, %v239, 0
      %257 = vmatprep.subr.mxu0 0.0
      %258 = vmatpush1.msra.mxu0 %v240
      %259 = vmatprep.subr.mxu0 0.0
      %260 = vmatpush1.msra.mxu0 %v241
      %261 = vmatprep.subr.mxu0 0.0
      %262 = vmatpush1.msra.mxu0 %v242
      %263 = vmatprep.subr.mxu0 0.0
      %264 = vmatpush1.msra.mxu0 %v243
      %265 = vmatprep.subr.mxu0 0.0
      %266 = vmatpush1.msra.mxu0 %v244
      %267 = vmatprep.subr.mxu0 0.0
      %268 = vmatpush1.msra.mxu0 %v245
      %269 = vmatprep.subr.mxu0 0.0
      %270 = vmatpush1.msra.mxu0 %v246
      %271 = vmatprep.subr.mxu0 0.0
      %272 = vmatpush1.msra.mxu0 %v247
      %273 = vmatprep.subr.mxu0 0.0
      %274 = vmatpush1.msra.mxu0 0.0
      %275 = vmatprep.subr.mxu0 0.0
      %276 = vmatpush1.msra.mxu0 0.0
      %277 = vmatprep.subr.mxu0 0.0
      %278 = vmatpush1.msra.mxu0 0.0
      %279 = vmatprep.subr.mxu0 0.0
      %280 = vmatpush1.msra.mxu0 0.0
      %281 = vmatprep.subr.mxu0 0.0
      %282 = vmatpush1.msra.mxu0 0.0
      %283 = vmatprep.subr.mxu0 0.0
      %284 = vmatpush1.msra.mxu0 0.0
      %285 = vmatprep.subr.mxu0 0.0
      %286 = vmatpush1.msra.mxu0 0.0
      %287 = vmatprep.subr.mxu0 0.0
      %288 = vmatpush1.msra.mxu0 0.0
      %289 = vmatprep.subr.mxu0 0.0
      %290 = vmatpush1.msra.mxu0 0.0
      %291 = vmatprep.subr.mxu0 0.0
      %292 = vmatpush1.msra.mxu0 0.0
      %293 = vmatprep.subr.mxu0 0.0
      %294 = vmatpush1.msra.mxu0 0.0
      %295 = vmatprep.subr.mxu0 0.0
      %296 = vmatpush1.msra.mxu0 0.0
      %297 = vmatprep.subr.mxu0 0.0
      %298 = vmatpush1.msra.mxu0 0.0
      %299 = vmatprep.subr.mxu0 0.0
      %300 = vmatpush1.msra.mxu0 0.0
      %301 = vmatprep.subr.mxu0 0.0
      %302 = vmatpush1.msra.mxu0 0.0
      %303 = vmatprep.subr.mxu0 0.0
      %304 = vmatpush1.msra.mxu0 0.0
      %305 = vmatprep.subr.mxu0 0.0
      %306 = vmatpush1.msra.mxu0 0.0
      %307 = vmatprep.subr.mxu0 0.0
      %308 = vmatpush1.msra.mxu0 0.0
      %309 = vmatprep.subr.mxu0 0.0
      %310 = vmatpush1.msra.mxu0 0.0
      %311 = vmatprep.subr.mxu0 0.0
      %312 = vmatpush1.msra.mxu0 0.0
      %313 = vmatprep.subr.mxu0 0.0
      %314 = vmatpush1.msra.mxu0 0.0
      %315 = vmatprep.subr.mxu0 0.0
      %316 = vmatpush1.msra.mxu0 0.0
      %317 = vmatprep.subr.mxu0 0.0
      %318 = vmatpush1.msra.mxu0 0.0
      %319 = vmatprep.subr.mxu0 0.0
      %320 = vmatpush1.msra.mxu0 0.0
      %321 = vmatprep.mubr.f32.mxu0 0.0
      %322 = vmatmul.mubr.f32.gmra.mrb[0].mxu0 %v255
      %v323 = vpop.f32.mrb[0].mxu0
      %v324 = vadd.f32 %v252, %v323
      %v325 = vpop.f32.mrb[0].mxu0
      %326 = vdwg.mxu0
      %vm327 = vcmask 1043456
      %v328 = vsel %vm327, %v324, 0.0
      %v329 = vrot.slane %v328, 4
      %v330 = vadd.f32 %v328, %v329
      %v331 = vrot.slane %v330, 2
      %v332 = vadd.f32 %v330, %v331
      %v333 = vrot.slane %v332, 1
      %v334 = vadd.f32 %v332, %v333
      %336 = vrot.lane.b32.xlu0 %v334, 64
      %v337 = vpop.permute.xlu0 %336
      %v339 = vadd.f32 %v334, %v337
      %v340 = vrcp.pop 8.0
      %v341 = vmul.f32 %v339, %v340
      %343 = vrot.lane.b32.xlu0 %v341, 64
      %v344 = vpop.permute.xlu0 %343
      %v346 = vsel %vm253, %v341, %v344
      %v347 = vlaneseq
      %v348 = vshrl.u32 %v347, 7
      %v349 = vsub.s32 0, %v348
      %v350 = vrot.slane %v346, %v349
      %v351 = vsub.f32 %v324, %v350
      %v352 = vmul.f32 %v351, %v351
      %v353 = vsel %vm327, %v352, 0.0
      %v354 = vrot.slane %v353, 4
      %v355 = vadd.f32 %v353, %v354
      %v356 = vrot.slane %v355, 2
      %v357 = vadd.f32 %v355, %v356
      %v358 = vrot.slane %v357, 1
      %v359 = vadd.f32 %v357, %v358
      %361 = vrot.lane.b32.xlu0 %v359, 64
      %v362 = vpop.permute.xlu0 %361
      %v364 = vadd.f32 %v359, %v362
      %v365 = vmul.f32 %v364, %v340
      %v366 = vadd.f32 %v365, 1e-05
      %v367 = vrsqrt.pop %v366
      %369 = vrot.lane.b32.xlu0 %v367, 64
      %v370 = vpop.permute.xlu0 %369
      %v372 = vsel %vm253, %v367, %v370
      %v373 = vlaneseq
      %v374 = vshrl.u32 %v373, 7
      %v375 = vsub.s32 0, %v374
      %v376 = vrot.slane %v372, %v375
      %v377 = vmul.f32 %v351, %v376
      %v378 = vld [vmem:[%s230 + $0x1] sm:$0x1]
      %v379 = vlaneseq
      %v380 = vshrl.u32 %v379, 7
      %v381 = vsub.s32 0, %v380
      %v382 = vrot.slane %v378, %v381
      %v383 = vmul.f32 %v377, %v382
      %v384 = vld [vmem:[%s230 + $0x2] sm:$0x1]
      %v385 = vlaneseq
      %v386 = vshrl.u32 %v385, 7
      %v387 = vsub.s32 0, %v386
      %v388 = vrot.slane %v384, %v387
      %v389 = vadd.f32 %v383, %v388
      %v390 = vmax.f32 %v389, 0.0
      %391 = vst [vmem:[%s238] sm:$0xf] %v390
      %p392 = scmp.lt.s32.totalorder %s18, 3
      %s393 = scalar_select %p392, %s18, 3
      %p394 = scmp.lt.s32.totalorder %s19, 1
      %s395 = scalar_select %p394, %s19, 1
      %s396 = smul.addr %s393, 2
      %s397 = sadd.s32 %s395, %s396
      %s398 = smul.addr %s397, 4
      %s399 = scalar_lea.vmem %s3, %s398
      // Predicated region
      $region33: #{muse_generator_forward.11} parent=31 // pred_check
        %p400 = pneg %p126
      $region34: #{muse_generator_forward.11} parent=31 // pred_check_branch
        %402 = sbr.rel (%p400) target = $region36
      $region35: #{muse_generator_forward.11} parent=31 // pred_region
        _
      $region36: #{muse_generator_forward.11} parent=31 // pred_fallthru
        _
    $region32: #{muse_generator_forward.11} parent=5 // pred_fallthru
      _
    %p403 = scmp.le.s32.totalorder 2, %s9
    // Predicated region
    $region37: #{muse_generator_forward.11} parent=5 // pred_check
      %p404 = pneg %p403
    $region38: #{muse_generator_forward.11} parent=5 // pred_check_branch
      %406 = sbr.rel (%p404) target = $region40
    $region39: #{muse_generator_forward.11} parent=5 // pred_region
      %s407 = ssub.s32 %s9, 2
      // Predicated region
      $region41: #{muse_generator_forward.11} parent=39 // pred_check
        %p408 = pneg %p132
      $region42: #{muse_generator_forward.11} parent=39 // pred_check_branch
        %410 = sbr.rel (%p408) target = $region44
      $region43: #{muse_generator_forward.11} parent=39 // pred_region
        %p411 = scmp.lt.s32.totalorder %s20, 3
        %s412 = scalar_select %p411, %s20, 3
        %p413 = scmp.lt.s32.totalorder %s21, 1
        %s414 = scalar_select %p413, %s21, 1
        %s415 = smul.addr %s412, 2
        %s416 = sadd.s32 %s414, %s415
        %s417 = smul.addr %s416, 4
        %s418 = scalar_lea.vmem %s3, %s417
      $region44: #{muse_generator_forward.11} parent=39 // pred_fallthru
        _
    $region40: #{muse_generator_forward.11} parent=5 // pred_fallthru
      _
  $region6: #{muse_generator_forward.11} parent=0 // loop_footer
    %s13 = sadd.s32 1, %s9
  $region7: #{muse_generator_forward.11} parent=0 // loop_footer_branch
    %8 = sbr.rel target = $region3
  $region8: #{muse_generator_forward.11} parent=0 // loop_exit
    _

// kernel: muse_generator_forward.12
$region0: #{muse_generator_forward.12}
  #allocation0 [shape = 'u32[]', space=smem, size = 0x4, offset = 0x4, fixed_abs, tag = 'smem constant byte address 0x4 - core index']
  #allocation1 [shape = 'u32[144,128]{1,0:T(1,128)}', space=vmem, size = 0x12000, scoped, tag = 'internal scratch']
  %s0 = inlined_call_operand.vmem [shape: f32[4,2,8,64], index: 0, kind: input, shape index: {}]
  %s1 = inlined_call_operand.vmem [shape: f32[4,64,64], index: 1, kind: input, shape index: {}]
  %s2 = inlined_call_operand.vmem [shape: f32[4,3,64], index: 2, kind: input, shape index: {}]
  %s3 = inlined_call_operand.vmem [shape: f32[4,2,8,64], index: 3, kind: output, shape index: {}]
  %s4 = sld [smem:[#allocation0]]
  $region45: #{muse_generator_forward.12} parent=0
    _
  %s6 = ssub.s32 1, %s4
  %s7 = scalar_select 0, %s6, %s4
  loop: start=0, step=1, limit=10
  $region2: #{muse_generator_forward.12} parent=0 // loop_pre_header
    _
  $region3: #{muse_generator_forward.12} parent=0 // loop_header
    %s9 = sphi 0, %s13
    %p10 = scmp.ge.s32.totalorder %s9, 10
    %s16 = sphi 0, %s28
    %s17 = sphi 0, %s24
    %s18 = sphi 0, %s16
    %s19 = sphi 0, %s17
    %s20 = sphi 0, %s18
    %s21 = sphi 0, %s19
    %s33 = sphi 0, %s35
    %s36 = sphi 0, %s33
    %s37 = sphi 0, %s36
    %s53 = sphi 0, %s37
    %s59 = sphi 0, %s61
    %s62 = sphi 0, %s59
    %s63 = sphi 0, %s62
    %s79 = sphi 0, %s63
    %s85 = sphi 0, %s87
    %s88 = sphi 0, %s85
    %s89 = sphi 0, %s88
    %s105 = sphi 0, %s89
    %s113 = sphi 0, %s115
    %s116 = sphi 0, %s113
    %s117 = sphi 0, %s116
    %s133 = sphi 0, %s117
  $region4: #{muse_generator_forward.12} parent=0 // loop_header_branch
    %12 = sbr.rel (%p10) target = $region8
  $region5: #{muse_generator_forward.12} parent=0 // loop_body
    %s14 = ssub.s32 %s9, 1
    %s15 = ssub.s32 %s9, 2
    %s22 = sadd.s32 1, %s17
    %p23 = scmp.ge.s32.totalorder %s22, 2
    %s24 = scalar_select %p23, 0, %s22
    %s25 = sadd.s32 1, %s16
    %s26 = scalar_select %p23, %s25, %s16
    %p27 = scmp.ge.s32.totalorder %s26, 4
    %s28 = scalar_select %p27, 0, %s26
    %s29 = ssub.s32 %s16, %s28
    %s30 = ssub.s32 %s17, %s24
    %s31 = sor.u32 %s29, %s30
    %p32 = scmp.eq.s32.totalorder %s31, 0
    %s34 = sadd.s32 %s33, 1
    %s35 = scalar_select %p32, %s33, %s34
    %p38 = pneg %p32
    %p39 = scmp.eq.s32.totalorder %s9, 7
    %p40 = por %p38, %p39
    %p41 = scmp.ne.s32.totalorder %s33, %s36
    %p42 = scmp.eq.s32.totalorder %s9, 0
    %p43 = por %p41, %p42
    %p44 = scmp.ne.s32.totalorder %s33, %s36
    %p45 = scmp.eq.s32.totalorder %s14, 7
    %p46 = por %p44, %p45
    %p47 = scmp.ne.s32.totalorder %s36, %s37
    %p48 = scmp.eq.s32.totalorder %s14, 0
    %p49 = por %p47, %p48
    %p50 = scmp.ne.s32.totalorder %s36, %s37
    %p51 = scmp.eq.s32.totalorder %s15, 7
    %p52 = por %p50, %p51
    %p54 = scmp.ne.s32.totalorder %s37, %s53
    %p55 = scmp.eq.s32.totalorder %s15, 0
    %p56 = por %p54, %p55
    %s57 = ssub.s32 %s16, %s28
    %p58 = scmp.eq.s32.totalorder %s57, 0
    %s60 = sadd.s32 %s59, 1
    %s61 = scalar_select %p58, %s59, %s60
    %p64 = pneg %p58
    %p65 = scmp.eq.s32.totalorder %s9, 7
    %p66 = por %p64, %p65
    %p67 = scmp.ne.s32.totalorder %s59, %s62
    %p68 = scmp.eq.s32.totalorder %s9, 0
    %p69 = por %p67, %p68
    %p70 = scmp.ne.s32.totalorder %s59, %s62
    %p71 = scmp.eq.s32.totalorder %s14, 7
    %p72 = por %p70, %p71
    %p73 = scmp.ne.s32.totalorder %s62, %s63
    %p74 = scmp.eq.s32.totalorder %s14, 0
    %p75 = por %p73, %p74
    %p76 = scmp.ne.s32.totalorder %s62, %s63
    %p77 = scmp.eq.s32.totalorder %s15, 7
    %p78 = por %p76, %p77
    %p80 = scmp.ne.s32.totalorder %s63, %s79
    %p81 = scmp.eq.s32.totalorder %s15, 0
    %p82 = por %p80, %p81
    %s83 = ssub.s32 %s16, %s28
    %p84 = scmp.eq.s32.totalorder %s83, 0
    %s86 = sadd.s32 %s85, 1
    %s87 = scalar_select %p84, %s85, %s86
    %p90 = pneg %p84
    %p91 = scmp.eq.s32.totalorder %s9, 7
    %p92 = por %p90, %p91
    %p93 = scmp.ne.s32.totalorder %s85, %s88
    %p94 = scmp.eq.s32.totalorder %s9, 0
    %p95 = por %p93, %p94
    %p96 = scmp.ne.s32.totalorder %s85, %s88
    %p97 = scmp.eq.s32.totalorder %s14, 7
    %p98 = por %p96, %p97
    %p99 = scmp.ne.s32.totalorder %s88, %s89
    %p100 = scmp.eq.s32.totalorder %s14, 0
    %p101 = por %p99, %p100
    %p102 = scmp.ne.s32.totalorder %s88, %s89
    %p103 = scmp.eq.s32.totalorder %s15, 7
    %p104 = por %p102, %p103
    %p106 = scmp.ne.s32.totalorder %s89, %s105
    %p107 = scmp.eq.s32.totalorder %s15, 0
    %p108 = por %p106, %p107
    %s109 = ssub.s32 %s16, %s28
    %s110 = ssub.s32 %s17, %s24
    %s111 = sor.u32 %s109, %s110
    %p112 = scmp.eq.s32.totalorder %s111, 0
    %s114 = sadd.s32 %s113, 1
    %s115 = scalar_select %p112, %s113, %s114
    %p118 = pneg %p112
    %p119 = scmp.eq.s32.totalorder %s9, 7
    %p120 = por %p118, %p119
    %p121 = scmp.ne.s32.totalorder %s113, %s116
    %p122 = scmp.eq.s32.totalorder %s9, 0
    %p123 = por %p121, %p122
    %p124 = scmp.ne.s32.totalorder %s113, %s116
    %p125 = scmp.eq.s32.totalorder %s14, 7
    %p126 = por %p124, %p125
    %p127 = scmp.ne.s32.totalorder %s116, %s117
    %p128 = scmp.eq.s32.totalorder %s14, 0
    %p129 = por %p127, %p128
    %p130 = scmp.ne.s32.totalorder %s116, %s117
    %p131 = scmp.eq.s32.totalorder %s15, 7
    %p132 = por %p130, %p131
    %p134 = scmp.ne.s32.totalorder %s117, %s133
    %p135 = scmp.eq.s32.totalorder %s15, 0
    %p136 = por %p134, %p135
    %p137 = scmp.le.s32.totalorder 1, %s9
    %p138 = scmp.lt.s32.totalorder %s9, 9
    %p139 = pnand %p137, %p138
    %p140 = pneg %p139
    // Predicated region
    $region9: #{muse_generator_forward.12} parent=5 // pred_check
      _
    $region10: #{muse_generator_forward.12} parent=5 // pred_check_branch
      %142 = sbr.rel (%p139) target = $region12
    $region11: #{muse_generator_forward.12} parent=5 // pred_region
      %s143 = ssub.s32 %s9, 1
    $region12: #{muse_generator_forward.12} parent=5 // pred_fallthru
      _
    %p144 = scmp.lt.s32.totalorder %s9, 8
    // Predicated region
    $region13: #{muse_generator_forward.12} parent=5 // pred_check
      %p145 = pneg %p144
    $region14: #{muse_generator_forward.12} parent=5 // pred_check_branch
      %147 = sbr.rel (%p145) target = $region16
    $region15: #{muse_generator_forward.12} parent=5 // pred_region
      // Predicated region
      $region17: #{muse_generator_forward.12} parent=15 // pred_check
        %p148 = pneg %p43
      $region18: #{muse_generator_forward.12} parent=15 // pred_check_branch
        %150 = sbr.rel (%p148) target = $region20
      $region19: #{muse_generator_forward.12} parent=15 // pred_region
        %p151 = scmp.lt.s32.totalorder %s16, 3
        %s152 = scalar_select %p151, %s16, 3
        %p153 = scmp.lt.s32.totalorder %s17, 1
        %s154 = scalar_select %p153, %s17, 1
        %s155 = smul.addr %s152, 2
        %s156 = sadd.s32 %s154, %s155
        %s157 = smul.addr %s156, 8
        %s158 = scalar_lea.vmem %s0, %s157
      $region20: #{muse_generator_forward.12} parent=15 // pred_fallthru
        _
      // Predicated region
      $region21: #{muse_generator_forward.12} parent=15 // pred_check
        %p159 = pneg %p69
      $region22: #{muse_generator_forward.12} parent=15 // pred_check_branch
        %161 = sbr.rel (%p159) target = $region24
      $region23: #{muse_generator_forward.12} parent=15 // pred_region
        %p162 = scmp.lt.s32.totalorder %s16, 3
        %s163 = scalar_select %p162, %s16, 3
        %s164 = smul.addr %s163, 8
        %s165 = smul.addr %s164, 8
        %s166 = scalar_lea.vmem %s1, %s165
      $region24: #{muse_generator_forward.12} parent=15 // pred_fallthru
        _
      // Predicated region
      $region25: #{muse_generator_forward.12} parent=15 // pred_check
        %p167 = pneg %p95
      $region26: #{muse_generator_forward.12} parent=15 // pred_check_branch
        %169 = sbr.rel (%p167) target = $region28
      $region27: #{muse_generator_forward.12} parent=15 // pred_region
        %p170 = scmp.lt.s32.totalorder %s16, 3
        %s171 = scalar_select %p170, %s16, 3
        %s172 = smul.addr %s171, 4
        %s173 = scalar_lea.vmem %s2, %s172
      $region28: #{muse_generator_forward.12} parent=15 // pred_fallthru
        _
    $region16: #{muse_generator_forward.12} parent=5 // pred_fallthru
      _
    %p174 = scmp.le.s32.totalorder 1, %s9
    %p175 = scmp.lt.s32.totalorder %s9, 9
    %p176 = pnand %p174, %p175
    %p177 = pneg %p176
    // Predicated region
    $region29: #{muse_generator_forward.12} parent=5 // pred_check
      _
    $region30: #{muse_generator_forward.12} parent=5 // pred_check_branch
      %179 = sbr.rel (%p176) target = $region32
    $region31: #{muse_generator_forward.12} parent=5 // pred_region
      %s180 = ssub.s32 %s9, 1
      %p181 = scmp.lt.s32.totalorder %s18, 3
      %s182 = scalar_select %p181, %s18, 3
      %p183 = scmp.lt.s32.totalorder %s19, 1
      %s184 = scalar_select %p183, %s19, 1
      %s185 = smul.addr %s182, 2
      %s186 = sadd.s32 %s184, %s185
      %s187 = smul.addr %s186, 8
      %s188 = scalar_lea.vmem %s0, %s187
      %p189 = pneg %p49
      %p190 = pneg %p46
      %p191 = scmp.lt.s32.totalorder %s18, 3
      %s192 = scalar_select %p191, %s18, 3
      %s193 = smul.addr %s192, 8
      %s194 = smul.addr %s193, 8
      %s195 = scalar_lea.vmem %s1, %s194
      %p196 = pneg %p75
      %p197 = pneg %p72
      %p198 = scmp.lt.s32.totalorder %s18, 3
      %s199 = scalar_select %p198, %s18, 3
      %s200 = smul.addr %s199, 4
      %s201 = scalar_lea.vmem %s2, %s200
      %p202 = pneg %p101
      %p203 = pneg %p98
      %p204 = pneg %p129
      %p205 = pneg %p126
      %p206 = scmp.lt.s32.totalorder %s18, 3
      %s207 = scalar_select %p206, %s18, 3
      %p208 = scmp.lt.s32.totalorder %s19, 1
      %s209 = scalar_select %p208, %s19, 1
      %s210 = smul.addr %s207, 2
      %s211 = sadd.s32 %s209, %s210
      %s212 = smul.addr %s211, 8
      %s213 = scalar_lea.vmem %s3, %s212
      %p214 = scmp.lt.s32.totalorder %s18, 3
      %s215 = scalar_select %p214, %s18, 3
      %p216 = scmp.lt.s32.totalorder %s19, 1
      %s217 = scalar_select %p216, %s19, 1
      %s218 = smul.addr %s215, 2
      %s219 = sadd.s32 %s217, %s218
      %s220 = smul.addr %s219, 8
      %s221 = scalar_lea.vmem %s0, %s220
      %p222 = scmp.lt.s32.totalorder %s18, 3
      %s223 = scalar_select %p222, %s18, 3
      %s224 = smul.addr %s223, 8
      %s225 = smul.addr %s224, 8
      %s226 = scalar_lea.vmem %s1, %s225
      %p227 = scmp.lt.s32.totalorder %s18, 3
      %s228 = scalar_select %p227, %s18, 3
      %s229 = smul.addr %s228, 4
      %s230 = scalar_lea.vmem %s2, %s229
      %p231 = scmp.lt.s32.totalorder %s18, 3
      %s232 = scalar_select %p231, %s18, 3
      %p233 = scmp.lt.s32.totalorder %s19, 1
      %s234 = scalar_select %p233, %s19, 1
      %s235 = smul.addr %s232, 2
      %s236 = sadd.s32 %s234, %s235
      %s237 = smul.addr %s236, 8
      %s238 = scalar_lea.vmem %s3, %s237
      %v239 = vld [vmem:[%s221] sm:$0xff]
      %v240 = vld [vmem:[%s226] sm:$0xff]
      %v241 = vld [vmem:[%s226 + $0x8] sm:$0xff]
      %v242 = vld [vmem:[%s226 + $0x10] sm:$0xff]
      %v243 = vld [vmem:[%s226 + $0x18] sm:$0xff]
      %v244 = vld [vmem:[%s226 + $0x20] sm:$0xff]
      %v245 = vld [vmem:[%s226 + $0x28] sm:$0xff]
      %v246 = vld [vmem:[%s226 + $0x30] sm:$0xff]
      %v247 = vld [vmem:[%s226 + $0x38] sm:$0xff]
      %v248 = vld [vmem:[%s230] sm:$0x1]
      %v249 = vlaneseq
      %v250 = vshrl.u32 %v249, 7
      %v251 = vsub.s32 0, %v250
      %v252 = vrot.slane %v248, %v251
      %vm253 = vcmask 523264
      %v255 = vsel %vm253, %v239, 0
      %257 = vmatprep.subr.mxu0 0.0
      %258 = vmatpush1.msra.mxu0 %v240
      %259 = vmatprep.subr.mxu0 0.0
      %260 = vmatpush1.msra.mxu0 %v241
      %261 = vmatprep.subr.mxu0 0.0
      %262 = vmatpush1.msra.mxu0 %v242
      %263 = vmatprep.subr.mxu0 0.0
      %264 = vmatpush1.msra.mxu0 %v243
      %265 = vmatprep.subr.mxu0 0.0
      %266 = vmatpush1.msra.mxu0 %v244
      %267 = vmatprep.subr.mxu0 0.0
      %268 = vmatpush1.msra.mxu0 %v245
      %269 = vmatprep.subr.mxu0 0.0
      %270 = vmatpush1.msra.mxu0 %v246
      %271 = vmatprep.subr.mxu0 0.0
      %272 = vmatpush1.msra.mxu0 %v247
      %273 = vmatprep.subr.mxu0 0.0
      %274 = vmatpush1.msra.mxu0 0.0
      %275 = vmatprep.subr.mxu0 0.0
      %276 = vmatpush1.msra.mxu0 0.0
      %277 = vmatprep.subr.mxu0 0.0
      %278 = vmatpush1.msra.mxu0 0.0
      %279 = vmatprep.subr.mxu0 0.0
      %280 = vmatpush1.msra.mxu0 0.0
      %281 = vmatprep.subr.mxu0 0.0
      %282 = vmatpush1.msra.mxu0 0.0
      %283 = vmatprep.subr.mxu0 0.0
      %284 = vmatpush1.msra.mxu0 0.0
      %285 = vmatprep.subr.mxu0 0.0
      %286 = vmatpush1.msra.mxu0 0.0
      %287 = vmatprep.subr.mxu0 0.0
      %288 = vmatpush1.msra.mxu0 0.0
      %289 = vmatprep.subr.mxu0 0.0
      %290 = vmatpush1.msra.mxu0 0.0
      %291 = vmatprep.subr.mxu0 0.0
      %292 = vmatpush1.msra.mxu0 0.0
      %293 = vmatprep.subr.mxu0 0.0
      %294 = vmatpush1.msra.mxu0 0.0
      %295 = vmatprep.subr.mxu0 0.0
      %296 = vmatpush1.msra.mxu0 0.0
      %297 = vmatprep.subr.mxu0 0.0
      %298 = vmatpush1.msra.mxu0 0.0
      %299 = vmatprep.subr.mxu0 0.0
      %300 = vmatpush1.msra.mxu0 0.0
      %301 = vmatprep.subr.mxu0 0.0
      %302 = vmatpush1.msra.mxu0 0.0
      %303 = vmatprep.subr.mxu0 0.0
      %304 = vmatpush1.msra.mxu0 0.0
      %305 = vmatprep.subr.mxu0 0.0
      %306 = vmatpush1.msra.mxu0 0.0
      %307 = vmatprep.subr.mxu0 0.0
      %308 = vmatpush1.msra.mxu0 0.0
      %309 = vmatprep.subr.mxu0 0.0
      %310 = vmatpush1.msra.mxu0 0.0
      %311 = vmatprep.subr.mxu0 0.0
      %312 = vmatpush1.msra.mxu0 0.0
      %313 = vmatprep.subr.mxu0 0.0
      %314 = vmatpush1.msra.mxu0 0.0
      %315 = vmatprep.subr.mxu0 0.0
      %316 = vmatpush1.msra.mxu0 0.0
      %317 = vmatprep.subr.mxu0 0.0
      %318 = vmatpush1.msra.mxu0 0.0
      %319 = vmatprep.subr.mxu0 0.0
      %320 = vmatpush1.msra.mxu0 0.0
      %321 = vmatprep.mubr.f32.mxu0 0.0
      %322 = vmatmul.mubr.f32.gmra.mrb[0].mxu0 %v255
      %v323 = vpop.f32.mrb[0].mxu0
      %v324 = vadd.f32 %v252, %v323
      %v325 = vpop.f32.mrb[0].mxu0
      %326 = vdwg.mxu0
      %v327 = vsel %vm253, %v324, 0.0
      %v328 = vrot.slane %v327, 4
      %v329 = vadd.f32 %v327, %v328
      %v330 = vrot.slane %v329, 2
      %v331 = vadd.f32 %v329, %v330
      %v332 = vrot.slane %v331, 1
      %v333 = vadd.f32 %v331, %v332
      %335 = vrot.lane.b32.xlu0 %v333, 96
      %v336 = vpop.permute.xlu0 %335
      %v338 = vadd.f32 %v333, %v336
      %v339 = vrcp.pop 16.0
      %v340 = vmul.f32 %v338, %v339
      %342 = vrot.lane.b32.xlu0 %v340, 32
      %v343 = vpop.permute.xlu0 %342
      %vm345 = vcmask 261120
      %v346 = vsel %vm345, %v340, %v343
      %v347 = vlaneseq
      %v348 = vshrl.u32 %v347, 7
      %v349 = vsub.s32 0, %v348
      %v350 = vrot.slane %v346, %v349
      %v351 = vsub.f32 %v324, %v350
      %v352 = vmul.f32 %v351, %v351
      %v353 = vsel %vm253, %v352, 0.0
      %v354 = vrot.slane %v353, 4
      %v355 = vadd.f32 %v353, %v354
      %v356 = vrot.slane %v355, 2
      %v357 = vadd.f32 %v355, %v356
      %v358 = vrot.slane %v357, 1
      %v359 = vadd.f32 %v357, %v358
      %361 = vrot.lane.b32.xlu0 %v359, 96
      %v362 = vpop.permute.xlu0 %361
      %v364 = vadd.f32 %v359, %v362
      %v365 = vmul.f32 %v364, %v339
      %v366 = vadd.f32 %v365, 1e-05
      %v367 = vrsqrt.pop %v366
      %369 = vrot.lane.b32.xlu0 %v367, 32
      %v370 = vpop.permute.xlu0 %369
      %v372 = vsel %vm345, %v367, %v370
      %v373 = vlaneseq
      %v374 = vshrl.u32 %v373, 7
      %v375 = vsub.s32 0, %v374
      %v376 = vrot.slane %v372, %v375
      %v377 = vmul.f32 %v351, %v376
      %v378 = vld [vmem:[%s230 + $0x1] sm:$0x1]
      %v379 = vlaneseq
      %v380 = vshrl.u32 %v379, 7
      %v381 = vsub.s32 0, %v380
      %v382 = vrot.slane %v378, %v381
      %v383 = vmul.f32 %v377, %v382
      %v384 = vld [vmem:[%s230 + $0x2] sm:$0x1]
      %v385 = vlaneseq
      %v386 = vshrl.u32 %v385, 7
      %v387 = vsub.s32 0, %v386
      %v388 = vrot.slane %v384, %v387
      %v389 = vadd.f32 %v383, %v388
      %v390 = vmax.f32 %v389, 0.0
      %391 = vst.msk [vmem:[%s238] sm:$0xff] %vm253, %v390
      %p392 = scmp.lt.s32.totalorder %s18, 3
      %s393 = scalar_select %p392, %s18, 3
      %p394 = scmp.lt.s32.totalorder %s19, 1
      %s395 = scalar_select %p394, %s19, 1
      %s396 = smul.addr %s393, 2
      %s397 = sadd.s32 %s395, %s396
      %s398 = smul.addr %s397, 8
      %s399 = scalar_lea.vmem %s3, %s398
      // Predicated region
      $region33: #{muse_generator_forward.12} parent=31 // pred_check
        %p400 = pneg %p126
      $region34: #{muse_generator_forward.12} parent=31 // pred_check_branch
        %402 = sbr.rel (%p400) target = $region36
      $region35: #{muse_generator_forward.12} parent=31 // pred_region
        _
      $region36: #{muse_generator_forward.12} parent=31 // pred_fallthru
        _
    $region32: #{muse_generator_forward.12} parent=5 // pred_fallthru
      _
    %p403 = scmp.le.s32.totalorder 2, %s9
    // Predicated region
    $region37: #{muse_generator_forward.12} parent=5 // pred_check
      %p404 = pneg %p403
    $region38: #{muse_generator_forward.12} parent=5 // pred_check_branch
      %406 = sbr.rel (%p404) target = $region40
    $region39: #{muse_generator_forward.12} parent=5 // pred_region
      %s407 = ssub.s32 %s9, 2
      // Predicated region
      $region41: #{muse_generator_forward.12} parent=39 // pred_check
        %p408 = pneg %p132
      $region42: #{muse_generator_forward.12} parent=39 // pred_check_branch
        %410 = sbr.rel (%p408) target = $region44
      $region43: #{muse_generator_forward.12} parent=39 // pred_region
        %p411 = scmp.lt.s32.totalorder %s20, 3
        %s412 = scalar_select %p411, %s20, 3
        %p413 = scmp.lt.s32.totalorder %s21, 1
        %s414 = scalar_select %p413, %s21, 1
        %s415 = smul.addr %s412, 2
        %s416 = sadd.s32 %s414, %s415
        %s417 = smul.addr %s416, 8
        %s418 = scalar_lea.vmem %s3, %s417
      $region44: #{muse_generator_forward.12} parent=39 // pred_fallthru
        _
    $region40: #{muse_generator_forward.12} parent=5 // pred_fallthru
      _
  $region6: #{muse_generator_forward.12} parent=0 // loop_footer
    %s13 = sadd.s32 1, %s9
  $region7: #{muse_generator_forward.12} parent=0 // loop_footer_branch
    %8 = sbr.rel target = $region3
  $region8: #{muse_generator_forward.12} parent=0 // loop_exit
    _

// kernel: muse_generator_forward.13
$region0: #{muse_generator_forward.13}
  #allocation0 [shape = 'u32[]', space=smem, size = 0x4, offset = 0x4, fixed_abs, tag = 'smem constant byte address 0x4 - core index']
  #allocation1 [shape = 'u32[144,128]{1,0:T(1,128)}', space=vmem, size = 0x12000, scoped, tag = 'internal scratch']
  %s0 = inlined_call_operand.vmem [shape: f32[4,2,16,32], index: 0, kind: input, shape index: {}]
  %s1 = inlined_call_operand.vmem [shape: f32[4,32,64], index: 1, kind: input, shape index: {}]
  %s2 = inlined_call_operand.vmem [shape: f32[4,3,64], index: 2, kind: input, shape index: {}]
  %s3 = inlined_call_operand.vmem [shape: f32[4,2,16,64], index: 3, kind: output, shape index: {}]
  %s4 = sld [smem:[#allocation0]]
  $region45: #{muse_generator_forward.13} parent=0
    _
  %s6 = ssub.s32 1, %s4
  %s7 = scalar_select 0, %s6, %s4
  loop: start=0, step=1, limit=10
  $region2: #{muse_generator_forward.13} parent=0 // loop_pre_header
    _
  $region3: #{muse_generator_forward.13} parent=0 // loop_header
    %s9 = sphi 0, %s13
    %p10 = scmp.ge.s32.totalorder %s9, 10
    %s16 = sphi 0, %s28
    %s17 = sphi 0, %s24
    %s18 = sphi 0, %s16
    %s19 = sphi 0, %s17
    %s20 = sphi 0, %s18
    %s21 = sphi 0, %s19
    %s33 = sphi 0, %s35
    %s36 = sphi 0, %s33
    %s37 = sphi 0, %s36
    %s53 = sphi 0, %s37
    %s59 = sphi 0, %s61
    %s62 = sphi 0, %s59
    %s63 = sphi 0, %s62
    %s79 = sphi 0, %s63
    %s85 = sphi 0, %s87
    %s88 = sphi 0, %s85
    %s89 = sphi 0, %s88
    %s105 = sphi 0, %s89
    %s113 = sphi 0, %s115
    %s116 = sphi 0, %s113
    %s117 = sphi 0, %s116
    %s133 = sphi 0, %s117
  $region4: #{muse_generator_forward.13} parent=0 // loop_header_branch
    %12 = sbr.rel (%p10) target = $region8
  $region5: #{muse_generator_forward.13} parent=0 // loop_body
    %s14 = ssub.s32 %s9, 1
    %s15 = ssub.s32 %s9, 2
    %s22 = sadd.s32 1, %s17
    %p23 = scmp.ge.s32.totalorder %s22, 2
    %s24 = scalar_select %p23, 0, %s22
    %s25 = sadd.s32 1, %s16
    %s26 = scalar_select %p23, %s25, %s16
    %p27 = scmp.ge.s32.totalorder %s26, 4
    %s28 = scalar_select %p27, 0, %s26
    %s29 = ssub.s32 %s16, %s28
    %s30 = ssub.s32 %s17, %s24
    %s31 = sor.u32 %s29, %s30
    %p32 = scmp.eq.s32.totalorder %s31, 0
    %s34 = sadd.s32 %s33, 1
    %s35 = scalar_select %p32, %s33, %s34
    %p38 = pneg %p32
    %p39 = scmp.eq.s32.totalorder %s9, 7
    %p40 = por %p38, %p39
    %p41 = scmp.ne.s32.totalorder %s33, %s36
    %p42 = scmp.eq.s32.totalorder %s9, 0
    %p43 = por %p41, %p42
    %p44 = scmp.ne.s32.totalorder %s33, %s36
    %p45 = scmp.eq.s32.totalorder %s14, 7
    %p46 = por %p44, %p45
    %p47 = scmp.ne.s32.totalorder %s36, %s37
    %p48 = scmp.eq.s32.totalorder %s14, 0
    %p49 = por %p47, %p48
    %p50 = scmp.ne.s32.totalorder %s36, %s37
    %p51 = scmp.eq.s32.totalorder %s15, 7
    %p52 = por %p50, %p51
    %p54 = scmp.ne.s32.totalorder %s37, %s53
    %p55 = scmp.eq.s32.totalorder %s15, 0
    %p56 = por %p54, %p55
    %s57 = ssub.s32 %s16, %s28
    %p58 = scmp.eq.s32.totalorder %s57, 0
    %s60 = sadd.s32 %s59, 1
    %s61 = scalar_select %p58, %s59, %s60
    %p64 = pneg %p58
    %p65 = scmp.eq.s32.totalorder %s9, 7
    %p66 = por %p64, %p65
    %p67 = scmp.ne.s32.totalorder %s59, %s62
    %p68 = scmp.eq.s32.totalorder %s9, 0
    %p69 = por %p67, %p68
    %p70 = scmp.ne.s32.totalorder %s59, %s62
    %p71 = scmp.eq.s32.totalorder %s14, 7
    %p72 = por %p70, %p71
    %p73 = scmp.ne.s32.totalorder %s62, %s63
    %p74 = scmp.eq.s32.totalorder %s14, 0
    %p75 = por %p73, %p74
    %p76 = scmp.ne.s32.totalorder %s62, %s63
    %p77 = scmp.eq.s32.totalorder %s15, 7
    %p78 = por %p76, %p77
    %p80 = scmp.ne.s32.totalorder %s63, %s79
    %p81 = scmp.eq.s32.totalorder %s15, 0
    %p82 = por %p80, %p81
    %s83 = ssub.s32 %s16, %s28
    %p84 = scmp.eq.s32.totalorder %s83, 0
    %s86 = sadd.s32 %s85, 1
    %s87 = scalar_select %p84, %s85, %s86
    %p90 = pneg %p84
    %p91 = scmp.eq.s32.totalorder %s9, 7
    %p92 = por %p90, %p91
    %p93 = scmp.ne.s32.totalorder %s85, %s88
    %p94 = scmp.eq.s32.totalorder %s9, 0
    %p95 = por %p93, %p94
    %p96 = scmp.ne.s32.totalorder %s85, %s88
    %p97 = scmp.eq.s32.totalorder %s14, 7
    %p98 = por %p96, %p97
    %p99 = scmp.ne.s32.totalorder %s88, %s89
    %p100 = scmp.eq.s32.totalorder %s14, 0
    %p101 = por %p99, %p100
    %p102 = scmp.ne.s32.totalorder %s88, %s89
    %p103 = scmp.eq.s32.totalorder %s15, 7
    %p104 = por %p102, %p103
    %p106 = scmp.ne.s32.totalorder %s89, %s105
    %p107 = scmp.eq.s32.totalorder %s15, 0
    %p108 = por %p106, %p107
    %s109 = ssub.s32 %s16, %s28
    %s110 = ssub.s32 %s17, %s24
    %s111 = sor.u32 %s109, %s110
    %p112 = scmp.eq.s32.totalorder %s111, 0
    %s114 = sadd.s32 %s113, 1
    %s115 = scalar_select %p112, %s113, %s114
    %p118 = pneg %p112
    %p119 = scmp.eq.s32.totalorder %s9, 7
    %p120 = por %p118, %p119
    %p121 = scmp.ne.s32.totalorder %s113, %s116
    %p122 = scmp.eq.s32.totalorder %s9, 0
    %p123 = por %p121, %p122
    %p124 = scmp.ne.s32.totalorder %s113, %s116
    %p125 = scmp.eq.s32.totalorder %s14, 7
    %p126 = por %p124, %p125
    %p127 = scmp.ne.s32.totalorder %s116, %s117
    %p128 = scmp.eq.s32.totalorder %s14, 0
    %p129 = por %p127, %p128
    %p130 = scmp.ne.s32.totalorder %s116, %s117
    %p131 = scmp.eq.s32.totalorder %s15, 7
    %p132 = por %p130, %p131
    %p134 = scmp.ne.s32.totalorder %s117, %s133
    %p135 = scmp.eq.s32.totalorder %s15, 0
    %p136 = por %p134, %p135
    %p137 = scmp.le.s32.totalorder 1, %s9
    %p138 = scmp.lt.s32.totalorder %s9, 9
    %p139 = pnand %p137, %p138
    %p140 = pneg %p139
    // Predicated region
    $region9: #{muse_generator_forward.13} parent=5 // pred_check
      _
    $region10: #{muse_generator_forward.13} parent=5 // pred_check_branch
      %142 = sbr.rel (%p139) target = $region12
    $region11: #{muse_generator_forward.13} parent=5 // pred_region
      %s143 = ssub.s32 %s9, 1
    $region12: #{muse_generator_forward.13} parent=5 // pred_fallthru
      _
    %p144 = scmp.lt.s32.totalorder %s9, 8
    // Predicated region
    $region13: #{muse_generator_forward.13} parent=5 // pred_check
      %p145 = pneg %p144
    $region14: #{muse_generator_forward.13} parent=5 // pred_check_branch
      %147 = sbr.rel (%p145) target = $region16
    $region15: #{muse_generator_forward.13} parent=5 // pred_region
      // Predicated region
      $region17: #{muse_generator_forward.13} parent=15 // pred_check
        %p148 = pneg %p43
      $region18: #{muse_generator_forward.13} parent=15 // pred_check_branch
        %150 = sbr.rel (%p148) target = $region20
      $region19: #{muse_generator_forward.13} parent=15 // pred_region
        %p151 = scmp.lt.s32.totalorder %s16, 3
        %s152 = scalar_select %p151, %s16, 3
        %p153 = scmp.lt.s32.totalorder %s17, 1
        %s154 = scalar_select %p153, %s17, 1
        %s155 = smul.addr %s154, 2
        %s156 = smul.addr %s152, 4
        %s157 = sadd.s32 %s155, %s156
        %s158 = smul.addr %s157, 8
        %s159 = scalar_lea.vmem %s0, %s158
      $region20: #{muse_generator_forward.13} parent=15 // pred_fallthru
        _
      // Predicated region
      $region21: #{muse_generator_forward.13} parent=15 // pred_check
        %p160 = pneg %p69
      $region22: #{muse_generator_forward.13} parent=15 // pred_check_branch
        %162 = sbr.rel (%p160) target = $region24
      $region23: #{muse_generator_forward.13} parent=15 // pred_region
        %p163 = scmp.lt.s32.totalorder %s16, 3
        %s164 = scalar_select %p163, %s16, 3
        %s165 = smul.addr %s164, 4
        %s166 = smul.addr %s165, 8
        %s167 = scalar_lea.vmem %s1, %s166
      $region24: #{muse_generator_forward.13} parent=15 // pred_fallthru
        _
      // Predicated region
      $region25: #{muse_generator_forward.13} parent=15 // pred_check
        %p168 = pneg %p95
      $region26: #{muse_generator_forward.13} parent=15 // pred_check_branch
        %170 = sbr.rel (%p168) target = $region28
      $region27: #{muse_generator_forward.13} parent=15 // pred_region
        %p171 = scmp.lt.s32.totalorder %s16, 3
        %s172 = scalar_select %p171, %s16, 3
        %s173 = smul.addr %s172, 4
        %s174 = scalar_lea.vmem %s2, %s173
      $region28: #{muse_generator_forward.13} parent=15 // pred_fallthru
        _
    $region16: #{muse_generator_forward.13} parent=5 // pred_fallthru
      _
    %p175 = scmp.le.s32.totalorder 1, %s9
    %p176 = scmp.lt.s32.totalorder %s9, 9
    %p177 = pnand %p175, %p176
    %p178 = pneg %p177
    // Predicated region
    $region29: #{muse_generator_forward.13} parent=5 // pred_check
      _
    $region30: #{muse_generator_forward.13} parent=5 // pred_check_branch
      %180 = sbr.rel (%p177) target = $region32
    $region31: #{muse_generator_forward.13} parent=5 // pred_region
      %s181 = ssub.s32 %s9, 1
      %p182 = scmp.lt.s32.totalorder %s18, 3
      %s183 = scalar_select %p182, %s18, 3
      %p184 = scmp.lt.s32.totalorder %s19, 1
      %s185 = scalar_select %p184, %s19, 1
      %s186 = smul.addr %s185, 2
      %s187 = smul.addr %s183, 4
      %s188 = sadd.s32 %s186, %s187
      %s189 = smul.addr %s188, 8
      %s190 = scalar_lea.vmem %s0, %s189
      %p191 = pneg %p49
      %p192 = pneg %p46
      %p193 = scmp.lt.s32.totalorder %s18, 3
      %s194 = scalar_select %p193, %s18, 3
      %s195 = smul.addr %s194, 4
      %s196 = smul.addr %s195, 8
      %s197 = scalar_lea.vmem %s1, %s196
      %p198 = pneg %p75
      %p199 = pneg %p72
      %p200 = scmp.lt.s32.totalorder %s18, 3
      %s201 = scalar_select %p200, %s18, 3
      %s202 = smul.addr %s201, 4
      %s203 = scalar_lea.vmem %s2, %s202
      %p204 = pneg %p101
      %p205 = pneg %p98
      %p206 = pneg %p129
      %p207 = pneg %p126
      %p208 = scmp.lt.s32.totalorder %s18, 3
      %s209 = scalar_select %p208, %s18, 3
      %p210 = scmp.lt.s32.totalorder %s19, 1
      %s211 = scalar_select %p210, %s19, 1
      %s212 = smul.addr %s211, 2
      %s213 = smul.addr %s209, 4
      %s214 = sadd.s32 %s212, %s213
      %s215 = smul.addr %s214, 8
      %s216 = scalar_lea.vmem %s3, %s215
      %p217 = scmp.lt.s32.totalorder %s18, 3
      %s218 = scalar_select %p217, %s18, 3
      %p219 = scmp.lt.s32.totalorder %s19, 1
      %s220 = scalar_select %p219, %s19, 1
      %s221 = smul.addr %s220, 2
      %s222 = smul.addr %s218, 4
      %s223 = sadd.s32 %s221, %s222
      %s224 = smul.addr %s223, 8
      %s225 = scalar_lea.vmem %s0, %s224
      %p226 = scmp.lt.s32.totalorder %s18, 3
      %s227 = scalar_select %p226, %s18, 3
      %s228 = smul.addr %s227, 4
      %s229 = smul.addr %s228, 8
      %s230 = scalar_lea.vmem %s1, %s229
      %p231 = scmp.lt.s32.totalorder %s18, 3
      %s232 = scalar_select %p231, %s18, 3
      %s233 = smul.addr %s232, 4
      %s234 = scalar_lea.vmem %s2, %s233
      %p235 = scmp.lt.s32.totalorder %s18, 3
      %s236 = scalar_select %p235, %s18, 3
      %p237 = scmp.lt.s32.totalorder %s19, 1
      %s238 = scalar_select %p237, %s19, 1
      %s239 = smul.addr %s238, 2
      %s240 = smul.addr %s236, 4
      %s241 = sadd.s32 %s239, %s240
      %s242 = smul.addr %s241, 8
      %s243 = scalar_lea.vmem %s3, %s242
      %v244 = vld [vmem:[%s225] sm:$0xff]
      %v245 = vld [vmem:[%s225 + $0x8] sm:$0xff]
      %v246 = vld [vmem:[%s230] sm:$0xff]
      %v247 = vld [vmem:[%s230 + $0x8] sm:$0xff]
      %v248 = vld [vmem:[%s230 + $0x10] sm:$0xff]
      %v249 = vld [vmem:[%s230 + $0x18] sm:$0xff]
      %v250 = vld [vmem:[%s234] sm:$0x1]
      %v251 = vlaneseq
      %v252 = vshrl.u32 %v251, 7
      %v253 = vsub.s32 0, %v252
      %v254 = vrot.slane %v250, %v253
      %vm255 = vcmask 261120
      %v257 = vsel %vm255, %v244, 0
      %v260 = vsel %vm255, %v245, 0
      %262 = vmatprep.subr.mxu0 0.0
      %263 = vmatpush1.msra.mxu0 %v246
      %264 = vmatprep.subr.mxu0 0.0
      %265 = vmatpush1.msra.mxu0 %v247
      %266 = vmatprep.subr.mxu0 0.0
      %267 = vmatpush1.msra.mxu0 %v248
      %268 = vmatprep.subr.mxu0 0.0
      %269 = vmatpush1.msra.mxu0 %v249
      %270 = vmatprep.subr.mxu0 0.0
      %271 = vmatpush1.msra.mxu0 0.0
      %272 = vmatprep.subr.mxu0 0.0
      %273 = vmatpush1.msra.mxu0 0.0
      %274 = vmatprep.subr.mxu0 0.0
      %275 = vmatpush1.msra.mxu0 0.0
      %276 = vmatprep.subr.mxu0 0.0
      %277 = vmatpush1.msra.mxu0 0.0
      %278 = vmatprep.subr.mxu0 0.0
      %279 = vmatpush1.msra.mxu0 0.0
      %280 = vmatprep.subr.mxu0 0.0
      %281 = vmatpush1.msra.mxu0 0.0
      %282 = vmatprep.subr.mxu0 0.0
      %283 = vmatpush1.msra.mxu0 0.0
      %284 = vmatprep.subr.mxu0 0.0
      %285 = vmatpush1.msra.mxu0 0.0
      %286 = vmatprep.subr.mxu0 0.0
      %287 = vmatpush1.msra.mxu0 0.0
      %288 = vmatprep.subr.mxu0 0.0
      %289 = vmatpush1.msra.mxu0 0.0
      %290 = vmatprep.subr.mxu0 0.0
      %291 = vmatpush1.msra.mxu0 0.0
      %292 = vmatprep.subr.mxu0 0.0
      %293 = vmatpush1.msra.mxu0 0.0
      %294 = vmatprep.subr.mxu0 0.0
      %295 = vmatpush1.msra.mxu0 0.0
      %296 = vmatprep.subr.mxu0 0.0
      %297 = vmatpush1.msra.mxu0 0.0
      %298 = vmatprep.subr.mxu0 0.0
      %299 = vmatpush1.msra.mxu0 0.0
      %300 = vmatprep.subr.mxu0 0.0
      %301 = vmatpush1.msra.mxu0 0.0
      %302 = vmatprep.subr.mxu0 0.0
      %303 = vmatpush1.msra.mxu0 0.0
      %304 = vmatprep.subr.mxu0 0.0
      %305 = vmatpush1.msra.mxu0 0.0
      %306 = vmatprep.subr.mxu0 0.0
      %307 = vmatpush1.msra.mxu0 0.0
      %308 = vmatprep.subr.mxu0 0.0
      %309 = vmatpush1.msra.mxu0 0.0
      %310 = vmatprep.subr.mxu0 0.0
      %311 = vmatpush1.msra.mxu0 0.0
      %312 = vmatprep.subr.mxu0 0.0
      %313 = vmatpush1.msra.mxu0 0.0
      %314 = vmatprep.subr.mxu0 0.0
      %315 = vmatpush1.msra.mxu0 0.0
      %316 = vmatprep.subr.mxu0 0.0
      %317 = vmatpush1.msra.mxu0 0.0
      %318 = vmatprep.subr.mxu0 0.0
      %319 = vmatpush1.msra.mxu0 0.0
      %320 = vmatprep.subr.mxu0 0.0
      %321 = vmatpush1.msra.mxu0 0.0
      %322 = vmatprep.subr.mxu0 0.0
      %323 = vmatpush1.msra.mxu0 0.0
      %324 = vmatprep.subr.mxu0 0.0
      %325 = vmatpush1.msra.mxu0 0.0
      %326 = vmatprep.mubr.f32.mxu0 0.0
      %327 = vmatmul.mubr.f32.gmra.mrb[0].mxu0 %v257
      %v328 = vpop.f32.mrb[0].mxu0
      %v329 = vadd.f32 %v254, %v328
      %v330 = vpop.f32.mrb[0].mxu0
      %331 = vmatprep.mubr.f32.mxu0 0.0
      %332 = vmatmul.mubr.f32.gmra.mrb[0].mxu0 %v260
      %v333 = vpop.f32.mrb[0].mxu0
      %v334 = vadd.f32 %v254, %v333
      %v335 = vpop.f32.mrb[0].mxu0
      %336 = vdwg.mxu0
      %vm337 = vcmask 523264
      %v338 = vsel %vm337, %v329, 0.0
      %v339 = vsel %vm337, %v334, 0.0
      %v340 = vadd.f32 %v338, %v339
      %v341 = vrot.slane %v340, 4
      %v342 = vadd.f32 %v340, %v341
      %v343 = vrot.slane %v342, 2
      %v344 = vadd.f32 %v342, %v343
      %v345 = vrot.slane %v344, 1
      %v346 = vadd.f32 %v344, %v345
      %348 = vrot.lane.b32.xlu0 %v346, 96
      %v349 = vpop.permute.xlu0 %348
      %v351 = vadd.f32 %v346, %v349
      %v352 = vrcp.pop 32.0
      %v353 = vmul.f32 %v351, %v352
      %355 = vrot.lane.b32.xlu0 %v353, 32
      %v356 = vpop.permute.xlu0 %355
      %v358 = vsel %vm255, %v353, %v356
      %v359 = vlaneseq
      %v360 = vshrl.u32 %v359, 7
      %v361 = vsub.s32 0, %v360
      %v362 = vrot.slane %v358, %v361
      %v363 = vsub.f32 %v329, %v362
      %v364 = vsub.f32 %v334, %v362
      %v365 = vmul.f32 %v363, %v363
      %v366 = vmul.f32 %v364, %v364
      %v367 = vsel %vm337, %v365, 0.0
      %v368 = vsel %vm337, %v366, 0.0
      %v369 = vadd.f32 %v367, %v368
      %v370 = vrot.slane %v369, 4
      %v371 = vadd.f32 %v369, %v370
      %v372 = vrot.slane %v371, 2
      %v373 = vadd.f32 %v371, %v372
      %v374 = vrot.slane %v373, 1
      %v375 = vadd.f32 %v373, %v374
      %377 = vrot.lane.b32.xlu0 %v375, 96
      %v378 = vpop.permute.xlu0 %377
      %v380 = vadd.f32 %v375, %v378
      %v381 = vmul.f32 %v380, %v352
      %v382 = vadd.f32 %v381, 1e-05
      %v383 = vrsqrt.pop %v382
      %385 = vrot.lane.b32.xlu0 %v383, 32
      %v386 = vpop.permute.xlu0 %385
      %v388 = vsel %vm255, %v383, %v386
      %v389 = vlaneseq
      %v390 = vshrl.u32 %v389, 7
      %v391 = vsub.s32 0, %v390
      %v392 = vrot.slane %v388, %v391
      %v393 = vmul.f32 %v363, %v392
      %v394 = vmul.f32 %v364, %v392
      %v395 = vld [vmem:[%s234 + $0x1] sm:$0x1]
      %v396 = vlaneseq
      %v397 = vshrl.u32 %v396, 7
      %v398 = vsub.s32 0, %v397
      %v399 = vrot.slane %v395, %v398
      %v400 = vmul.f32 %v393, %v399
      %v401 = vmul.f32 %v394, %v399
      %v402 = vld [vmem:[%s234 + $0x2] sm:$0x1]
      %v403 = vlaneseq
      %v404 = vshrl.u32 %v403, 7
      %v405 = vsub.s32 0, %v404
      %v406 = vrot.slane %v402, %v405
      %v407 = vadd.f32 %v400, %v406
      %v408 = vadd.f32 %v401, %v406
      %v409 = vmax.f32 %v407, 0.0
      %v410 = vmax.f32 %v408, 0.0
      %411 = vst.msk [vmem:[%s243] sm:$0xff] %vm337, %v409
      %412 = vst.msk [vmem:[%s243 + $0x8] sm:$0xff] %vm337, %v410
      %p413 = scmp.lt.s32.totalorder %s18, 3
      %s414 = scalar_select %p413, %s18, 3
      %p415 = scmp.lt.s32.totalorder %s19, 1
      %s416 = scalar_select %p415, %s19, 1
      %s417 = smul.addr %s416, 2
      %s418 = smul.addr %s414, 4
      %s419 = sadd.s32 %s417, %s418
      %s420 = smul.addr %s419, 8
      %s421 = scalar_lea.vmem %s3, %s420
      // Predicated region
      $region33: #{muse_generator_forward.13} parent=31 // pred_check
        %p422 = pneg %p126
      $region34: #{muse_generator_forward.13} parent=31 // pred_check_branch
        %424 = sbr.rel (%p422) target = $region36
      $region35: #{muse_generator_forward.13} parent=31 // pred_region
        _
      $region36: #{muse_generator_forward.13} parent=31 // pred_fallthru
        _
    $region32: #{muse_generator_forward.13} parent=5 // pred_fallthru
      _
    %p425 = scmp.le.s32.totalorder 2, %s9
    // Predicated region
    $region37: #{muse_generator_forward.13} parent=5 // pred_check
      %p426 = pneg %p425
    $region38: #{muse_generator_forward.13} parent=5 // pred_check_branch
      %428 = sbr.rel (%p426) target = $region40
    $region39: #{muse_generator_forward.13} parent=5 // pred_region
      %s429 = ssub.s32 %s9, 2
      // Predicated region
      $region41: #{muse_generator_forward.13} parent=39 // pred_check
        %p430 = pneg %p132
      $region42: #{muse_generator_forward.13} parent=39 // pred_check_branch
        %432 = sbr.rel (%p430) target = $region44
      $region43: #{muse_generator_forward.13} parent=39 // pred_region
        %p433 = scmp.lt.s32.totalorder %s20, 3
        %s434 = scalar_select %p433, %s20, 3
        %p435 = scmp.lt.s32.totalorder %s21, 1
        %s436 = scalar_select %p435, %s21, 1
        %s437 = smul.addr %s436, 2
        %s438 = smul.addr %s434, 4
        %s439 = sadd.s32 %s437, %s438
        %s440 = smul.addr %s439, 8
        %s441 = scalar_lea.vmem %s3, %s440
      $region44: #{muse_generator_forward.13} parent=39 // pred_fallthru
        _
    $region40: #{muse_generator_forward.13} parent=5 // pred_fallthru
      _
  $region6: #{muse_generator_forward.13} parent=0 // loop_footer
    %s13 = sadd.s32 1, %s9
  $region7: #{muse_generator_forward.13} parent=0 // loop_footer_branch
    %8 = sbr.rel target = $region3
  $region8: #{muse_generator_forward.13} parent=0 // loop_exit
    _

// kernel: muse_generator_forward.14
$region0: #{muse_generator_forward.14}
  #allocation0 [shape = 'u32[]', space=smem, size = 0x4, offset = 0x4, fixed_abs, tag = 'smem constant byte address 0x4 - core index']
  #allocation1 [shape = 'u32[144,128]{1,0:T(1,128)}', space=vmem, size = 0x12000, scoped, tag = 'internal scratch']
  %s0 = inlined_call_operand.vmem [shape: f32[4,2,32,32], index: 0, kind: input, shape index: {}]
  %s1 = inlined_call_operand.vmem [shape: f32[4,32,224], index: 1, kind: input, shape index: {}]
  %s2 = inlined_call_operand.vmem [shape: f32[4,3,224], index: 2, kind: input, shape index: {}]
  %s3 = inlined_call_operand.vmem [shape: f32[4,2,32,224], index: 3, kind: output, shape index: {}]
  %s4 = sld [smem:[#allocation0]]
  $region45: #{muse_generator_forward.14} parent=0
    _
  %s6 = ssub.s32 1, %s4
  %s7 = scalar_select 0, %s6, %s4
  loop: start=0, step=1, limit=10
  $region2: #{muse_generator_forward.14} parent=0 // loop_pre_header
    _
  $region3: #{muse_generator_forward.14} parent=0 // loop_header
    %s9 = sphi 0, %s13
    %p10 = scmp.ge.s32.totalorder %s9, 10
    %s16 = sphi 0, %s28
    %s17 = sphi 0, %s24
    %s18 = sphi 0, %s16
    %s19 = sphi 0, %s17
    %s20 = sphi 0, %s18
    %s21 = sphi 0, %s19
    %s33 = sphi 0, %s35
    %s36 = sphi 0, %s33
    %s37 = sphi 0, %s36
    %s53 = sphi 0, %s37
    %s59 = sphi 0, %s61
    %s62 = sphi 0, %s59
    %s63 = sphi 0, %s62
    %s79 = sphi 0, %s63
    %s85 = sphi 0, %s87
    %s88 = sphi 0, %s85
    %s89 = sphi 0, %s88
    %s105 = sphi 0, %s89
    %s113 = sphi 0, %s115
    %s116 = sphi 0, %s113
    %s117 = sphi 0, %s116
    %s133 = sphi 0, %s117
  $region4: #{muse_generator_forward.14} parent=0 // loop_header_branch
    %12 = sbr.rel (%p10) target = $region8
  $region5: #{muse_generator_forward.14} parent=0 // loop_body
    %s14 = ssub.s32 %s9, 1
    %s15 = ssub.s32 %s9, 2
    %s22 = sadd.s32 1, %s17
    %p23 = scmp.ge.s32.totalorder %s22, 2
    %s24 = scalar_select %p23, 0, %s22
    %s25 = sadd.s32 1, %s16
    %s26 = scalar_select %p23, %s25, %s16
    %p27 = scmp.ge.s32.totalorder %s26, 4
    %s28 = scalar_select %p27, 0, %s26
    %s29 = ssub.s32 %s16, %s28
    %s30 = ssub.s32 %s17, %s24
    %s31 = sor.u32 %s29, %s30
    %p32 = scmp.eq.s32.totalorder %s31, 0
    %s34 = sadd.s32 %s33, 1
    %s35 = scalar_select %p32, %s33, %s34
    %p38 = pneg %p32
    %p39 = scmp.eq.s32.totalorder %s9, 7
    %p40 = por %p38, %p39
    %p41 = scmp.ne.s32.totalorder %s33, %s36
    %p42 = scmp.eq.s32.totalorder %s9, 0
    %p43 = por %p41, %p42
    %p44 = scmp.ne.s32.totalorder %s33, %s36
    %p45 = scmp.eq.s32.totalorder %s14, 7
    %p46 = por %p44, %p45
    %p47 = scmp.ne.s32.totalorder %s36, %s37
    %p48 = scmp.eq.s32.totalorder %s14, 0
    %p49 = por %p47, %p48
    %p50 = scmp.ne.s32.totalorder %s36, %s37
    %p51 = scmp.eq.s32.totalorder %s15, 7
    %p52 = por %p50, %p51
    %p54 = scmp.ne.s32.totalorder %s37, %s53
    %p55 = scmp.eq.s32.totalorder %s15, 0
    %p56 = por %p54, %p55
    %s57 = ssub.s32 %s16, %s28
    %p58 = scmp.eq.s32.totalorder %s57, 0
    %s60 = sadd.s32 %s59, 1
    %s61 = scalar_select %p58, %s59, %s60
    %p64 = pneg %p58
    %p65 = scmp.eq.s32.totalorder %s9, 7
    %p66 = por %p64, %p65
    %p67 = scmp.ne.s32.totalorder %s59, %s62
    %p68 = scmp.eq.s32.totalorder %s9, 0
    %p69 = por %p67, %p68
    %p70 = scmp.ne.s32.totalorder %s59, %s62
    %p71 = scmp.eq.s32.totalorder %s14, 7
    %p72 = por %p70, %p71
    %p73 = scmp.ne.s32.totalorder %s62, %s63
    %p74 = scmp.eq.s32.totalorder %s14, 0
    %p75 = por %p73, %p74
    %p76 = scmp.ne.s32.totalorder %s62, %s63
    %p77 = scmp.eq.s32.totalorder %s15, 7
    %p78 = por %p76, %p77
    %p80 = scmp.ne.s32.totalorder %s63, %s79
    %p81 = scmp.eq.s32.totalorder %s15, 0
    %p82 = por %p80, %p81
    %s83 = ssub.s32 %s16, %s28
    %p84 = scmp.eq.s32.totalorder %s83, 0
    %s86 = sadd.s32 %s85, 1
    %s87 = scalar_select %p84, %s85, %s86
    %p90 = pneg %p84
    %p91 = scmp.eq.s32.totalorder %s9, 7
    %p92 = por %p90, %p91
    %p93 = scmp.ne.s32.totalorder %s85, %s88
    %p94 = scmp.eq.s32.totalorder %s9, 0
    %p95 = por %p93, %p94
    %p96 = scmp.ne.s32.totalorder %s85, %s88
    %p97 = scmp.eq.s32.totalorder %s14, 7
    %p98 = por %p96, %p97
    %p99 = scmp.ne.s32.totalorder %s88, %s89
    %p100 = scmp.eq.s32.totalorder %s14, 0
    %p101 = por %p99, %p100
    %p102 = scmp.ne.s32.totalorder %s88, %s89
    %p103 = scmp.eq.s32.totalorder %s15, 7
    %p104 = por %p102, %p103
    %p106 = scmp.ne.s32.totalorder %s89, %s105
    %p107 = scmp.eq.s32.totalorder %s15, 0
    %p108 = por %p106, %p107
    %s109 = ssub.s32 %s16, %s28
    %s110 = ssub.s32 %s17, %s24
    %s111 = sor.u32 %s109, %s110
    %p112 = scmp.eq.s32.totalorder %s111, 0
    %s114 = sadd.s32 %s113, 1
    %s115 = scalar_select %p112, %s113, %s114
    %p118 = pneg %p112
    %p119 = scmp.eq.s32.totalorder %s9, 7
    %p120 = por %p118, %p119
    %p121 = scmp.ne.s32.totalorder %s113, %s116
    %p122 = scmp.eq.s32.totalorder %s9, 0
    %p123 = por %p121, %p122
    %p124 = scmp.ne.s32.totalorder %s113, %s116
    %p125 = scmp.eq.s32.totalorder %s14, 7
    %p126 = por %p124, %p125
    %p127 = scmp.ne.s32.totalorder %s116, %s117
    %p128 = scmp.eq.s32.totalorder %s14, 0
    %p129 = por %p127, %p128
    %p130 = scmp.ne.s32.totalorder %s116, %s117
    %p131 = scmp.eq.s32.totalorder %s15, 7
    %p132 = por %p130, %p131
    %p134 = scmp.ne.s32.totalorder %s117, %s133
    %p135 = scmp.eq.s32.totalorder %s15, 0
    %p136 = por %p134, %p135
    %p137 = scmp.le.s32.totalorder 1, %s9
    %p138 = scmp.lt.s32.totalorder %s9, 9
    %p139 = pnand %p137, %p138
    %p140 = pneg %p139
    // Predicated region
    $region9: #{muse_generator_forward.14} parent=5 // pred_check
      _
    $region10: #{muse_generator_forward.14} parent=5 // pred_check_branch
      %142 = sbr.rel (%p139) target = $region12
    $region11: #{muse_generator_forward.14} parent=5 // pred_region
      %s143 = ssub.s32 %s9, 1
    $region12: #{muse_generator_forward.14} parent=5 // pred_fallthru
      _
    %p144 = scmp.lt.s32.totalorder %s9, 8
    // Predicated region
    $region13: #{muse_generator_forward.14} parent=5 // pred_check
      %p145 = pneg %p144
    $region14: #{muse_generator_forward.14} parent=5 // pred_check_branch
      %147 = sbr.rel (%p145) target = $region16
    $region15: #{muse_generator_forward.14} parent=5 // pred_region
      // Predicated region
      $region17: #{muse_generator_forward.14} parent=15 // pred_check
        %p148 = pneg %p43
      $region18: #{muse_generator_forward.14} parent=15 // pred_check_branch
        %150 = sbr.rel (%p148) target = $region20
      $region19: #{muse_generator_forward.14} parent=15 // pred_region
        %p151 = scmp.lt.s32.totalorder %s16, 3
        %s152 = scalar_select %p151, %s16, 3
        %p153 = scmp.lt.s32.totalorder %s17, 1
        %s154 = scalar_select %p153, %s17, 1
        %s155 = smul.addr %s154, 4
        %s156 = smul.addr %s152, 8
        %s157 = sadd.s32 %s155, %s156
        %s158 = smul.addr %s157, 8
        %s159 = scalar_lea.vmem %s0, %s158
      $region20: #{muse_generator_forward.14} parent=15 // pred_fallthru
        _
      // Predicated region
      $region21: #{muse_generator_forward.14} parent=15 // pred_check
        %p160 = pneg %p69
      $region22: #{muse_generator_forward.14} parent=15 // pred_check_branch
        %162 = sbr.rel (%p160) target = $region24
      $region23: #{muse_generator_forward.14} parent=15 // pred_region
        %p163 = scmp.lt.s32.totalorder %s16, 3
        %s164 = scalar_select %p163, %s16, 3
        %s165 = smul.addr %s164, 8
        %s166 = smul.addr %s165, 8
        %s167 = scalar_lea.vmem %s1, %s166
      $region24: #{muse_generator_forward.14} parent=15 // pred_fallthru
        _
      // Predicated region
      $region25: #{muse_generator_forward.14} parent=15 // pred_check
        %p168 = pneg %p95
      $region26: #{muse_generator_forward.14} parent=15 // pred_check_branch
        %170 = sbr.rel (%p168) target = $region28
      $region27: #{muse_generator_forward.14} parent=15 // pred_region
        %p171 = scmp.lt.s32.totalorder %s16, 3
        %s172 = scalar_select %p171, %s16, 3
        %s173 = smul.addr %s172, 2
        %s174 = smul.addr %s173, 4
        %s175 = scalar_lea.vmem %s2, %s174
      $region28: #{muse_generator_forward.14} parent=15 // pred_fallthru
        _
    $region16: #{muse_generator_forward.14} parent=5 // pred_fallthru
      _
    %p176 = scmp.le.s32.totalorder 1, %s9
    %p177 = scmp.lt.s32.totalorder %s9, 9
    %p178 = pnand %p176, %p177
    %p179 = pneg %p178
    // Predicated region
    $region29: #{muse_generator_forward.14} parent=5 // pred_check
      _
    $region30: #{muse_generator_forward.14} parent=5 // pred_check_branch
      %181 = sbr.rel (%p178) target = $region32
    $region31: #{muse_generator_forward.14} parent=5 // pred_region
      %s182 = ssub.s32 %s9, 1
      %p183 = scmp.lt.s32.totalorder %s18, 3
      %s184 = scalar_select %p183, %s18, 3
      %p185 = scmp.lt.s32.totalorder %s19, 1
      %s186 = scalar_select %p185, %s19, 1
      %s187 = smul.addr %s186, 4
      %s188 = smul.addr %s184, 8
      %s189 = sadd.s32 %s187, %s188
      %s190 = smul.addr %s189, 8
      %s191 = scalar_lea.vmem %s0, %s190
      %p192 = pneg %p49
      %p193 = pneg %p46
      %p194 = scmp.lt.s32.totalorder %s18, 3
      %s195 = scalar_select %p194, %s18, 3
      %s196 = smul.addr %s195, 8
      %s197 = smul.addr %s196, 8
      %s198 = scalar_lea.vmem %s1, %s197
      %p199 = pneg %p75
      %p200 = pneg %p72
      %p201 = scmp.lt.s32.totalorder %s18, 3
      %s202 = scalar_select %p201, %s18, 3
      %s203 = smul.addr %s202, 2
      %s204 = smul.addr %s203, 4
      %s205 = scalar_lea.vmem %s2, %s204
      %p206 = pneg %p101
      %p207 = pneg %p98
      %p208 = pneg %p129
      %p209 = pneg %p126
      %p210 = scmp.lt.s32.totalorder %s18, 3
      %s211 = scalar_select %p210, %s18, 3
      %p212 = scmp.lt.s32.totalorder %s19, 1
      %s213 = scalar_select %p212, %s19, 1
      %s214 = smul.addr %s213, 8
      %s215 = smul.addr %s211, 16
      %s216 = sadd.s32 %s214, %s215
      %s217 = smul.addr %s216, 8
      %s218 = scalar_lea.vmem %s3, %s217
      %p219 = scmp.lt.s32.totalorder %s18, 3
      %s220 = scalar_select %p219, %s18, 3
      %p221 = scmp.lt.s32.totalorder %s19, 1
      %s222 = scalar_select %p221, %s19, 1
      %s223 = smul.addr %s222, 4
      %s224 = smul.addr %s220, 8
      %s225 = sadd.s32 %s223, %s224
      %s226 = smul.addr %s225, 8
      %s227 = scalar_lea.vmem %s0, %s226
      %p228 = scmp.lt.s32.totalorder %s18, 3
      %s229 = scalar_select %p228, %s18, 3
      %s230 = smul.addr %s229, 8
      %s231 = smul.addr %s230, 8
      %s232 = scalar_lea.vmem %s1, %s231
      %p233 = scmp.lt.s32.totalorder %s18, 3
      %s234 = scalar_select %p233, %s18, 3
      %s235 = smul.addr %s234, 2
      %s236 = smul.addr %s235, 4
      %s237 = scalar_lea.vmem %s2, %s236
      %p238 = scmp.lt.s32.totalorder %s18, 3
      %s239 = scalar_select %p238, %s18, 3
      %p240 = scmp.lt.s32.totalorder %s19, 1
      %s241 = scalar_select %p240, %s19, 1
      %s242 = smul.addr %s241, 8
      %s243 = smul.addr %s239, 16
      %s244 = sadd.s32 %s242, %s243
      %s245 = smul.addr %s244, 8
      %s246 = scalar_lea.vmem %s3, %s245
      %v247 = vld [vmem:[%s227] sm:$0xff]
      %v248 = vld [vmem:[%s227 + $0x8] sm:$0xff]
      %v249 = vld [vmem:[%s227 + $0x10] sm:$0xff]
      %v250 = vld [vmem:[%s227 + $0x18] sm:$0xff]
      %v251 = vld [vmem:[%s232] sm:$0xff]
      %v252 = vld [vmem:[%s232 + $0x8] sm:$0xff]
      %v253 = vld [vmem:[%s232 + $0x10] sm:$0xff]
      %v254 = vld [vmem:[%s232 + $0x18] sm:$0xff]
      %v255 = vld [vmem:[%s232 + $0x20] sm:$0xff]
      %v256 = vld [vmem:[%s232 + $0x28] sm:$0xff]
      %v257 = vld [vmem:[%s232 + $0x30] sm:$0xff]
      %v258 = vld [vmem:[%s232 + $0x38] sm:$0xff]
      %v259 = vld [vmem:[%s237] ss:$4 sm:$0x3]
      %v261 = vlaneseq
      %v262 = vshrl.u32 %v261, 7
      %v263 = vsub.s32 0, %v262
      %v264 = vrot.slane %v259, %v263
      %v265 = vlaneseq
      %v266 = vshrl.u32 %v265, 7
      %v267 = vsub.s32 1, %v266
      %v268 = vrot.slane %v259, %v267
      %vm271 = vcmask 261120
      %v273 = vsel %vm271, %v247, 0
      %v276 = vsel %vm271, %v248, 0
      %v279 = vsel %vm271, %v249, 0
      %v282 = vsel %vm271, %v250, 0
      %284 = vmatprep.subr.mxu0 %v252
      %285 = vmatpush1.msra.mxu0 %v251
      %286 = vmatprep.subr.mxu0 %v254
      %287 = vmatpush1.msra.mxu0 %v253
      %288 = vmatprep.subr.mxu0 %v256
      %289 = vmatpush1.msra.mxu0 %v255
      %290 = vmatprep.subr.mxu0 %v258
      %291 = vmatpush1.msra.mxu0 %v257
      %292 = vmatprep.subr.mxu0 0.0
      %293 = vmatpush1.msra.mxu0 0.0
      %294 = vmatprep.subr.mxu0 0.0
      %295 = vmatpush1.msra.mxu0 0.0
      %296 = vmatprep.subr.mxu0 0.0
      %297 = vmatpush1.msra.mxu0 0.0
      %298 = vmatprep.subr.mxu0 0.0
      %299 = vmatpush1.msra.mxu0 0.0
      %300 = vmatprep.subr.mxu0 0.0
      %301 = vmatpush1.msra.mxu0 0.0
      %302 = vmatprep.subr.mxu0 0.0
      %303 = vmatpush1.msra.mxu0 0.0
      %304 = vmatprep.subr.mxu0 0.0
      %305 = vmatpush1.msra.mxu0 0.0
      %306 = vmatprep.subr.mxu0 0.0
      %307 = vmatpush1.msra.mxu0 0.0
      %308 = vmatprep.subr.mxu0 0.0
      %309 = vmatpush1.msra.mxu0 0.0
      %310 = vmatprep.subr.mxu0 0.0
      %311 = vmatpush1.msra.mxu0 0.0
      %312 = vmatprep.subr.mxu0 0.0
      %313 = vmatpush1.msra.mxu0 0.0
      %314 = vmatprep.subr.mxu0 0.0
      %315 = vmatpush1.msra.mxu0 0.0
      %316 = vmatprep.subr.mxu0 0.0
      %317 = vmatpush1.msra.mxu0 0.0
      %318 = vmatprep.subr.mxu0 0.0
      %319 = vmatpush1.msra.mxu0 0.0
      %320 = vmatprep.subr.mxu0 0.0
      %321 = vmatpush1.msra.mxu0 0.0
      %322 = vmatprep.subr.mxu0 0.0
      %323 = vmatpush1.msra.mxu0 0.0
      %324 = vmatprep.subr.mxu0 0.0
      %325 = vmatpush1.msra.mxu0 0.0
      %326 = vmatprep.subr.mxu0 0.0
      %327 = vmatpush1.msra.mxu0 0.0
      %328 = vmatprep.subr.mxu0 0.0
      %329 = vmatpush1.msra.mxu0 0.0
      %330 = vmatprep.subr.mxu0 0.0
      %331 = vmatpush1.msra.mxu0 0.0
      %332 = vmatprep.subr.mxu0 0.0
      %333 = vmatpush1.msra.mxu0 0.0
      %334 = vmatprep.subr.mxu0 0.0
      %335 = vmatpush1.msra.mxu0 0.0
      %336 = vmatprep.subr.mxu0 0.0
      %337 = vmatpush1.msra.mxu0 0.0
      %338 = vmatprep.subr.mxu0 0.0
      %339 = vmatpush1.msra.mxu0 0.0
      %340 = vmatprep.subr.mxu0 0.0
      %341 = vmatpush1.msra.mxu0 0.0
      %342 = vmatprep.subr.mxu0 0.0
      %343 = vmatpush1.msra.mxu0 0.0
      %344 = vmatprep.subr.mxu0 0.0
      %345 = vmatpush1.msra.mxu0 0.0
      %346 = vmatprep.subr.mxu0 0.0
      %347 = vmatpush1.msra.mxu0 0.0
      %348 = vmatprep.mubr.f32.mxu0 0.0
      %349 = vmatmul.mubr.f32.gmra.mrb[0].mxu0 %v273
      %v350 = vpop.f32.mrb[0].mxu0
      %v351 = vadd.f32 %v264, %v350
      %v352 = vpop.f32.mrb[0].mxu0
      %v353 = vadd.f32 %v268, %v352
      %354 = vmatprep.mubr.f32.mxu0 0.0
      %355 = vmatmul.mubr.f32.gmra.mrb[0].mxu0 %v276
      %v356 = vpop.f32.mrb[0].mxu0
      %v357 = vadd.f32 %v264, %v356
      %v358 = vpop.f32.mrb[0].mxu0
      %v359 = vadd.f32 %v268, %v358
      %360 = vmatprep.mubr.f32.mxu0 0.0
      %361 = vmatmul.mubr.f32.gmra.mrb[0].mxu0 %v279
      %v362 = vpop.f32.mrb[0].mxu0
      %v363 = vadd.f32 %v264, %v362
      %v364 = vpop.f32.mrb[0].mxu0
      %v365 = vadd.f32 %v268, %v364
      %366 = vmatprep.mubr.f32.mxu0 0.0
      %367 = vmatmul.mubr.f32.gmra.mrb[0].mxu0 %v282
      %v368 = vpop.f32.mrb[0].mxu0
      %v369 = vadd.f32 %v264, %v368
      %v370 = vpop.f32.mrb[0].mxu0
      %v371 = vadd.f32 %v268, %v370
      %372 = vdwg.mxu0
      %v373 = vadd.f32 %v351, %v357
      %v374 = vadd.f32 %v373, %v363
      %v375 = vadd.f32 %v374, %v369
      %v376 = vrot.slane %v375, 4
      %v377 = vadd.f32 %v375, %v376
      %v378 = vrot.slane %v377, 2
      %v379 = vadd.f32 %v377, %v378
      %v380 = vrot.slane %v379, 1
      %v381 = vadd.f32 %v379, %v380
      %vm382 = vcmask 785408
      %v383 = vsel %vm382, %v353, 0.0
      %v384 = vsel %vm382, %v359, 0.0
      %v385 = vadd.f32 %v383, %v384
      %v386 = vsel %vm382, %v365, 0.0
      %v387 = vadd.f32 %v385, %v386
      %v388 = vsel %vm382, %v371, 0.0
      %v389 = vadd.f32 %v387, %v388
      %v390 = vrot.slane %v389, 4
      %v391 = vadd.f32 %v389, %v390
      %v392 = vrot.slane %v391, 2
      %v393 = vadd.f32 %v391, %v392
      %v394 = vrot.slane %v393, 1
      %v395 = vadd.f32 %v393, %v394
      %397 = vrot.lane.b32.xlu0 %v381, 96
      %v398 = vpop.permute.xlu0 %397
      %v400 = vadd.f32 %v381, %v398
      %401 = vrot.lane.b32.xlu0 %v381, 64
      %v402 = vpop.permute.xlu0 %401
      %v404 = vadd.f32 %v400, %v402
      %405 = vrot.lane.b32.xlu0 %v381, 32
      %v406 = vpop.permute.xlu0 %405
      %v408 = vadd.f32 %v404, %v406
      %v409 = vadd.f32 %v408, %v395
      %411 = vrot.lane.b32.xlu0 %v395, 96
      %v412 = vpop.permute.xlu0 %411
      %v414 = vadd.f32 %v409, %v412
      %415 = vrot.lane.b32.xlu0 %v395, 64
      %v416 = vpop.permute.xlu0 %415
      %v418 = vadd.f32 %v414, %v416
      %v419 = vrcp.pop 224.0
      %v420 = vmul.f32 %v418, %v419
      %422 = vrot.lane.b32.xlu0 %v420, 32
      %v423 = vpop.permute.xlu0 %422
      %425 = vrot.lane.b32.xlu0 %v420, 64
      %v426 = vpop.permute.xlu0 %425
      %428 = vrot.lane.b32.xlu0 %v420, 96
      %v429 = vpop.permute.xlu0 %428
      %v431 = vsel %vm271, %v420, %v423
      %vm432 = vcmask 523264
      %v433 = vsel %vm432, %v431, %v426
      %v434 = vsel %vm382, %v433, %v429
      %v435 = vlaneseq
      %v436 = vshrl.u32 %v435, 7
      %v437 = vsub.s32 0, %v436
      %v438 = vrot.slane %v434, %v437
      %v439 = vlaneseq
      %v440 = vshrl.u32 %v439, 7
      %v441 = vsub.s32 0, %v440
      %v442 = vrot.slane %v433, %v441
      %v443 = vsub.f32 %v351, %v438
      %v444 = vsub.f32 %v353, %v442
      %v445 = vsub.f32 %v357, %v438
      %v446 = vsub.f32 %v359, %v442
      %v447 = vsub.f32 %v363, %v438
      %v448 = vsub.f32 %v365, %v442
      %v449 = vsub.f32 %v369, %v438
      %v450 = vsub.f32 %v371, %v442
      %v451 = vmul.f32 %v443, %v443
      %v452 = vmul.f32 %v444, %v444
      %v453 = vmul.f32 %v445, %v445
      %v454 = vmul.f32 %v446, %v446
      %v455 = vmul.f32 %v447, %v447
      %v456 = vmul.f32 %v448, %v448
      %v457 = vmul.f32 %v449, %v449
      %v458 = vmul.f32 %v450, %v450
      %v459 = vadd.f32 %v451, %v453
      %v460 = vadd.f32 %v459, %v455
      %v461 = vadd.f32 %v460, %v457
      %v462 = vrot.slane %v461, 4
      %v463 = vadd.f32 %v461, %v462
      %v464 = vrot.slane %v463, 2
      %v465 = vadd.f32 %v463, %v464
      %v466 = vrot.slane %v465, 1
      %v467 = vadd.f32 %v465, %v466
      %v468 = vsel %vm382, %v452, 0.0
      %v469 = vsel %vm382, %v454, 0.0
      %v470 = vadd.f32 %v468, %v469
      %v471 = vsel %vm382, %v456, 0.0
      %v472 = vadd.f32 %v470, %v471
      %v473 = vsel %vm382, %v458, 0.0
      %v474 = vadd.f32 %v472, %v473
      %v475 = vrot.slane %v474, 4
      %v476 = vadd.f32 %v474, %v475
      %v477 = vrot.slane %v476, 2
      %v478 = vadd.f32 %v476, %v477
      %v479 = vrot.slane %v478, 1
      %v480 = vadd.f32 %v478, %v479
      %482 = vrot.lane.b32.xlu0 %v467, 96
      %v483 = vpop.permute.xlu0 %482
      %v485 = vadd.f32 %v467, %v483
      %486 = vrot.lane.b32.xlu0 %v467, 64
      %v487 = vpop.permute.xlu0 %486
      %v489 = vadd.f32 %v485, %v487
      %490 = vrot.lane.b32.xlu0 %v467, 32
      %v491 = vpop.permute.xlu0 %490
      %v493 = vadd.f32 %v489, %v491
      %v494 = vadd.f32 %v493, %v480
      %496 = vrot.lane.b32.xlu0 %v480, 96
      %v497 = vpop.permute.xlu0 %496
      %v499 = vadd.f32 %v494, %v497
      %500 = vrot.lane.b32.xlu0 %v480, 64
      %v501 = vpop.permute.xlu0 %500
      %v503 = vadd.f32 %v499, %v501
      %v504 = vmul.f32 %v503, %v419
      %v505 = vadd.f32 %v504, 1e-05
      %v506 = vrsqrt.pop %v505
      %508 = vrot.lane.b32.xlu0 %v506, 32
      %v509 = vpop.permute.xlu0 %508
      %511 = vrot.lane.b32.xlu0 %v506, 64
      %v512 = vpop.permute.xlu0 %511
      %514 = vrot.lane.b32.xlu0 %v506, 96
      %v515 = vpop.permute.xlu0 %514
      %v517 = vsel %vm271, %v506, %v509
      %v518 = vsel %vm432, %v517, %v512
      %v519 = vsel %vm382, %v518, %v515
      %v520 = vlaneseq
      %v521 = vshrl.u32 %v520, 7
      %v522 = vsub.s32 0, %v521
      %v523 = vrot.slane %v519, %v522
      %v524 = vlaneseq
      %v525 = vshrl.u32 %v524, 7
      %v526 = vsub.s32 0, %v525
      %v527 = vrot.slane %v518, %v526
      %v528 = vmul.f32 %v443, %v523
      %v529 = vmul.f32 %v444, %v527
      %v530 = vmul.f32 %v445, %v523
      %v531 = vmul.f32 %v446, %v527
      %v532 = vmul.f32 %v447, %v523
      %v533 = vmul.f32 %v448, %v527
      %v534 = vmul.f32 %v449, %v523
      %v535 = vmul.f32 %v450, %v527
      %s536 = scalar_lea.vmem %s237, 1
      %v537 = vld [vmem:[%s536] ss:$4 sm:$0x3]
      %v539 = vlaneseq
      %v540 = vshrl.u32 %v539, 7
      %v541 = vsub.s32 0, %v540
      %v542 = vrot.slane %v537, %v541
      %v543 = vlaneseq
      %v544 = vshrl.u32 %v543, 7
      %v545 = vsub.s32 1, %v544
      %v546 = vrot.slane %v537, %v545
      %v549 = vmul.f32 %v528, %v542
      %v550 = vmul.f32 %v529, %v546
      %v551 = vmul.f32 %v530, %v542
      %v552 = vmul.f32 %v531, %v546
      %v553 = vmul.f32 %v532, %v542
      %v554 = vmul.f32 %v533, %v546
      %v555 = vmul.f32 %v534, %v542
      %v556 = vmul.f32 %v535, %v546
      %s557 = scalar_lea.vmem %s237, 2
      %v558 = vld [vmem:[%s557] ss:$4 sm:$0x3]
      %v560 = vlaneseq
      %v561 = vshrl.u32 %v560, 7
      %v562 = vsub.s32 0, %v561
      %v563 = vrot.slane %v558, %v562
      %v564 = vlaneseq
      %v565 = vshrl.u32 %v564, 7
      %v566 = vsub.s32 1, %v565
      %v567 = vrot.slane %v558, %v566
      %v570 = vadd.f32 %v549, %v563
      %v571 = vadd.f32 %v550, %v567
      %v572 = vadd.f32 %v551, %v563
      %v573 = vadd.f32 %v552, %v567
      %v574 = vadd.f32 %v553, %v563
      %v575 = vadd.f32 %v554, %v567
      %v576 = vadd.f32 %v555, %v563
      %v577 = vadd.f32 %v556, %v567
      %v578 = vmax.f32 %v570, 0.0
      %v579 = vmax.f32 %v571, 0.0
      %v580 = vmax.f32 %v572, 0.0
      %v581 = vmax.f32 %v573, 0.0
      %v582 = vmax.f32 %v574, 0.0
      %v583 = vmax.f32 %v575, 0.0
      %v584 = vmax.f32 %v576, 0.0
      %v585 = vmax.f32 %v577, 0.0
      %586 = vst [vmem:[%s246] sm:$0xff] %v578
      %587 = vst.msk [vmem:[%s246 + $0x8] sm:$0xff] %vm382, %v579
      %588 = vst [vmem:[%s246 + $0x10] sm:$0xff] %v580
      %589 = vst.msk [vmem:[%s246 + $0x18] sm:$0xff] %vm382, %v581
      %590 = vst [vmem:[%s246 + $0x20] sm:$0xff] %v582
      %591 = vst.msk [vmem:[%s246 + $0x28] sm:$0xff] %vm382, %v583
      %592 = vst [vmem:[%s246 + $0x30] sm:$0xff] %v584
      %593 = vst.msk [vmem:[%s246 + $0x38] sm:$0xff] %vm382, %v585
      %p594 = scmp.lt.s32.totalorder %s18, 3
      %s595 = scalar_select %p594, %s18, 3
      %p596 = scmp.lt.s32.totalorder %s19, 1
      %s597 = scalar_select %p596, %s19, 1
      %s598 = smul.addr %s597, 8
      %s599 = smul.addr %s595, 16
      %s600 = sadd.s32 %s598, %s599
      %s601 = smul.addr %s600, 8
      %s602 = scalar_lea.vmem %s3, %s601
      // Predicated region
      $region33: #{muse_generator_forward.14} parent=31 // pred_check
        %p603 = pneg %p126
      $region34: #{muse_generator_forward.14} parent=31 // pred_check_branch
        %605 = sbr.rel (%p603) target = $region36
      $region35: #{muse_generator_forward.14} parent=31 // pred_region
        _
      $region36: #{muse_generator_forward.14} parent=31 // pred_fallthru
        _
    $region32: #{muse_generator_forward.14} parent=5 // pred_fallthru
      _
    %p606 = scmp.le.s32.totalorder 2, %s9
    // Predicated region
    $region37: #{muse_generator_forward.14} parent=5 // pred_check
      %p607 = pneg %p606
    $region38: #{muse_generator_forward.14} parent=5 // pred_check_branch
      %609 = sbr.rel (%p607) target = $region40
    $region39: #{muse_generator_forward.14} parent=5 // pred_region
      %s610 = ssub.s32 %s9, 2
      // Predicated region
      $region41: #{muse_generator_forward.14} parent=39 // pred_check
        %p611 = pneg %p132
      $region42: #{muse_generator_forward.14} parent=39 // pred_check_branch
        %613 = sbr.rel (%p611) target = $region44
      $region43: #{muse_generator_forward.14} parent=39 // pred_region
        %p614 = scmp.lt.s32.totalorder %s20, 3
        %s615 = scalar_select %p614, %s20, 3
        %p616 = scmp.lt.s32.totalorder %s21, 1
        %s617 = scalar_select %p616, %s21, 1
        %s618 = smul.addr %s617, 8
        %s619 = smul.addr %s615, 16
        %s620 = sadd.s32 %s618, %s619
        %s621 = smul.addr %s620, 8
        %s622 = scalar_lea.vmem %s3, %s621
      $region44: #{muse_generator_forward.14} parent=39 // pred_fallthru
        _
    $region40: #{muse_generator_forward.14} parent=5 // pred_fallthru
      _
  $region6: #{muse_generator_forward.14} parent=0 // loop_footer
    %s13 = sadd.s32 1, %s9
  $region7: #{muse_generator_forward.14} parent=0 // loop_footer_branch
    %8 = sbr.rel target = $region3
  $region8: #{muse_generator_forward.14} parent=0 // loop_exit
    _

// kernel: muse_generator_forward.15
$region0: #{muse_generator_forward.15}
  #allocation0 [shape = 'u32[]', space=smem, size = 0x4, offset = 0x4, fixed_abs, tag = 'smem constant byte address 0x4 - core index']
  #allocation1 [shape = 'u32[144,128]{1,0:T(1,128)}', space=vmem, size = 0x12000, scoped, tag = 'internal scratch']
  %s0 = inlined_call_operand.vmem [shape: f32[4,2,32,224], index: 0, kind: input, shape index: {}]
  %s1 = inlined_call_operand.vmem [shape: f32[4,224,84], index: 1, kind: input, shape index: {}]
  %s2 = inlined_call_operand.vmem [shape: f32[4,1,84], index: 2, kind: input, shape index: {}]
  %s3 = inlined_call_operand.vmem [shape: f32[4,2,32,84], index: 3, kind: output, shape index: {}]
  %s4 = sld [smem:[#allocation0]]
  $region45: #{muse_generator_forward.15} parent=0
    _
  %s6 = ssub.s32 1, %s4
  %s7 = scalar_select 0, %s6, %s4
  loop: start=0, step=1, limit=10
  $region2: #{muse_generator_forward.15} parent=0 // loop_pre_header
    _
  $region3: #{muse_generator_forward.15} parent=0 // loop_header
    %s9 = sphi 0, %s13
    %p10 = scmp.ge.s32.totalorder %s9, 10
    %s16 = sphi 0, %s28
    %s17 = sphi 0, %s24
    %s18 = sphi 0, %s16
    %s19 = sphi 0, %s17
    %s20 = sphi 0, %s18
    %s21 = sphi 0, %s19
    %s33 = sphi 0, %s35
    %s36 = sphi 0, %s33
    %s37 = sphi 0, %s36
    %s53 = sphi 0, %s37
    %s59 = sphi 0, %s61
    %s62 = sphi 0, %s59
    %s63 = sphi 0, %s62
    %s79 = sphi 0, %s63
    %s85 = sphi 0, %s87
    %s88 = sphi 0, %s85
    %s89 = sphi 0, %s88
    %s105 = sphi 0, %s89
    %s113 = sphi 0, %s115
    %s116 = sphi 0, %s113
    %s117 = sphi 0, %s116
    %s133 = sphi 0, %s117
  $region4: #{muse_generator_forward.15} parent=0 // loop_header_branch
    %12 = sbr.rel (%p10) target = $region8
  $region5: #{muse_generator_forward.15} parent=0 // loop_body
    %s14 = ssub.s32 %s9, 1
    %s15 = ssub.s32 %s9, 2
    %s22 = sadd.s32 1, %s17
    %p23 = scmp.ge.s32.totalorder %s22, 2
    %s24 = scalar_select %p23, 0, %s22
    %s25 = sadd.s32 1, %s16
    %s26 = scalar_select %p23, %s25, %s16
    %p27 = scmp.ge.s32.totalorder %s26, 4
    %s28 = scalar_select %p27, 0, %s26
    %s29 = ssub.s32 %s16, %s28
    %s30 = ssub.s32 %s17, %s24
    %s31 = sor.u32 %s29, %s30
    %p32 = scmp.eq.s32.totalorder %s31, 0
    %s34 = sadd.s32 %s33, 1
    %s35 = scalar_select %p32, %s33, %s34
    %p38 = pneg %p32
    %p39 = scmp.eq.s32.totalorder %s9, 7
    %p40 = por %p38, %p39
    %p41 = scmp.ne.s32.totalorder %s33, %s36
    %p42 = scmp.eq.s32.totalorder %s9, 0
    %p43 = por %p41, %p42
    %p44 = scmp.ne.s32.totalorder %s33, %s36
    %p45 = scmp.eq.s32.totalorder %s14, 7
    %p46 = por %p44, %p45
    %p47 = scmp.ne.s32.totalorder %s36, %s37
    %p48 = scmp.eq.s32.totalorder %s14, 0
    %p49 = por %p47, %p48
    %p50 = scmp.ne.s32.totalorder %s36, %s37
    %p51 = scmp.eq.s32.totalorder %s15, 7
    %p52 = por %p50, %p51
    %p54 = scmp.ne.s32.totalorder %s37, %s53
    %p55 = scmp.eq.s32.totalorder %s15, 0
    %p56 = por %p54, %p55
    %s57 = ssub.s32 %s16, %s28
    %p58 = scmp.eq.s32.totalorder %s57, 0
    %s60 = sadd.s32 %s59, 1
    %s61 = scalar_select %p58, %s59, %s60
    %p64 = pneg %p58
    %p65 = scmp.eq.s32.totalorder %s9, 7
    %p66 = por %p64, %p65
    %p67 = scmp.ne.s32.totalorder %s59, %s62
    %p68 = scmp.eq.s32.totalorder %s9, 0
    %p69 = por %p67, %p68
    %p70 = scmp.ne.s32.totalorder %s59, %s62
    %p71 = scmp.eq.s32.totalorder %s14, 7
    %p72 = por %p70, %p71
    %p73 = scmp.ne.s32.totalorder %s62, %s63
    %p74 = scmp.eq.s32.totalorder %s14, 0
    %p75 = por %p73, %p74
    %p76 = scmp.ne.s32.totalorder %s62, %s63
    %p77 = scmp.eq.s32.totalorder %s15, 7
    %p78 = por %p76, %p77
    %p80 = scmp.ne.s32.totalorder %s63, %s79
    %p81 = scmp.eq.s32.totalorder %s15, 0
    %p82 = por %p80, %p81
    %s83 = ssub.s32 %s16, %s28
    %p84 = scmp.eq.s32.totalorder %s83, 0
    %s86 = sadd.s32 %s85, 1
    %s87 = scalar_select %p84, %s85, %s86
    %p90 = pneg %p84
    %p91 = scmp.eq.s32.totalorder %s9, 7
    %p92 = por %p90, %p91
    %p93 = scmp.ne.s32.totalorder %s85, %s88
    %p94 = scmp.eq.s32.totalorder %s9, 0
    %p95 = por %p93, %p94
    %p96 = scmp.ne.s32.totalorder %s85, %s88
    %p97 = scmp.eq.s32.totalorder %s14, 7
    %p98 = por %p96, %p97
    %p99 = scmp.ne.s32.totalorder %s88, %s89
    %p100 = scmp.eq.s32.totalorder %s14, 0
    %p101 = por %p99, %p100
    %p102 = scmp.ne.s32.totalorder %s88, %s89
    %p103 = scmp.eq.s32.totalorder %s15, 7
    %p104 = por %p102, %p103
    %p106 = scmp.ne.s32.totalorder %s89, %s105
    %p107 = scmp.eq.s32.totalorder %s15, 0
    %p108 = por %p106, %p107
    %s109 = ssub.s32 %s16, %s28
    %s110 = ssub.s32 %s17, %s24
    %s111 = sor.u32 %s109, %s110
    %p112 = scmp.eq.s32.totalorder %s111, 0
    %s114 = sadd.s32 %s113, 1
    %s115 = scalar_select %p112, %s113, %s114
    %p118 = pneg %p112
    %p119 = scmp.eq.s32.totalorder %s9, 7
    %p120 = por %p118, %p119
    %p121 = scmp.ne.s32.totalorder %s113, %s116
    %p122 = scmp.eq.s32.totalorder %s9, 0
    %p123 = por %p121, %p122
    %p124 = scmp.ne.s32.totalorder %s113, %s116
    %p125 = scmp.eq.s32.totalorder %s14, 7
    %p126 = por %p124, %p125
    %p127 = scmp.ne.s32.totalorder %s116, %s117
    %p128 = scmp.eq.s32.totalorder %s14, 0
    %p129 = por %p127, %p128
    %p130 = scmp.ne.s32.totalorder %s116, %s117
    %p131 = scmp.eq.s32.totalorder %s15, 7
    %p132 = por %p130, %p131
    %p134 = scmp.ne.s32.totalorder %s117, %s133
    %p135 = scmp.eq.s32.totalorder %s15, 0
    %p136 = por %p134, %p135
    %p137 = scmp.le.s32.totalorder 1, %s9
    %p138 = scmp.lt.s32.totalorder %s9, 9
    %p139 = pnand %p137, %p138
    %p140 = pneg %p139
    // Predicated region
    $region9: #{muse_generator_forward.15} parent=5 // pred_check
      _
    $region10: #{muse_generator_forward.15} parent=5 // pred_check_branch
      %142 = sbr.rel (%p139) target = $region12
    $region11: #{muse_generator_forward.15} parent=5 // pred_region
      %s143 = ssub.s32 %s9, 1
    $region12: #{muse_generator_forward.15} parent=5 // pred_fallthru
      _
    %p144 = scmp.lt.s32.totalorder %s9, 8
    // Predicated region
    $region13: #{muse_generator_forward.15} parent=5 // pred_check
      %p145 = pneg %p144
    $region14: #{muse_generator_forward.15} parent=5 // pred_check_branch
      %147 = sbr.rel (%p145) target = $region16
    $region15: #{muse_generator_forward.15} parent=5 // pred_region
      // Predicated region
      $region17: #{muse_generator_forward.15} parent=15 // pred_check
        %p148 = pneg %p43
      $region18: #{muse_generator_forward.15} parent=15 // pred_check_branch
        %150 = sbr.rel (%p148) target = $region20
      $region19: #{muse_generator_forward.15} parent=15 // pred_region
        %p151 = scmp.lt.s32.totalorder %s16, 3
        %s152 = scalar_select %p151, %s16, 3
        %p153 = scmp.lt.s32.totalorder %s17, 1
        %s154 = scalar_select %p153, %s17, 1
        %s155 = smul.addr %s154, 8
        %s156 = smul.addr %s152, 16
        %s157 = sadd.s32 %s155, %s156
        %s158 = smul.addr %s157, 8
        %s159 = scalar_lea.vmem %s0, %s158
      $region20: #{muse_generator_forward.15} parent=15 // pred_fallthru
        _
      // Predicated region
      $region21: #{muse_generator_forward.15} parent=15 // pred_check
        %p160 = pneg %p69
      $region22: #{muse_generator_forward.15} parent=15 // pred_check_branch
        %162 = sbr.rel (%p160) target = $region24
      $region23: #{muse_generator_forward.15} parent=15 // pred_region
        %p163 = scmp.lt.s32.totalorder %s16, 3
        %s164 = scalar_select %p163, %s16, 3
        %s165 = smul.addr %s164, 28
        %s166 = smul.addr %s165, 8
        %s167 = scalar_lea.vmem %s1, %s166
      $region24: #{muse_generator_forward.15} parent=15 // pred_fallthru
        _
      // Predicated region
      $region25: #{muse_generator_forward.15} parent=15 // pred_check
        %p168 = pneg %p95
      $region26: #{muse_generator_forward.15} parent=15 // pred_check_branch
        %170 = sbr.rel (%p168) target = $region28
      $region27: #{muse_generator_forward.15} parent=15 // pred_region
        %p171 = scmp.lt.s32.totalorder %s16, 3
        %s172 = scalar_select %p171, %s16, 3
        %s173 = scalar_lea.vmem %s2, %s172
      $region28: #{muse_generator_forward.15} parent=15 // pred_fallthru
        _
    $region16: #{muse_generator_forward.15} parent=5 // pred_fallthru
      _
    %p174 = scmp.le.s32.totalorder 1, %s9
    %p175 = scmp.lt.s32.totalorder %s9, 9
    %p176 = pnand %p174, %p175
    %p177 = pneg %p176
    // Predicated region
    $region29: #{muse_generator_forward.15} parent=5 // pred_check
      _
    $region30: #{muse_generator_forward.15} parent=5 // pred_check_branch
      %179 = sbr.rel (%p176) target = $region32
    $region31: #{muse_generator_forward.15} parent=5 // pred_region
      %s180 = ssub.s32 %s9, 1
      %p181 = scmp.lt.s32.totalorder %s18, 3
      %s182 = scalar_select %p181, %s18, 3
      %p183 = scmp.lt.s32.totalorder %s19, 1
      %s184 = scalar_select %p183, %s19, 1
      %s185 = smul.addr %s184, 8
      %s186 = smul.addr %s182, 16
      %s187 = sadd.s32 %s185, %s186
      %s188 = smul.addr %s187, 8
      %s189 = scalar_lea.vmem %s0, %s188
      %p190 = pneg %p49
      %p191 = pneg %p46
      %p192 = scmp.lt.s32.totalorder %s18, 3
      %s193 = scalar_select %p192, %s18, 3
      %s194 = smul.addr %s193, 28
      %s195 = smul.addr %s194, 8
      %s196 = scalar_lea.vmem %s1, %s195
      %p197 = pneg %p75
      %p198 = pneg %p72
      %p199 = scmp.lt.s32.totalorder %s18, 3
      %s200 = scalar_select %p199, %s18, 3
      %s201 = scalar_lea.vmem %s2, %s200
      %p202 = pneg %p101
      %p203 = pneg %p98
      %p204 = pneg %p129
      %p205 = pneg %p126
      %p206 = scmp.lt.s32.totalorder %s18, 3
      %s207 = scalar_select %p206, %s18, 3
      %p208 = scmp.lt.s32.totalorder %s19, 1
      %s209 = scalar_select %p208, %s19, 1
      %s210 = smul.addr %s209, 4
      %s211 = smul.addr %s207, 8
      %s212 = sadd.s32 %s210, %s211
      %s213 = smul.addr %s212, 8
      %s214 = scalar_lea.vmem %s3, %s213
      %p215 = scmp.lt.s32.totalorder %s18, 3
      %s216 = scalar_select %p215, %s18, 3
      %p217 = scmp.lt.s32.totalorder %s19, 1
      %s218 = scalar_select %p217, %s19, 1
      %s219 = smul.addr %s218, 8
      %s220 = smul.addr %s216, 16
      %s221 = sadd.s32 %s219, %s220
      %s222 = smul.addr %s221, 8
      %s223 = scalar_lea.vmem %s0, %s222
      %p224 = scmp.lt.s32.totalorder %s18, 3
      %s225 = scalar_select %p224, %s18, 3
      %s226 = smul.addr %s225, 28
      %s227 = smul.addr %s226, 8
      %s228 = scalar_lea.vmem %s1, %s227
      %p229 = scmp.lt.s32.totalorder %s18, 3
      %s230 = scalar_select %p229, %s18, 3
      %s231 = scalar_lea.vmem %s2, %s230
      %p232 = scmp.lt.s32.totalorder %s18, 3
      %s233 = scalar_select %p232, %s18, 3
      %p234 = scmp.lt.s32.totalorder %s19, 1
      %s235 = scalar_select %p234, %s19, 1
      %s236 = smul.addr %s235, 4
      %s237 = smul.addr %s233, 8
      %s238 = sadd.s32 %s236, %s237
      %s239 = smul.addr %s238, 8
      %s240 = scalar_lea.vmem %s3, %s239
      %v241 = vld [vmem:[%s223] sm:$0xff]
      %v242 = vld [vmem:[%s223 + $0x8] sm:$0xff]
      %v243 = vld [vmem:[%s223 + $0x10] sm:$0xff]
      %v244 = vld [vmem:[%s223 + $0x18] sm:$0xff]
      %v245 = vld [vmem:[%s223 + $0x20] sm:$0xff]
      %v246 = vld [vmem:[%s223 + $0x28] sm:$0xff]
      %v247 = vld [vmem:[%s223 + $0x30] sm:$0xff]
      %v248 = vld [vmem:[%s223 + $0x38] sm:$0xff]
      %v249 = vld [vmem:[%s228] sm:$0xff]
      %v250 = vld [vmem:[%s228 + $0x8] sm:$0xff]
      %v251 = vld [vmem:[%s228 + $0x10] sm:$0xff]
      %v252 = vld [vmem:[%s228 + $0x18] sm:$0xff]
      %v253 = vld [vmem:[%s228 + $0x20] sm:$0xff]
      %v254 = vld [vmem:[%s228 + $0x28] sm:$0xff]
      %v255 = vld [vmem:[%s228 + $0x30] sm:$0xff]
      %v256 = vld [vmem:[%s228 + $0x38] sm:$0xff]
      %v257 = vld [vmem:[%s228 + $0x40] sm:$0xff]
      %v258 = vld [vmem:[%s228 + $0x48] sm:$0xff]
      %v259 = vld [vmem:[%s228 + $0x50] sm:$0xff]
      %v260 = vld [vmem:[%s228 + $0x58] sm:$0xff]
      %v261 = vld [vmem:[%s228 + $0x60] sm:$0xff]
      %v262 = vld [vmem:[%s228 + $0x68] sm:$0xff]
      %v263 = vld [vmem:[%s228 + $0x70] sm:$0xff]
      %v264 = vld [vmem:[%s228 + $0x78] sm:$0xff]
      %v265 = vld [vmem:[%s228 + $0x80] sm:$0xff]
      %v266 = vld [vmem:[%s228 + $0x88] sm:$0xff]
      %v267 = vld [vmem:[%s228 + $0x90] sm:$0xff]
      %v268 = vld [vmem:[%s228 + $0x98] sm:$0xff]
      %v269 = vld [vmem:[%s228 + $0xa0] sm:$0xff]
      %v270 = vld [vmem:[%s228 + $0xa8] sm:$0xff]
      %v271 = vld [vmem:[%s228 + $0xb0] sm:$0xff]
      %v272 = vld [vmem:[%s228 + $0xb8] sm:$0xff]
      %v273 = vld [vmem:[%s228 + $0xc0] sm:$0xff]
      %v274 = vld [vmem:[%s228 + $0xc8] sm:$0xff]
      %v275 = vld [vmem:[%s228 + $0xd0] sm:$0xff]
      %v276 = vld [vmem:[%s228 + $0xd8] sm:$0xff]
      %v277 = vld [vmem:[%s231] sm:$0x1]
      %v279 = vlaneseq
      %v280 = vshrl.u32 %v279, 7
      %v281 = vsub.s32 0, %v280
      %v282 = vrot.slane %v277, %v281
      %vm284 = vcmask 785408
      %v286 = vsel %vm284, %v242, 0
      %v289 = vsel %vm284, %v244, 0
      %v292 = vsel %vm284, %v246, 0
      %v295 = vsel %vm284, %v248, 0
      %297 = vmatprep.subr.mxu0 0.0
      %298 = vmatpush1.msra.mxu0 %v249
      %299 = vmatprep.subr.mxu0 0.0
      %300 = vmatpush1.msra.mxu0 %v250
      %301 = vmatprep.subr.mxu0 0.0
      %302 = vmatpush1.msra.mxu0 %v251
      %303 = vmatprep.subr.mxu0 0.0
      %304 = vmatpush1.msra.mxu0 %v252
      %305 = vmatprep.subr.mxu0 0.0
      %306 = vmatpush1.msra.mxu0 %v253
      %307 = vmatprep.subr.mxu0 0.0
      %308 = vmatpush1.msra.mxu0 %v254
      %309 = vmatprep.subr.mxu0 0.0
      %310 = vmatpush1.msra.mxu0 %v255
      %311 = vmatprep.subr.mxu0 0.0
      %312 = vmatpush1.msra.mxu0 %v256
      %313 = vmatprep.subr.mxu0 0.0
      %314 = vmatpush1.msra.mxu0 %v257
      %315 = vmatprep.subr.mxu0 0.0
      %316 = vmatpush1.msra.mxu0 %v258
      %317 = vmatprep.subr.mxu0 0.0
      %318 = vmatpush1.msra.mxu0 %v259
      %319 = vmatprep.subr.mxu0 0.0
      %320 = vmatpush1.msra.mxu0 %v260
      %321 = vmatprep.subr.mxu0 0.0
      %322 = vmatpush1.msra.mxu0 %v261
      %323 = vmatprep.subr.mxu0 0.0
      %324 = vmatpush1.msra.mxu0 %v262
      %325 = vmatprep.subr.mxu0 0.0
      %326 = vmatpush1.msra.mxu0 %v263
      %327 = vmatprep.subr.mxu0 0.0
      %328 = vmatpush1.msra.mxu0 %v264
      %329 = vmatprep.subr.mxu0 0.0
      %330 = vmatpush1.msra.mxu0 %v265
      %331 = vmatprep.subr.mxu0 0.0
      %332 = vmatpush1.msra.mxu0 %v266
      %333 = vmatprep.subr.mxu0 0.0
      %334 = vmatpush1.msra.mxu0 %v267
      %335 = vmatprep.subr.mxu0 0.0
      %336 = vmatpush1.msra.mxu0 %v268
      %337 = vmatprep.subr.mxu0 0.0
      %338 = vmatpush1.msra.mxu0 %v269
      %339 = vmatprep.subr.mxu0 0.0
      %340 = vmatpush1.msra.mxu0 %v270
      %341 = vmatprep.subr.mxu0 0.0
      %342 = vmatpush1.msra.mxu0 %v271
      %343 = vmatprep.subr.mxu0 0.0
      %344 = vmatpush1.msra.mxu0 %v272
      %345 = vmatprep.subr.mxu0 0.0
      %346 = vmatpush1.msra.mxu0 %v273
      %347 = vmatprep.subr.mxu0 0.0
      %348 = vmatpush1.msra.mxu0 %v274
      %349 = vmatprep.subr.mxu0 0.0
      %350 = vmatpush1.msra.mxu0 %v275
      %351 = vmatprep.subr.mxu0 0.0
      %352 = vmatpush1.msra.mxu0 %v276
      %353 = vmatprep.subr.mxu0 0.0
      %354 = vmatpush1.msra.mxu0 0.0
      %355 = vmatprep.subr.mxu0 0.0
      %356 = vmatpush1.msra.mxu0 0.0
      %357 = vmatprep.subr.mxu0 0.0
      %358 = vmatpush1.msra.mxu0 0.0
      %359 = vmatprep.subr.mxu0 0.0
      %360 = vmatpush1.msra.mxu0 0.0
      %361 = vmatprep.mubr.f32.mxu0 %v286
      %362 = vmatmul.mubr.f32.gmra.mrb[0].mxu0 %v241
      %v363 = vpop.f32.mrb[0].mxu0
      %v364 = vadd.f32 %v282, %v363
      %v365 = vpop.f32.mrb[0].mxu0
      %366 = vmatprep.mubr.f32.mxu0 %v289
      %367 = vmatmul.mubr.f32.gmra.mrb[0].mxu0 %v243
      %v368 = vpop.f32.mrb[0].mxu0
      %v369 = vadd.f32 %v282, %v368
      %v370 = vpop.f32.mrb[0].mxu0
      %371 = vmatprep.mubr.f32.mxu0 %v292
      %372 = vmatmul.mubr.f32.gmra.mrb[0].mxu0 %v245
      %v373 = vpop.f32.mrb[0].mxu0
      %v374 = vadd.f32 %v282, %v373
      %v375 = vpop.f32.mrb[0].mxu0
      %376 = vmatprep.mubr.f32.mxu0 %v295
      %377 = vmatmul.mubr.f32.gmra.mrb[0].mxu0 %v247
      %v378 = vpop.f32.mrb[0].mxu0
      %v379 = vadd.f32 %v282, %v378
      %v380 = vpop.f32.mrb[0].mxu0
      %381 = vdwg.mxu0
      %vm382 = vcmask 687104
      %383 = vst.msk [vmem:[%s240] sm:$0xff] %vm382, %v364
      %384 = vst.msk [vmem:[%s240 + $0x8] sm:$0xff] %vm382, %v369
      %385 = vst.msk [vmem:[%s240 + $0x10] sm:$0xff] %vm382, %v374
      %386 = vst.msk [vmem:[%s240 + $0x18] sm:$0xff] %vm382, %v379
      %p387 = scmp.lt.s32.totalorder %s18, 3
      %s388 = scalar_select %p387, %s18, 3
      %p389 = scmp.lt.s32.totalorder %s19, 1
      %s390 = scalar_select %p389, %s19, 1
      %s391 = smul.addr %s390, 4
      %s392 = smul.addr %s388, 8
      %s393 = sadd.s32 %s391, %s392
      %s394 = smul.addr %s393, 8
      %s395 = scalar_lea.vmem %s3, %s394
      // Predicated region
      $region33: #{muse_generator_forward.15} parent=31 // pred_check
        %p396 = pneg %p126
      $region34: #{muse_generator_forward.15} parent=31 // pred_check_branch
        %398 = sbr.rel (%p396) target = $region36
      $region35: #{muse_generator_forward.15} parent=31 // pred_region
        _
      $region36: #{muse_generator_forward.15} parent=31 // pred_fallthru
        _
    $region32: #{muse_generator_forward.15} parent=5 // pred_fallthru
      _
    %p399 = scmp.le.s32.totalorder 2, %s9
    // Predicated region
    $region37: #{muse_generator_forward.15} parent=5 // pred_check
      %p400 = pneg %p399
    $region38: #{muse_generator_forward.15} parent=5 // pred_check_branch
      %402 = sbr.rel (%p400) target = $region40
    $region39: #{muse_generator_forward.15} parent=5 // pred_region
      %s403 = ssub.s32 %s9, 2
      // Predicated region
      $region41: #{muse_generator_forward.15} parent=39 // pred_check
        %p404 = pneg %p132
      $region42: #{muse_generator_forward.15} parent=39 // pred_check_branch
        %406 = sbr.rel (%p404) target = $region44
      $region43: #{muse_generator_forward.15} parent=39 // pred_region
        %p407 = scmp.lt.s32.totalorder %s20, 3
        %s408 = scalar_select %p407, %s20, 3
        %p409 = scmp.lt.s32.totalorder %s21, 1
        %s410 = scalar_select %p409, %s21, 1
        %s411 = smul.addr %s410, 4
        %s412 = smul.addr %s408, 8
        %s413 = sadd.s32 %s411, %s412
        %s414 = smul.addr %s413, 8
        %s415 = scalar_lea.vmem %s3, %s414
      $region44: #{muse_generator_forward.15} parent=39 // pred_fallthru
        _
    $region40: #{muse_generator_forward.15} parent=5 // pred_fallthru
      _
  $region6: #{muse_generator_forward.15} parent=0 // loop_footer
    %s13 = sadd.s32 1, %s9
  $region7: #{muse_generator_forward.15} parent=0 // loop_footer_branch
    %8 = sbr.rel target = $region3
  $region8: #{muse_generator_forward.15} parent=0 // loop_exit
    _

</llo_original>
